<compile_context>
chip_gen: v5e
topology: v5e:2x2
jax: 0.10.0
libtpu: 0.0.40
codegen_flags: <defaults>
</compile_context>

<pallas_src>
import functools
import math

import jax
import jax.numpy as jnp
from jax.experimental import pallas as pl
from jax.experimental.pallas import tpu as pltpu

# -------------------- model hyper-parameters (small, synthetic) --------------------
N_NODES = 16
FEATURE_SIZE = 12
EMBEDDING_SIZE = 8          # per-head out_channels D
N_HEADS = 2
EDGE_DIM = 4
N_LAYERS = 2
NUM_CLASSES = 3
BN_EPS = 1e-5

PAD_COLS = 128              # lane-dense slab / output width
_PARAMS_PER_BLOCK = 8       # wqkvs, bqkvs, w_edge, wbeta2, w_tr, b_tr, bn_gamma, bn_beta


def _round8(n):
    return ((n + 7) // 8) * 8


# ------------------------------ MXU helpers (bf16 in, f32 acc) ---------------------

def _mxu(a, b):
    """a @ b on the MXU: bf16 inputs, f32 accumulation."""
    return jnp.dot(a.astype(jnp.bfloat16), b.astype(jnp.bfloat16),
                   preferred_element_type=jnp.float32)


def _mxu_nt(a, b):
    """a @ b.T without materializing the transpose (contract last dims)."""
    return jax.lax.dot_general(
        a.astype(jnp.bfloat16), b.astype(jnp.bfloat16),
        dimension_numbers=(((1,), (1,)), ((), ())),
        preferred_element_type=jnp.float32)


# ================================ fused forward kernel =============================

def _gnn_fused_kernel(graph_ref, pslab_ref, out_ref, msg_scr, ae_scr, *,
                      g_off, p_off, n_conv, n_heads, d, eps):
    """Whole GNN forward in one invocation; everything VMEM-resident.

    graph_ref : [Rg, 128] packed graph constants (x, adj, S_dst, S_dst^T, S_src, e_attr)
    pslab_ref : [Rp, 128] packed weights/biases for all conv blocks + classifier
    out_ref   : [N, 128]  lane-dense classifier output (cols >= NUM_CLASSES are zero)
    msg_scr   : [N, H*D]  per-head alpha@v accumulation (replaces jnp.concatenate)
    ae_scr    : [E, H*D]  per-head alpha_e*ek staging for one fused scatter matmul
    """
    hd = n_heads * d
    scale = 1.0 / math.sqrt(d)

    def gs(idx):
        r0, r, c = g_off[idx]
        return graph_ref[r0:r0 + r, 0:c]

    def ps(idx):
        r0, r, c = p_off[idx]
        return pslab_ref[r0:r0 + r, 0:c]

    x = gs(0)          # [N, F]
    adj = gs(1)        # [N, N]   adj[dst, src] = 1 where edge src->dst exists
    s_dst = gs(2)      # [N, E]   one-hot dst incidence
    s_dst_t = gs(3)    # [E, N]
    s_src = gs(4)      # [E, N]   one-hot src incidence
    e_attr = gs(5)     # [E, edge_dim]

    for blk in range(n_conv):
        base = blk * _PARAMS_PER_BLOCK
        wqkvs = ps(base + 0)    # [in, 4*H*D]
        bqkvs = ps(base + 1)    # [1, 4*H*D]
        w_edge = ps(base + 2)   # [edge_dim, H*D]
        wbeta2 = ps(base + 3)   # [2, H*D]   rows: (msg, skip) folded lin_beta
        w_tr = ps(base + 4)     # [H*D, D]
        b_tr = ps(base + 5)     # [1, D]
        bn_g = ps(base + 6)     # [1, D]
        bn_b = ps(base + 7)     # [1, D]

        # ---- fused q/k/v/skip projection: one MXU matmul, static lane slices ----
        proj = _mxu(x, wqkvs) + bqkvs
        q = proj[:, 0 * hd:1 * hd]
        k = proj[:, 1 * hd:2 * hd]
        v = proj[:, 2 * hd:3 * hd]
        skip = proj[:, 3 * hd:4 * hd]

        ek = _mxu(e_attr, w_edge)      # [E, H*D]  lin_edge (no bias)
        q_dst = _mxu(s_dst_t, q)       # [E, H*D]  q gathered at edge dsts (hoisted)

        # ---- per-head attention (static unroll over H heads) ----
        for h in range(n_heads):
            sl = slice(h * d, (h + 1) * d)
            qh, kh, vh = q[:, sl], k[:, sl], v[:, sl]
            ekh = ek[:, sl]

            # edge score <q[dst_e], ek_e> scattered to [N_dst, N_src] via incidence matmul
            s_e = jnp.sum(q_dst[:, sl] * ekh, axis=-1, keepdims=True)   # [E, 1]
            edge_scores = _mxu(s_dst, s_e * s_src)                      # [N, N]

            scores = (_mxu_nt(qh, kh) + edge_scores) * scale
            masked = jnp.where(adj > 0.0, scores, jnp.float32(-1e30))   # f32 mask
            m = jnp.max(masked, axis=1, keepdims=True)
            ew = jnp.exp(masked - m) * adj
            denom = jnp.sum(ew, axis=1, keepdims=True)
            inv = pl.reciprocal(jnp.where(denom == 0.0, 1.0, denom), approx=True)
            alpha = ew * inv                                            # isolated nodes -> 0

            # gather alpha per edge, stage alpha_e*ek_e for one fused scatter below
            alpha_e = jnp.sum(_mxu(s_dst_t, alpha) * s_src,
                              axis=-1, keepdims=True)                   # [E, 1]
            msg_scr[:, sl] = _mxu(alpha, vh)                            # [N, D]
            ae_scr[:, sl] = alpha_e * ekh                               # [E, D]

        # one scatter matmul for ALL heads; msg produced directly in [N, H*D] layout
        msg = msg_scr[...] + _mxu(s_dst, ae_scr[...])

        # ---- beta gating on VPU (+ lane reduce) instead of 1-column MXU matvecs ----
        z = jnp.sum(msg * wbeta2[0:1, :] + skip * wbeta2[1:2, :],
                    axis=-1, keepdims=True)
        beta = 0.5 * (jnp.tanh(0.5 * z) + 1.0)      # numerically-stable sigmoid
        x = beta * skip + (1.0 - beta) * msg        # [N, H*D]

        # ---- transf Linear + fused ReLU ----
        x = jnp.maximum(_mxu(x, w_tr) + b_tr, 0.0)

        # ---- BatchNorm1d (training-mode batch stats, biased variance) ----
        mean = jnp.mean(x, axis=0, keepdims=True)
        var = jnp.mean((x - mean) ** 2, axis=0, keepdims=True)
        x = bn_g * (x - mean) * jax.lax.rsqrt(var + eps) + bn_b

    # ---- final classifier: 128-lane zero-padded weights -> lane-dense store ----
    wo_r0, wo_r, _ = p_off[n_conv * _PARAMS_PER_BLOCK + 0]
    bo_r0, bo_r, _ = p_off[n_conv * _PARAMS_PER_BLOCK + 1]
    w_out = pslab_ref[wo_r0:wo_r0 + wo_r, :]        # [D, 128]
    b_out = pslab_ref[bo_r0:bo_r0 + bo_r, :]        # [1, 128]
    out_ref[...] = _mxu(x, w_out) + b_out


def gnn_forward(graph_slab, params_slab, g_off, p_off, n_nodes, n_edges):
    """Single grid-less pallas_call for the whole forward pass."""
    hd = N_HEADS * EMBEDDING_SIZE
    kernel = functools.partial(
        _gnn_fused_kernel,
        g_off=tuple(g_off), p_off=tuple(p_off),
        n_conv=1 + N_LAYERS, n_heads=N_HEADS, d=EMBEDDING_SIZE, eps=BN_EPS)
    out_padded = pl.pallas_call(
        kernel,
        out_shape=jax.ShapeDtypeStruct((n_nodes, PAD_COLS), jnp.float32),
        in_specs=[pl.BlockSpec(memory_space=pltpu.MemorySpace.VMEM),
                  pl.BlockSpec(memory_space=pltpu.MemorySpace.VMEM)],
        out_specs=pl.BlockSpec(memory_space=pltpu.MemorySpace.VMEM),
        scratch_shapes=[pltpu.VMEM((n_nodes, hd), jnp.float32),
                        pltpu.VMEM((n_edges, hd), jnp.float32)],
    )(graph_slab, params_slab)
    return out_padded[:, :NUM_CLASSES]


# ================================= parameter init ==================================

def _init_linear(key, fan_in, fan_out):
    kw, kb = jax.random.split(key)
    bound = 1.0 / math.sqrt(fan_in)
    w = jax.random.uniform(kw, (fan_in, fan_out), jnp.float32, -bound, bound)
    b = jax.random.uniform(kb, (1, fan_out), jnp.float32, -bound, bound)
    return w, b


def _init_conv(key, in_dim):
    H, D = N_HEADS, EMBEDDING_SIZE
    ks = jax.random.split(key, 6)
    wq, bq = _init_linear(ks[0], in_dim, H * D)
    wk, bk = _init_linear(ks[1], in_dim, H * D)
    wv, bv = _init_linear(ks[2], in_dim, H * D)
    we, _ = _init_linear(ks[3], EDGE_DIM, H * D)          # lin_edge has no bias
    ws, bs = _init_linear(ks[4], in_dim, H * D)           # lin_skip
    wbeta_flat, _ = _init_linear(ks[5], 3 * H * D, 1)     # lin_beta, no bias
    # stored as [HD, 3] columns (msg, skip, msg-skip) matching cat([out, x_r, out-x_r])
    wbeta = wbeta_flat.reshape(3, H * D).T
    return dict(wq=wq, bq=bq, wk=wk, bk=bk, wv=wv, bv=bv, we=we,
                ws=ws, bs=bs, wbeta=wbeta)


def init_params(key):
    ks = jax.random.split(key, 4 + 3 * N_LAYERS)
    H, D = N_HEADS, EMBEDDING_SIZE
    params = {
        "conv1": _init_conv(ks[0], FEATURE_SIZE),
        "transf1": _init_linear(ks[1], H * D, D),
        "bn1": (jnp.ones((1, D), jnp.float32), jnp.zeros((1, D), jnp.float32)),
        "convs": [], "transfs": [], "bns": [],
        "out": _init_linear(ks[2], D, NUM_CLASSES),
    }
    for i in range(N_LAYERS):
        params["convs"].append(_init_conv(ks[3 + 3 * i], D))
        params["transfs"].append(_init_linear(ks[4 + 3 * i], H * D, D))
        params["bns"].append((jnp.ones((1, D), jnp.float32), jnp.zeros((1, D), jnp.float32)))
    return params


# ================================ host-side packing ================================

def _pack_conv(p):
    """Fuse Wq/Wk/Wv/Wskip into one weight slab; fold lin_beta into 2 rows."""
    wqkvs = jnp.concatenate([p["wq"], p["wk"], p["wv"], p["ws"]], axis=1)
    bqkvs = jnp.concatenate([p["bq"], p["bk"], p["bv"], p["bs"]], axis=1)
    wbeta = p["wbeta"]                                    # [HD, 3] (msg, skip, diff)
    wbeta2 = jnp.stack([wbeta[:, 0] + wbeta[:, 2],        # row 0: msg coeffs
                        wbeta[:, 1] - wbeta[:, 2]],       # row 1: skip coeffs
                       axis=0)                            # [2, HD]
    return [wqkvs, bqkvs, p["we"], wbeta2]


def _pack_slab(arrays):
    """Pack 2-D arrays into ONE [rows, 128] f32 slab with 8-row-aligned static offsets."""
    offsets, row = [], 0
    for a in arrays:
        offsets.append((row, int(a.shape[0]), int(a.shape[1])))
        row += _round8(a.shape[0])
    slab = jnp.zeros((_round8(row), PAD_COLS), jnp.float32)
    for (r0, r, c), a in zip(offsets, arrays):
        slab = slab.at[r0:r0 + r, 0:c].set(a.astype(jnp.float32))
    return slab, tuple(offsets)


def pack_params(params):
    arrays = []
    arrays += _pack_conv(params["conv1"])
    arrays += [params["transf1"][0], params["transf1"][1],
               params["bn1"][0], params["bn1"][1]]
    for i in range(N_LAYERS):
        arrays += _pack_conv(params["convs"][i])
        arrays += [params["transfs"][i][0], params["transfs"][i][1],
                   params["bns"][i][0], params["bns"][i][1]]
    arrays += [params["out"][0], params["out"][1]]
    return _pack_slab(arrays)


def build_graph_constants(x, edge_index, edge_attr, n_nodes):
    """Dense adjacency mask + one-hot incidence matrices, packed into one slab.

    Assumes no duplicate (src, dst) edges (the dense form merges multi-edges,
    PyG TransformerConv would keep them separate).
    """
    src, dst = edge_index[0], edge_index[1]
    e = src.shape[0]
    eid = jnp.arange(e)
    adj = jnp.zeros((n_nodes, n_nodes), jnp.float32).at[dst, src].set(1.0)
    s_dst = jnp.zeros((n_nodes, e), jnp.float32).at[dst, eid].set(1.0)
    s_src = jnp.zeros((e, n_nodes), jnp.float32).at[eid, src].set(1.0)
    return _pack_slab([x, adj, s_dst, jnp.transpose(s_dst), s_src, edge_attr])


# ====================================== main =======================================

if __name__ == "__main__":
    key = jax.random.PRNGKey(0)
    kx, ke, kp = jax.random.split(key, 3)

    N = N_NODES
    x = jax.random.normal(kx, (N, FEATURE_SIZE), jnp.float32)

    # deterministic ring-style graph: edges (i+1)->i, (i+2)->i, (i+5)->i  (unique)
    src = jnp.concatenate([(jnp.arange(N) + k) % N for k in (1, 2, 5)]).astype(jnp.int32)
    dst = jnp.tile(jnp.arange(N, dtype=jnp.int32), 3)
    edge_index = jnp.stack([src, dst])                    # [2, E], row0=src, row1=dst
    E = int(edge_index.shape[1])
    edge_attr = jax.random.normal(ke, (E, EDGE_DIM), jnp.float32)

    graph_slab, g_off = build_graph_constants(x, edge_index, edge_attr, N)
    params = init_params(kp)
    params_slab, p_off = pack_params(params)

    out = gnn_forward(graph_slab, params_slab, g_off, p_off, N, E)
    out = jax.block_until_ready(out)
    assert out.shape == (N, NUM_CLASSES)
    assert bool(jnp.all(jnp.isfinite(out)))
    print("KERNEL_OK")
</pallas_src>

<mosaic_0001>
module attributes {stable_mosaic.version = 11 : i64} {
  func.func @_gnn_fused_kernel(%arg0: memref<192x128xf32, #tpu.memory_space<vmem>>, %arg1: memref<240x128xf32, #tpu.memory_space<vmem>>, %arg2: memref<16x128xf32, #tpu.memory_space<vmem>>, %arg3: memref<16x16xf32, #tpu.memory_space<vmem>>, %arg4: memref<48x16xf32, #tpu.memory_space<vmem>>) attributes {dimension_semantics = [], scalar_prefetch = 0 : i64, scratch_operands = 2 : i64, tpu.core_type = #tpu.core_type<tc>} {
    %c0 = arith.constant 0 : index
    %c0_0 = arith.constant 0 : index
    %0 = vector.load %arg0[%c0, %c0_0] : memref<192x128xf32, #tpu.memory_space<vmem>>, vector<16x12xf32>
    %c16 = arith.constant 16 : index
    %c0_1 = arith.constant 0 : index
    %1 = vector.load %arg0[%c16, %c0_1] : memref<192x128xf32, #tpu.memory_space<vmem>>, vector<16x16xf32>
    %c32 = arith.constant 32 : index
    %c0_2 = arith.constant 0 : index
    %2 = vector.load %arg0[%c32, %c0_2] : memref<192x128xf32, #tpu.memory_space<vmem>>, vector<16x48xf32>
    %c48 = arith.constant 48 : index
    %c0_3 = arith.constant 0 : index
    %3 = vector.load %arg0[%c48, %c0_3] : memref<192x128xf32, #tpu.memory_space<vmem>>, vector<48x16xf32>
    %c96 = arith.constant 96 : index
    %c0_4 = arith.constant 0 : index
    %4 = vector.load %arg0[%c96, %c0_4] : memref<192x128xf32, #tpu.memory_space<vmem>>, vector<48x16xf32>
    %c144 = arith.constant 144 : index
    %c0_5 = arith.constant 0 : index
    %5 = vector.load %arg0[%c144, %c0_5] : memref<192x128xf32, #tpu.memory_space<vmem>>, vector<48x4xf32>
    %c0_6 = arith.constant 0 : index
    %c0_7 = arith.constant 0 : index
    %6 = vector.load %arg1[%c0_6, %c0_7] : memref<240x128xf32, #tpu.memory_space<vmem>>, vector<12x64xf32>
    %c16_8 = arith.constant 16 : index
    %c0_9 = arith.constant 0 : index
    %7 = vector.load %arg1[%c16_8, %c0_9] : memref<240x128xf32, #tpu.memory_space<vmem>>, vector<1x64xf32>
    %c24 = arith.constant 24 : index
    %c0_10 = arith.constant 0 : index
    %8 = vector.load %arg1[%c24, %c0_10] : memref<240x128xf32, #tpu.memory_space<vmem>>, vector<4x16xf32>
    %c32_11 = arith.constant 32 : index
    %c0_12 = arith.constant 0 : index
    %9 = vector.load %arg1[%c32_11, %c0_12] : memref<240x128xf32, #tpu.memory_space<vmem>>, vector<2x16xf32>
    %c40 = arith.constant 40 : index
    %c0_13 = arith.constant 0 : index
    %10 = vector.load %arg1[%c40, %c0_13] : memref<240x128xf32, #tpu.memory_space<vmem>>, vector<16x8xf32>
    %c56 = arith.constant 56 : index
    %c0_14 = arith.constant 0 : index
    %11 = vector.load %arg1[%c56, %c0_14] : memref<240x128xf32, #tpu.memory_space<vmem>>, vector<1x8xf32>
    %c64 = arith.constant 64 : index
    %c0_15 = arith.constant 0 : index
    %12 = vector.load %arg1[%c64, %c0_15] : memref<240x128xf32, #tpu.memory_space<vmem>>, vector<1x8xf32>
    %c72 = arith.constant 72 : index
    %c0_16 = arith.constant 0 : index
    %13 = vector.load %arg1[%c72, %c0_16] : memref<240x128xf32, #tpu.memory_space<vmem>>, vector<1x8xf32>
    %14 = arith.truncf %0 : vector<16x12xf32> to vector<16x12xbf16>
    %15 = arith.truncf %6 : vector<12x64xf32> to vector<12x64xbf16>
    %cst = arith.constant dense<0.000000e+00> : vector<16x64xf32>
    %16 = tpu.matmul %14, %15, %cst {dimension_numbers = #tpu.dot_dimension_numbers<[1], [0], [0], [1], [0, 0, 1, 1], [], []>} : vector<16x12xbf16>, vector<12x64xbf16>, vector<16x64xf32> -> vector<16x64xf32>
    %17 = vector.broadcast %7 : vector<1x64xf32> to vector<16x64xf32>
    %18 = arith.addf %16, %17 : vector<16x64xf32>
    %19 = vector.extract_strided_slice %18 {offsets = [0, 0], sizes = [16, 16], strides = [1, 1]} : vector<16x64xf32> to vector<16x16xf32>
    %20 = vector.extract_strided_slice %18 {offsets = [0, 16], sizes = [16, 16], strides = [1, 1]} : vector<16x64xf32> to vector<16x16xf32>
    %21 = vector.extract_strided_slice %18 {offsets = [0, 32], sizes = [16, 16], strides = [1, 1]} : vector<16x64xf32> to vector<16x16xf32>
    %22 = vector.extract_strided_slice %18 {offsets = [0, 48], sizes = [16, 16], strides = [1, 1]} : vector<16x64xf32> to vector<16x16xf32>
    %23 = arith.truncf %5 : vector<48x4xf32> to vector<48x4xbf16>
    %24 = arith.truncf %8 : vector<4x16xf32> to vector<4x16xbf16>
    %cst_17 = arith.constant dense<0.000000e+00> : vector<48x16xf32>
    %25 = tpu.matmul %23, %24, %cst_17 {dimension_numbers = #tpu.dot_dimension_numbers<[1], [0], [0], [1], [0, 0, 1, 1], [], []>} : vector<48x4xbf16>, vector<4x16xbf16>, vector<48x16xf32> -> vector<48x16xf32>
    %26 = arith.truncf %3 : vector<48x16xf32> to vector<48x16xbf16>
    %27 = arith.truncf %19 : vector<16x16xf32> to vector<16x16xbf16>
    %cst_18 = arith.constant dense<0.000000e+00> : vector<48x16xf32>
    %28 = tpu.matmul %26, %27, %cst_18 {dimension_numbers = #tpu.dot_dimension_numbers<[1], [0], [0], [1], [0, 0, 1, 1], [], []>} : vector<48x16xbf16>, vector<16x16xbf16>, vector<48x16xf32> -> vector<48x16xf32>
    %29 = vector.extract_strided_slice %19 {offsets = [0, 0], sizes = [16, 8], strides = [1, 1]} : vector<16x16xf32> to vector<16x8xf32>
    %30 = vector.extract_strided_slice %20 {offsets = [0, 0], sizes = [16, 8], strides = [1, 1]} : vector<16x16xf32> to vector<16x8xf32>
    %31 = vector.extract_strided_slice %21 {offsets = [0, 0], sizes = [16, 8], strides = [1, 1]} : vector<16x16xf32> to vector<16x8xf32>
    %32 = vector.extract_strided_slice %25 {offsets = [0, 0], sizes = [48, 8], strides = [1, 1]} : vector<48x16xf32> to vector<48x8xf32>
    %33 = vector.extract_strided_slice %28 {offsets = [0, 0], sizes = [48, 8], strides = [1, 1]} : vector<48x16xf32> to vector<48x8xf32>
    %34 = arith.mulf %33, %32 : vector<48x8xf32>
    %cst_19 = arith.constant dense<0.000000e+00> : vector<48xf32>
    %35 = vector.multi_reduction <add>, %34, %cst_19 [1] : vector<48x8xf32> to vector<48xf32>
    %36 = vector.shape_cast %35 : vector<48xf32> to vector<48x1xf32>
    %37 = vector.broadcast %36 : vector<48x1xf32> to vector<48x16xf32>
    %38 = arith.mulf %37, %4 : vector<48x16xf32>
    %39 = arith.truncf %2 : vector<16x48xf32> to vector<16x48xbf16>
    %40 = arith.truncf %38 : vector<48x16xf32> to vector<48x16xbf16>
    %cst_20 = arith.constant dense<0.000000e+00> : vector<16x16xf32>
    %41 = tpu.matmul %39, %40, %cst_20 {dimension_numbers = #tpu.dot_dimension_numbers<[1], [0], [0], [1], [0, 0, 1, 1], [], []>} : vector<16x48xbf16>, vector<48x16xbf16>, vector<16x16xf32> -> vector<16x16xf32>
    %42 = arith.truncf %29 : vector<16x8xf32> to vector<16x8xbf16>
    %43 = arith.truncf %30 : vector<16x8xf32> to vector<16x8xbf16>
    %cst_21 = arith.constant dense<0.000000e+00> : vector<16x16xf32>
    %44 = tpu.matmul %42, %43, %cst_21 {dimension_numbers = #tpu.dot_dimension_numbers<[1], [1], [0], [0], [0, 0, 1, 0], [], []>} : vector<16x8xbf16>, vector<16x8xbf16>, vector<16x16xf32> -> vector<16x16xf32>
    %45 = arith.addf %44, %41 : vector<16x16xf32>
    %cst_22 = arith.constant 0.353553385 : f32
    %46 = vector.broadcast %cst_22 : f32 to vector<16x16xf32>
    %47 = arith.mulf %45, %46 : vector<16x16xf32>
    %cst_23 = arith.constant 0.000000e+00 : f32
    %48 = vector.broadcast %cst_23 : f32 to vector<16x16xf32>
    %49 = arith.cmpf ogt, %1, %48 : vector<16x16xf32>
    %cst_24 = arith.constant -1.000000e+30 : f32
    %50 = vector.broadcast %cst_24 : f32 to vector<16x16xf32>
    %51 = arith.select %49, %47, %50 : vector<16x16xi1>, vector<16x16xf32>
    %cst_25 = arith.constant dense<0xFF800000> : vector<16xf32>
    %52 = vector.multi_reduction <maximumf>, %51, %cst_25 [1] : vector<16x16xf32> to vector<16xf32>
    %53 = vector.shape_cast %52 : vector<16xf32> to vector<16x1xf32>
    %54 = vector.broadcast %53 : vector<16x1xf32> to vector<16x16xf32>
    %55 = arith.subf %51, %54 : vector<16x16xf32>
    %56 = math.exp %55 : vector<16x16xf32>
    %57 = arith.mulf %56, %1 : vector<16x16xf32>
    %cst_26 = arith.constant dense<0.000000e+00> : vector<16xf32>
    %58 = vector.multi_reduction <add>, %57, %cst_26 [1] : vector<16x16xf32> to vector<16xf32>
    %59 = vector.shape_cast %58 : vector<16xf32> to vector<16x1xf32>
    %cst_27 = arith.constant 0.000000e+00 : f32
    %60 = vector.broadcast %cst_27 : f32 to vector<16x1xf32>
    %61 = arith.cmpf oeq, %59, %60 : vector<16x1xf32>
    %cst_28 = arith.constant 1.000000e+00 : f32
    %62 = vector.broadcast %cst_28 : f32 to vector<16x1xf32>
    %63 = arith.select %61, %62, %59 : vector<16x1xi1>, vector<16x1xf32>
    %64 = tpu.reciprocal %63 {approx = true} : vector<16x1xf32> -> vector<16x1xf32>
    %65 = vector.broadcast %64 : vector<16x1xf32> to vector<16x16xf32>
    %66 = arith.mulf %57, %65 : vector<16x16xf32>
    %67 = arith.truncf %3 : vector<48x16xf32> to vector<48x16xbf16>
    %68 = arith.truncf %66 : vector<16x16xf32> to vector<16x16xbf16>
    %cst_29 = arith.constant dense<0.000000e+00> : vector<48x16xf32>
    %69 = tpu.matmul %67, %68, %cst_29 {dimension_numbers = #tpu.dot_dimension_numbers<[1], [0], [0], [1], [0, 0, 1, 1], [], []>} : vector<48x16xbf16>, vector<16x16xbf16>, vector<48x16xf32> -> vector<48x16xf32>
    %70 = arith.mulf %69, %4 : vector<48x16xf32>
    %cst_30 = arith.constant dense<0.000000e+00> : vector<48xf32>
    %71 = vector.multi_reduction <add>, %70, %cst_30 [1] : vector<48x16xf32> to vector<48xf32>
    %72 = vector.shape_cast %71 : vector<48xf32> to vector<48x1xf32>
    %73 = arith.truncf %66 : vector<16x16xf32> to vector<16x16xbf16>
    %74 = arith.truncf %31 : vector<16x8xf32> to vector<16x8xbf16>
    %cst_31 = arith.constant dense<0.000000e+00> : vector<16x8xf32>
    %75 = tpu.matmul %73, %74, %cst_31 {dimension_numbers = #tpu.dot_dimension_numbers<[1], [0], [0], [1], [0, 0, 1, 1], [], []>} : vector<16x16xbf16>, vector<16x8xbf16>, vector<16x8xf32> -> vector<16x8xf32>
    %c0_32 = arith.constant 0 : index
    %c0_33 = arith.constant 0 : index
    %76 = vector.load %arg3[%c0_32, %c0_33] : memref<16x16xf32, #tpu.memory_space<vmem>>, vector<16x8xf32>
    tpu.vector_store %arg3[%c0_32, %c0_33], %75 {strides = array<i32>} : memref<16x16xf32, #tpu.memory_space<vmem>>, vector<16x8xf32>,
    %77 = vector.broadcast %72 : vector<48x1xf32> to vector<48x8xf32>
    %78 = arith.mulf %77, %32 : vector<48x8xf32>
    %c0_34 = arith.constant 0 : index
    %c0_35 = arith.constant 0 : index
    %79 = vector.load %arg4[%c0_34, %c0_35] : memref<48x16xf32, #tpu.memory_space<vmem>>, vector<48x8xf32>
    tpu.vector_store %arg4[%c0_34, %c0_35], %78 {strides = array<i32>} : memref<48x16xf32, #tpu.memory_space<vmem>>, vector<48x8xf32>,
    %80 = vector.extract_strided_slice %19 {offsets = [0, 8], sizes = [16, 8], strides = [1, 1]} : vector<16x16xf32> to vector<16x8xf32>
    %81 = vector.extract_strided_slice %20 {offsets = [0, 8], sizes = [16, 8], strides = [1, 1]} : vector<16x16xf32> to vector<16x8xf32>
    %82 = vector.extract_strided_slice %21 {offsets = [0, 8], sizes = [16, 8], strides = [1, 1]} : vector<16x16xf32> to vector<16x8xf32>
    %83 = vector.extract_strided_slice %25 {offsets = [0, 8], sizes = [48, 8], strides = [1, 1]} : vector<48x16xf32> to vector<48x8xf32>
    %84 = vector.extract_strided_slice %28 {offsets = [0, 8], sizes = [48, 8], strides = [1, 1]} : vector<48x16xf32> to vector<48x8xf32>
    %85 = arith.mulf %84, %83 : vector<48x8xf32>
    %cst_36 = arith.constant dense<0.000000e+00> : vector<48xf32>
    %86 = vector.multi_reduction <add>, %85, %cst_36 [1] : vector<48x8xf32> to vector<48xf32>
    %87 = vector.shape_cast %86 : vector<48xf32> to vector<48x1xf32>
    %88 = vector.broadcast %87 : vector<48x1xf32> to vector<48x16xf32>
    %89 = arith.mulf %88, %4 : vector<48x16xf32>
    %90 = arith.truncf %2 : vector<16x48xf32> to vector<16x48xbf16>
    %91 = arith.truncf %89 : vector<48x16xf32> to vector<48x16xbf16>
    %cst_37 = arith.constant dense<0.000000e+00> : vector<16x16xf32>
    %92 = tpu.matmul %90, %91, %cst_37 {dimension_numbers = #tpu.dot_dimension_numbers<[1], [0], [0], [1], [0, 0, 1, 1], [], []>} : vector<16x48xbf16>, vector<48x16xbf16>, vector<16x16xf32> -> vector<16x16xf32>
    %93 = arith.truncf %80 : vector<16x8xf32> to vector<16x8xbf16>
    %94 = arith.truncf %81 : vector<16x8xf32> to vector<16x8xbf16>
    %cst_38 = arith.constant dense<0.000000e+00> : vector<16x16xf32>
    %95 = tpu.matmul %93, %94, %cst_38 {dimension_numbers = #tpu.dot_dimension_numbers<[1], [1], [0], [0], [0, 0, 1, 0], [], []>} : vector<16x8xbf16>, vector<16x8xbf16>, vector<16x16xf32> -> vector<16x16xf32>
    %96 = arith.addf %95, %92 : vector<16x16xf32>
    %cst_39 = arith.constant 0.353553385 : f32
    %97 = vector.broadcast %cst_39 : f32 to vector<16x16xf32>
    %98 = arith.mulf %96, %97 : vector<16x16xf32>
    %cst_40 = arith.constant 0.000000e+00 : f32
    %99 = vector.broadcast %cst_40 : f32 to vector<16x16xf32>
    %100 = arith.cmpf ogt, %1, %99 : vector<16x16xf32>
    %cst_41 = arith.constant -1.000000e+30 : f32
    %101 = vector.broadcast %cst_41 : f32 to vector<16x16xf32>
    %102 = arith.select %100, %98, %101 : vector<16x16xi1>, vector<16x16xf32>
    %cst_42 = arith.constant dense<0xFF800000> : vector<16xf32>
    %103 = vector.multi_reduction <maximumf>, %102, %cst_42 [1] : vector<16x16xf32> to vector<16xf32>
    %104 = vector.shape_cast %103 : vector<16xf32> to vector<16x1xf32>
    %105 = vector.broadcast %104 : vector<16x1xf32> to vector<16x16xf32>
    %106 = arith.subf %102, %105 : vector<16x16xf32>
    %107 = math.exp %106 : vector<16x16xf32>
    %108 = arith.mulf %107, %1 : vector<16x16xf32>
    %cst_43 = arith.constant dense<0.000000e+00> : vector<16xf32>
    %109 = vector.multi_reduction <add>, %108, %cst_43 [1] : vector<16x16xf32> to vector<16xf32>
    %110 = vector.shape_cast %109 : vector<16xf32> to vector<16x1xf32>
    %cst_44 = arith.constant 0.000000e+00 : f32
    %111 = vector.broadcast %cst_44 : f32 to vector<16x1xf32>
    %112 = arith.cmpf oeq, %110, %111 : vector<16x1xf32>
    %cst_45 = arith.constant 1.000000e+00 : f32
    %113 = vector.broadcast %cst_45 : f32 to vector<16x1xf32>
    %114 = arith.select %112, %113, %110 : vector<16x1xi1>, vector<16x1xf32>
    %115 = tpu.reciprocal %114 {approx = true} : vector<16x1xf32> -> vector<16x1xf32>
    %116 = vector.broadcast %115 : vector<16x1xf32> to vector<16x16xf32>
    %117 = arith.mulf %108, %116 : vector<16x16xf32>
    %118 = arith.truncf %3 : vector<48x16xf32> to vector<48x16xbf16>
    %119 = arith.truncf %117 : vector<16x16xf32> to vector<16x16xbf16>
    %cst_46 = arith.constant dense<0.000000e+00> : vector<48x16xf32>
    %120 = tpu.matmul %118, %119, %cst_46 {dimension_numbers = #tpu.dot_dimension_numbers<[1], [0], [0], [1], [0, 0, 1, 1], [], []>} : vector<48x16xbf16>, vector<16x16xbf16>, vector<48x16xf32> -> vector<48x16xf32>
    %121 = arith.mulf %120, %4 : vector<48x16xf32>
    %cst_47 = arith.constant dense<0.000000e+00> : vector<48xf32>
    %122 = vector.multi_reduction <add>, %121, %cst_47 [1] : vector<48x16xf32> to vector<48xf32>
    %123 = vector.shape_cast %122 : vector<48xf32> to vector<48x1xf32>
    %124 = arith.truncf %117 : vector<16x16xf32> to vector<16x16xbf16>
    %125 = arith.truncf %82 : vector<16x8xf32> to vector<16x8xbf16>
    %cst_48 = arith.constant dense<0.000000e+00> : vector<16x8xf32>
    %126 = tpu.matmul %124, %125, %cst_48 {dimension_numbers = #tpu.dot_dimension_numbers<[1], [0], [0], [1], [0, 0, 1, 1], [], []>} : vector<16x16xbf16>, vector<16x8xbf16>, vector<16x8xf32> -> vector<16x8xf32>
    %c0_49 = arith.constant 0 : index
    %c8 = arith.constant 8 : index
    %127 = vector.load %arg3[%c0_49, %c8] : memref<16x16xf32, #tpu.memory_space<vmem>>, vector<16x8xf32>
    tpu.vector_store %arg3[%c0_49, %c8], %126 {strides = array<i32>} : memref<16x16xf32, #tpu.memory_space<vmem>>, vector<16x8xf32>,
    %128 = vector.broadcast %123 : vector<48x1xf32> to vector<48x8xf32>
    %129 = arith.mulf %128, %83 : vector<48x8xf32>
    %c0_50 = arith.constant 0 : index
    %c8_51 = arith.constant 8 : index
    %130 = vector.load %arg4[%c0_50, %c8_51] : memref<48x16xf32, #tpu.memory_space<vmem>>, vector<48x8xf32>
    tpu.vector_store %arg4[%c0_50, %c8_51], %129 {strides = array<i32>} : memref<48x16xf32, #tpu.memory_space<vmem>>, vector<48x8xf32>,
    %c0_52 = arith.constant 0 : index
    %c0_53 = arith.constant 0 : index
    %131 = vector.load %arg3[%c0_52, %c0_53] : memref<16x16xf32, #tpu.memory_space<vmem>>, vector<16x16xf32>
    %c0_54 = arith.constant 0 : index
    %c0_55 = arith.constant 0 : index
    %132 = vector.load %arg4[%c0_54, %c0_55] : memref<48x16xf32, #tpu.memory_space<vmem>>, vector<48x16xf32>
    %133 = arith.truncf %2 : vector<16x48xf32> to vector<16x48xbf16>
    %134 = arith.truncf %132 : vector<48x16xf32> to vector<48x16xbf16>
    %cst_56 = arith.constant dense<0.000000e+00> : vector<16x16xf32>
    %135 = tpu.matmul %133, %134, %cst_56 {dimension_numbers = #tpu.dot_dimension_numbers<[1], [0], [0], [1], [0, 0, 1, 1], [], []>} : vector<16x48xbf16>, vector<48x16xbf16>, vector<16x16xf32> -> vector<16x16xf32>
    %136 = arith.addf %131, %135 : vector<16x16xf32>
    %137 = vector.extract_strided_slice %9 {offsets = [0, 0], sizes = [1, 16], strides = [1, 1]} : vector<2x16xf32> to vector<1x16xf32>
    %138 = vector.broadcast %137 : vector<1x16xf32> to vector<16x16xf32>
    %139 = arith.mulf %136, %138 : vector<16x16xf32>
    %140 = vector.extract_strided_slice %9 {offsets = [1, 0], sizes = [1, 16], strides = [1, 1]} : vector<2x16xf32> to vector<1x16xf32>
    %141 = vector.broadcast %140 : vector<1x16xf32> to vector<16x16xf32>
    %142 = arith.mulf %22, %141 : vector<16x16xf32>
    %143 = arith.addf %139, %142 : vector<16x16xf32>
    %cst_57 = arith.constant dense<0.000000e+00> : vector<16xf32>
    %144 = vector.multi_reduction <add>, %143, %cst_57 [1] : vector<16x16xf32> to vector<16xf32>
    %145 = vector.shape_cast %144 : vector<16xf32> to vector<16x1xf32>
    %cst_58 = arith.constant 5.000000e-01 : f32
    %146 = vector.broadcast %cst_58 : f32 to vector<16x1xf32>
    %147 = arith.mulf %146, %145 : vector<16x1xf32>
    %148 = math.tanh %147 : vector<16x1xf32>
    %cst_59 = arith.constant 1.000000e+00 : f32
    %149 = vector.broadcast %cst_59 : f32 to vector<16x1xf32>
    %150 = arith.addf %148, %149 : vector<16x1xf32>
    %cst_60 = arith.constant 5.000000e-01 : f32
    %151 = vector.broadcast %cst_60 : f32 to vector<16x1xf32>
    %152 = arith.mulf %151, %150 : vector<16x1xf32>
    %153 = vector.broadcast %152 : vector<16x1xf32> to vector<16x16xf32>
    %154 = arith.mulf %153, %22 : vector<16x16xf32>
    %cst_61 = arith.constant 1.000000e+00 : f32
    %155 = vector.broadcast %cst_61 : f32 to vector<16x1xf32>
    %156 = arith.subf %155, %152 : vector<16x1xf32>
    %157 = vector.broadcast %156 : vector<16x1xf32> to vector<16x16xf32>
    %158 = arith.mulf %157, %136 : vector<16x16xf32>
    %159 = arith.addf %154, %158 : vector<16x16xf32>
    %160 = arith.truncf %159 : vector<16x16xf32> to vector<16x16xbf16>
    %161 = arith.truncf %10 : vector<16x8xf32> to vector<16x8xbf16>
    %cst_62 = arith.constant dense<0.000000e+00> : vector<16x8xf32>
    %162 = tpu.matmul %160, %161, %cst_62 {dimension_numbers = #tpu.dot_dimension_numbers<[1], [0], [0], [1], [0, 0, 1, 1], [], []>} : vector<16x16xbf16>, vector<16x8xbf16>, vector<16x8xf32> -> vector<16x8xf32>
    %163 = vector.broadcast %11 : vector<1x8xf32> to vector<16x8xf32>
    %164 = arith.addf %162, %163 : vector<16x8xf32>
    %cst_63 = arith.constant 0.000000e+00 : f32
    %165 = vector.broadcast %cst_63 : f32 to vector<16x8xf32>
    %166 = arith.maximumf %164, %165 : vector<16x8xf32>
    %cst_64 = arith.constant dense<0.000000e+00> : vector<8xf32>
    %167 = vector.multi_reduction <add>, %166, %cst_64 [0] : vector<16x8xf32> to vector<8xf32>
    %168 = vector.shape_cast %167 : vector<8xf32> to vector<1x8xf32>
    %cst_65 = arith.constant 1.600000e+01 : f32
    %169 = vector.broadcast %cst_65 : f32 to vector<1x8xf32>
    %170 = arith.divf %168, %169 : vector<1x8xf32>
    %171 = vector.broadcast %170 : vector<1x8xf32> to vector<16x8xf32>
    %172 = arith.subf %166, %171 : vector<16x8xf32>
    %173 = arith.mulf %172, %172 : vector<16x8xf32>
    %cst_66 = arith.constant dense<0.000000e+00> : vector<8xf32>
    %174 = vector.multi_reduction <add>, %173, %cst_66 [0] : vector<16x8xf32> to vector<8xf32>
    %175 = vector.shape_cast %174 : vector<8xf32> to vector<1x8xf32>
    %cst_67 = arith.constant 1.600000e+01 : f32
    %176 = vector.broadcast %cst_67 : f32 to vector<1x8xf32>
    %177 = arith.divf %175, %176 : vector<1x8xf32>
    %178 = vector.broadcast %170 : vector<1x8xf32> to vector<16x8xf32>
    %179 = arith.subf %166, %178 : vector<16x8xf32>
    %180 = vector.broadcast %12 : vector<1x8xf32> to vector<16x8xf32>
    %181 = arith.mulf %180, %179 : vector<16x8xf32>
    %cst_68 = arith.constant 9.99999974E-6 : f32
    %182 = vector.broadcast %cst_68 : f32 to vector<1x8xf32>
    %183 = arith.addf %177, %182 : vector<1x8xf32>
    %184 = math.rsqrt %183 : vector<1x8xf32>
    %185 = vector.broadcast %184 : vector<1x8xf32> to vector<16x8xf32>
    %186 = arith.mulf %181, %185 : vector<16x8xf32>
    %187 = vector.broadcast %13 : vector<1x8xf32> to vector<16x8xf32>
    %188 = arith.addf %186, %187 : vector<16x8xf32>
    %c80 = arith.constant 80 : index
    %c0_69 = arith.constant 0 : index
    %189 = vector.load %arg1[%c80, %c0_69] : memref<240x128xf32, #tpu.memory_space<vmem>>, vector<8x64xf32>
    %c88 = arith.constant 88 : index
    %c0_70 = arith.constant 0 : index
    %190 = vector.load %arg1[%c88, %c0_70] : memref<240x128xf32, #tpu.memory_space<vmem>>, vector<1x64xf32>
    %c96_71 = arith.constant 96 : index
    %c0_72 = arith.constant 0 : index
    %191 = vector.load %arg1[%c96_71, %c0_72] : memref<240x128xf32, #tpu.memory_space<vmem>>, vector<4x16xf32>
    %c104 = arith.constant 104 : index
    %c0_73 = arith.constant 0 : index
    %192 = vector.load %arg1[%c104, %c0_73] : memref<240x128xf32, #tpu.memory_space<vmem>>, vector<2x16xf32>
    %c112 = arith.constant 112 : index
    %c0_74 = arith.constant 0 : index
    %193 = vector.load %arg1[%c112, %c0_74] : memref<240x128xf32, #tpu.memory_space<vmem>>, vector<16x8xf32>
    %c128 = arith.constant 128 : index
    %c0_75 = arith.constant 0 : index
    %194 = vector.load %arg1[%c128, %c0_75] : memref<240x128xf32, #tpu.memory_space<vmem>>, vector<1x8xf32>
    %c136 = arith.constant 136 : index
    %c0_76 = arith.constant 0 : index
    %195 = vector.load %arg1[%c136, %c0_76] : memref<240x128xf32, #tpu.memory_space<vmem>>, vector<1x8xf32>
    %c144_77 = arith.constant 144 : index
    %c0_78 = arith.constant 0 : index
    %196 = vector.load %arg1[%c144_77, %c0_78] : memref<240x128xf32, #tpu.memory_space<vmem>>, vector<1x8xf32>
    %197 = arith.truncf %188 : vector<16x8xf32> to vector<16x8xbf16>
    %198 = arith.truncf %189 : vector<8x64xf32> to vector<8x64xbf16>
    %cst_79 = arith.constant dense<0.000000e+00> : vector<16x64xf32>
    %199 = tpu.matmul %197, %198, %cst_79 {dimension_numbers = #tpu.dot_dimension_numbers<[1], [0], [0], [1], [0, 0, 1, 1], [], []>} : vector<16x8xbf16>, vector<8x64xbf16>, vector<16x64xf32> -> vector<16x64xf32>
    %200 = vector.broadcast %190 : vector<1x64xf32> to vector<16x64xf32>
    %201 = arith.addf %199, %200 : vector<16x64xf32>
    %202 = vector.extract_strided_slice %201 {offsets = [0, 0], sizes = [16, 16], strides = [1, 1]} : vector<16x64xf32> to vector<16x16xf32>
    %203 = vector.extract_strided_slice %201 {offsets = [0, 16], sizes = [16, 16], strides = [1, 1]} : vector<16x64xf32> to vector<16x16xf32>
    %204 = vector.extract_strided_slice %201 {offsets = [0, 32], sizes = [16, 16], strides = [1, 1]} : vector<16x64xf32> to vector<16x16xf32>
    %205 = vector.extract_strided_slice %201 {offsets = [0, 48], sizes = [16, 16], strides = [1, 1]} : vector<16x64xf32> to vector<16x16xf32>
    %206 = arith.truncf %5 : vector<48x4xf32> to vector<48x4xbf16>
    %207 = arith.truncf %191 : vector<4x16xf32> to vector<4x16xbf16>
    %cst_80 = arith.constant dense<0.000000e+00> : vector<48x16xf32>
    %208 = tpu.matmul %206, %207, %cst_80 {dimension_numbers = #tpu.dot_dimension_numbers<[1], [0], [0], [1], [0, 0, 1, 1], [], []>} : vector<48x4xbf16>, vector<4x16xbf16>, vector<48x16xf32> -> vector<48x16xf32>
    %209 = arith.truncf %3 : vector<48x16xf32> to vector<48x16xbf16>
    %210 = arith.truncf %202 : vector<16x16xf32> to vector<16x16xbf16>
    %cst_81 = arith.constant dense<0.000000e+00> : vector<48x16xf32>
    %211 = tpu.matmul %209, %210, %cst_81 {dimension_numbers = #tpu.dot_dimension_numbers<[1], [0], [0], [1], [0, 0, 1, 1], [], []>} : vector<48x16xbf16>, vector<16x16xbf16>, vector<48x16xf32> -> vector<48x16xf32>
    %212 = vector.extract_strided_slice %202 {offsets = [0, 0], sizes = [16, 8], strides = [1, 1]} : vector<16x16xf32> to vector<16x8xf32>
    %213 = vector.extract_strided_slice %203 {offsets = [0, 0], sizes = [16, 8], strides = [1, 1]} : vector<16x16xf32> to vector<16x8xf32>
    %214 = vector.extract_strided_slice %204 {offsets = [0, 0], sizes = [16, 8], strides = [1, 1]} : vector<16x16xf32> to vector<16x8xf32>
    %215 = vector.extract_strided_slice %208 {offsets = [0, 0], sizes = [48, 8], strides = [1, 1]} : vector<48x16xf32> to vector<48x8xf32>
    %216 = vector.extract_strided_slice %211 {offsets = [0, 0], sizes = [48, 8], strides = [1, 1]} : vector<48x16xf32> to vector<48x8xf32>
    %217 = arith.mulf %216, %215 : vector<48x8xf32>
    %cst_82 = arith.constant dense<0.000000e+00> : vector<48xf32>
    %218 = vector.multi_reduction <add>, %217, %cst_82 [1] : vector<48x8xf32> to vector<48xf32>
    %219 = vector.shape_cast %218 : vector<48xf32> to vector<48x1xf32>
    %220 = vector.broadcast %219 : vector<48x1xf32> to vector<48x16xf32>
    %221 = arith.mulf %220, %4 : vector<48x16xf32>
    %222 = arith.truncf %2 : vector<16x48xf32> to vector<16x48xbf16>
    %223 = arith.truncf %221 : vector<48x16xf32> to vector<48x16xbf16>
    %cst_83 = arith.constant dense<0.000000e+00> : vector<16x16xf32>
    %224 = tpu.matmul %222, %223, %cst_83 {dimension_numbers = #tpu.dot_dimension_numbers<[1], [0], [0], [1], [0, 0, 1, 1], [], []>} : vector<16x48xbf16>, vector<48x16xbf16>, vector<16x16xf32> -> vector<16x16xf32>
    %225 = arith.truncf %212 : vector<16x8xf32> to vector<16x8xbf16>
    %226 = arith.truncf %213 : vector<16x8xf32> to vector<16x8xbf16>
    %cst_84 = arith.constant dense<0.000000e+00> : vector<16x16xf32>
    %227 = tpu.matmul %225, %226, %cst_84 {dimension_numbers = #tpu.dot_dimension_numbers<[1], [1], [0], [0], [0, 0, 1, 0], [], []>} : vector<16x8xbf16>, vector<16x8xbf16>, vector<16x16xf32> -> vector<16x16xf32>
    %228 = arith.addf %227, %224 : vector<16x16xf32>
    %cst_85 = arith.constant 0.353553385 : f32
    %229 = vector.broadcast %cst_85 : f32 to vector<16x16xf32>
    %230 = arith.mulf %228, %229 : vector<16x16xf32>
    %cst_86 = arith.constant 0.000000e+00 : f32
    %231 = vector.broadcast %cst_86 : f32 to vector<16x16xf32>
    %232 = arith.cmpf ogt, %1, %231 : vector<16x16xf32>
    %cst_87 = arith.constant -1.000000e+30 : f32
    %233 = vector.broadcast %cst_87 : f32 to vector<16x16xf32>
    %234 = arith.select %232, %230, %233 : vector<16x16xi1>, vector<16x16xf32>
    %cst_88 = arith.constant dense<0xFF800000> : vector<16xf32>
    %235 = vector.multi_reduction <maximumf>, %234, %cst_88 [1] : vector<16x16xf32> to vector<16xf32>
    %236 = vector.shape_cast %235 : vector<16xf32> to vector<16x1xf32>
    %237 = vector.broadcast %236 : vector<16x1xf32> to vector<16x16xf32>
    %238 = arith.subf %234, %237 : vector<16x16xf32>
    %239 = math.exp %238 : vector<16x16xf32>
    %240 = arith.mulf %239, %1 : vector<16x16xf32>
    %cst_89 = arith.constant dense<0.000000e+00> : vector<16xf32>
    %241 = vector.multi_reduction <add>, %240, %cst_89 [1] : vector<16x16xf32> to vector<16xf32>
    %242 = vector.shape_cast %241 : vector<16xf32> to vector<16x1xf32>
    %cst_90 = arith.constant 0.000000e+00 : f32
    %243 = vector.broadcast %cst_90 : f32 to vector<16x1xf32>
    %244 = arith.cmpf oeq, %242, %243 : vector<16x1xf32>
    %cst_91 = arith.constant 1.000000e+00 : f32
    %245 = vector.broadcast %cst_91 : f32 to vector<16x1xf32>
    %246 = arith.select %244, %245, %242 : vector<16x1xi1>, vector<16x1xf32>
    %247 = tpu.reciprocal %246 {approx = true} : vector<16x1xf32> -> vector<16x1xf32>
    %248 = vector.broadcast %247 : vector<16x1xf32> to vector<16x16xf32>
    %249 = arith.mulf %240, %248 : vector<16x16xf32>
    %250 = arith.truncf %3 : vector<48x16xf32> to vector<48x16xbf16>
    %251 = arith.truncf %249 : vector<16x16xf32> to vector<16x16xbf16>
    %cst_92 = arith.constant dense<0.000000e+00> : vector<48x16xf32>
    %252 = tpu.matmul %250, %251, %cst_92 {dimension_numbers = #tpu.dot_dimension_numbers<[1], [0], [0], [1], [0, 0, 1, 1], [], []>} : vector<48x16xbf16>, vector<16x16xbf16>, vector<48x16xf32> -> vector<48x16xf32>
    %253 = arith.mulf %252, %4 : vector<48x16xf32>
    %cst_93 = arith.constant dense<0.000000e+00> : vector<48xf32>
    %254 = vector.multi_reduction <add>, %253, %cst_93 [1] : vector<48x16xf32> to vector<48xf32>
    %255 = vector.shape_cast %254 : vector<48xf32> to vector<48x1xf32>
    %256 = arith.truncf %249 : vector<16x16xf32> to vector<16x16xbf16>
    %257 = arith.truncf %214 : vector<16x8xf32> to vector<16x8xbf16>
    %cst_94 = arith.constant dense<0.000000e+00> : vector<16x8xf32>
    %258 = tpu.matmul %256, %257, %cst_94 {dimension_numbers = #tpu.dot_dimension_numbers<[1], [0], [0], [1], [0, 0, 1, 1], [], []>} : vector<16x16xbf16>, vector<16x8xbf16>, vector<16x8xf32> -> vector<16x8xf32>
    %c0_95 = arith.constant 0 : index
    %c0_96 = arith.constant 0 : index
    %259 = vector.load %arg3[%c0_95, %c0_96] : memref<16x16xf32, #tpu.memory_space<vmem>>, vector<16x8xf32>
    tpu.vector_store %arg3[%c0_95, %c0_96], %258 {strides = array<i32>} : memref<16x16xf32, #tpu.memory_space<vmem>>, vector<16x8xf32>,
    %260 = vector.broadcast %255 : vector<48x1xf32> to vector<48x8xf32>
    %261 = arith.mulf %260, %215 : vector<48x8xf32>
    %c0_97 = arith.constant 0 : index
    %c0_98 = arith.constant 0 : index
    %262 = vector.load %arg4[%c0_97, %c0_98] : memref<48x16xf32, #tpu.memory_space<vmem>>, vector<48x8xf32>
    tpu.vector_store %arg4[%c0_97, %c0_98], %261 {strides = array<i32>} : memref<48x16xf32, #tpu.memory_space<vmem>>, vector<48x8xf32>,
    %263 = vector.extract_strided_slice %202 {offsets = [0, 8], sizes = [16, 8], strides = [1, 1]} : vector<16x16xf32> to vector<16x8xf32>
    %264 = vector.extract_strided_slice %203 {offsets = [0, 8], sizes = [16, 8], strides = [1, 1]} : vector<16x16xf32> to vector<16x8xf32>
    %265 = vector.extract_strided_slice %204 {offsets = [0, 8], sizes = [16, 8], strides = [1, 1]} : vector<16x16xf32> to vector<16x8xf32>
    %266 = vector.extract_strided_slice %208 {offsets = [0, 8], sizes = [48, 8], strides = [1, 1]} : vector<48x16xf32> to vector<48x8xf32>
    %267 = vector.extract_strided_slice %211 {offsets = [0, 8], sizes = [48, 8], strides = [1, 1]} : vector<48x16xf32> to vector<48x8xf32>
    %268 = arith.mulf %267, %266 : vector<48x8xf32>
    %cst_99 = arith.constant dense<0.000000e+00> : vector<48xf32>
    %269 = vector.multi_reduction <add>, %268, %cst_99 [1] : vector<48x8xf32> to vector<48xf32>
    %270 = vector.shape_cast %269 : vector<48xf32> to vector<48x1xf32>
    %271 = vector.broadcast %270 : vector<48x1xf32> to vector<48x16xf32>
    %272 = arith.mulf %271, %4 : vector<48x16xf32>
    %273 = arith.truncf %2 : vector<16x48xf32> to vector<16x48xbf16>
    %274 = arith.truncf %272 : vector<48x16xf32> to vector<48x16xbf16>
    %cst_100 = arith.constant dense<0.000000e+00> : vector<16x16xf32>
    %275 = tpu.matmul %273, %274, %cst_100 {dimension_numbers = #tpu.dot_dimension_numbers<[1], [0], [0], [1], [0, 0, 1, 1], [], []>} : vector<16x48xbf16>, vector<48x16xbf16>, vector<16x16xf32> -> vector<16x16xf32>
    %276 = arith.truncf %263 : vector<16x8xf32> to vector<16x8xbf16>
    %277 = arith.truncf %264 : vector<16x8xf32> to vector<16x8xbf16>
    %cst_101 = arith.constant dense<0.000000e+00> : vector<16x16xf32>
    %278 = tpu.matmul %276, %277, %cst_101 {dimension_numbers = #tpu.dot_dimension_numbers<[1], [1], [0], [0], [0, 0, 1, 0], [], []>} : vector<16x8xbf16>, vector<16x8xbf16>, vector<16x16xf32> -> vector<16x16xf32>
    %279 = arith.addf %278, %275 : vector<16x16xf32>
    %cst_102 = arith.constant 0.353553385 : f32
    %280 = vector.broadcast %cst_102 : f32 to vector<16x16xf32>
    %281 = arith.mulf %279, %280 : vector<16x16xf32>
    %cst_103 = arith.constant 0.000000e+00 : f32
    %282 = vector.broadcast %cst_103 : f32 to vector<16x16xf32>
    %283 = arith.cmpf ogt, %1, %282 : vector<16x16xf32>
    %cst_104 = arith.constant -1.000000e+30 : f32
    %284 = vector.broadcast %cst_104 : f32 to vector<16x16xf32>
    %285 = arith.select %283, %281, %284 : vector<16x16xi1>, vector<16x16xf32>
    %cst_105 = arith.constant dense<0xFF800000> : vector<16xf32>
    %286 = vector.multi_reduction <maximumf>, %285, %cst_105 [1] : vector<16x16xf32> to vector<16xf32>
    %287 = vector.shape_cast %286 : vector<16xf32> to vector<16x1xf32>
    %288 = vector.broadcast %287 : vector<16x1xf32> to vector<16x16xf32>
    %289 = arith.subf %285, %288 : vector<16x16xf32>
    %290 = math.exp %289 : vector<16x16xf32>
    %291 = arith.mulf %290, %1 : vector<16x16xf32>
    %cst_106 = arith.constant dense<0.000000e+00> : vector<16xf32>
    %292 = vector.multi_reduction <add>, %291, %cst_106 [1] : vector<16x16xf32> to vector<16xf32>
    %293 = vector.shape_cast %292 : vector<16xf32> to vector<16x1xf32>
    %cst_107 = arith.constant 0.000000e+00 : f32
    %294 = vector.broadcast %cst_107 : f32 to vector<16x1xf32>
    %295 = arith.cmpf oeq, %293, %294 : vector<16x1xf32>
    %cst_108 = arith.constant 1.000000e+00 : f32
    %296 = vector.broadcast %cst_108 : f32 to vector<16x1xf32>
    %297 = arith.select %295, %296, %293 : vector<16x1xi1>, vector<16x1xf32>
    %298 = tpu.reciprocal %297 {approx = true} : vector<16x1xf32> -> vector<16x1xf32>
    %299 = vector.broadcast %298 : vector<16x1xf32> to vector<16x16xf32>
    %300 = arith.mulf %291, %299 : vector<16x16xf32>
    %301 = arith.truncf %3 : vector<48x16xf32> to vector<48x16xbf16>
    %302 = arith.truncf %300 : vector<16x16xf32> to vector<16x16xbf16>
    %cst_109 = arith.constant dense<0.000000e+00> : vector<48x16xf32>
    %303 = tpu.matmul %301, %302, %cst_109 {dimension_numbers = #tpu.dot_dimension_numbers<[1], [0], [0], [1], [0, 0, 1, 1], [], []>} : vector<48x16xbf16>, vector<16x16xbf16>, vector<48x16xf32> -> vector<48x16xf32>
    %304 = arith.mulf %303, %4 : vector<48x16xf32>
    %cst_110 = arith.constant dense<0.000000e+00> : vector<48xf32>
    %305 = vector.multi_reduction <add>, %304, %cst_110 [1] : vector<48x16xf32> to vector<48xf32>
    %306 = vector.shape_cast %305 : vector<48xf32> to vector<48x1xf32>
    %307 = arith.truncf %300 : vector<16x16xf32> to vector<16x16xbf16>
    %308 = arith.truncf %265 : vector<16x8xf32> to vector<16x8xbf16>
    %cst_111 = arith.constant dense<0.000000e+00> : vector<16x8xf32>
    %309 = tpu.matmul %307, %308, %cst_111 {dimension_numbers = #tpu.dot_dimension_numbers<[1], [0], [0], [1], [0, 0, 1, 1], [], []>} : vector<16x16xbf16>, vector<16x8xbf16>, vector<16x8xf32> -> vector<16x8xf32>
    %c0_112 = arith.constant 0 : index
    %c8_113 = arith.constant 8 : index
    %310 = vector.load %arg3[%c0_112, %c8_113] : memref<16x16xf32, #tpu.memory_space<vmem>>, vector<16x8xf32>
    tpu.vector_store %arg3[%c0_112, %c8_113], %309 {strides = array<i32>} : memref<16x16xf32, #tpu.memory_space<vmem>>, vector<16x8xf32>,
    %311 = vector.broadcast %306 : vector<48x1xf32> to vector<48x8xf32>
    %312 = arith.mulf %311, %266 : vector<48x8xf32>
    %c0_114 = arith.constant 0 : index
    %c8_115 = arith.constant 8 : index
    %313 = vector.load %arg4[%c0_114, %c8_115] : memref<48x16xf32, #tpu.memory_space<vmem>>, vector<48x8xf32>
    tpu.vector_store %arg4[%c0_114, %c8_115], %312 {strides = array<i32>} : memref<48x16xf32, #tpu.memory_space<vmem>>, vector<48x8xf32>,
    %c0_116 = arith.constant 0 : index
    %c0_117 = arith.constant 0 : index
    %314 = vector.load %arg3[%c0_116, %c0_117] : memref<16x16xf32, #tpu.memory_space<vmem>>, vector<16x16xf32>
    %c0_118 = arith.constant 0 : index
    %c0_119 = arith.constant 0 : index
    %315 = vector.load %arg4[%c0_118, %c0_119] : memref<48x16xf32, #tpu.memory_space<vmem>>, vector<48x16xf32>
    %316 = arith.truncf %2 : vector<16x48xf32> to vector<16x48xbf16>
    %317 = arith.truncf %315 : vector<48x16xf32> to vector<48x16xbf16>
    %cst_120 = arith.constant dense<0.000000e+00> : vector<16x16xf32>
    %318 = tpu.matmul %316, %317, %cst_120 {dimension_numbers = #tpu.dot_dimension_numbers<[1], [0], [0], [1], [0, 0, 1, 1], [], []>} : vector<16x48xbf16>, vector<48x16xbf16>, vector<16x16xf32> -> vector<16x16xf32>
    %319 = arith.addf %314, %318 : vector<16x16xf32>
    %320 = vector.extract_strided_slice %192 {offsets = [0, 0], sizes = [1, 16], strides = [1, 1]} : vector<2x16xf32> to vector<1x16xf32>
    %321 = vector.broadcast %320 : vector<1x16xf32> to vector<16x16xf32>
    %322 = arith.mulf %319, %321 : vector<16x16xf32>
    %323 = vector.extract_strided_slice %192 {offsets = [1, 0], sizes = [1, 16], strides = [1, 1]} : vector<2x16xf32> to vector<1x16xf32>
    %324 = vector.broadcast %323 : vector<1x16xf32> to vector<16x16xf32>
    %325 = arith.mulf %205, %324 : vector<16x16xf32>
    %326 = arith.addf %322, %325 : vector<16x16xf32>
    %cst_121 = arith.constant dense<0.000000e+00> : vector<16xf32>
    %327 = vector.multi_reduction <add>, %326, %cst_121 [1] : vector<16x16xf32> to vector<16xf32>
    %328 = vector.shape_cast %327 : vector<16xf32> to vector<16x1xf32>
    %cst_122 = arith.constant 5.000000e-01 : f32
    %329 = vector.broadcast %cst_122 : f32 to vector<16x1xf32>
    %330 = arith.mulf %329, %328 : vector<16x1xf32>
    %331 = math.tanh %330 : vector<16x1xf32>
    %cst_123 = arith.constant 1.000000e+00 : f32
    %332 = vector.broadcast %cst_123 : f32 to vector<16x1xf32>
    %333 = arith.addf %331, %332 : vector<16x1xf32>
    %cst_124 = arith.constant 5.000000e-01 : f32
    %334 = vector.broadcast %cst_124 : f32 to vector<16x1xf32>
    %335 = arith.mulf %334, %333 : vector<16x1xf32>
    %336 = vector.broadcast %335 : vector<16x1xf32> to vector<16x16xf32>
    %337 = arith.mulf %336, %205 : vector<16x16xf32>
    %cst_125 = arith.constant 1.000000e+00 : f32
    %338 = vector.broadcast %cst_125 : f32 to vector<16x1xf32>
    %339 = arith.subf %338, %335 : vector<16x1xf32>
    %340 = vector.broadcast %339 : vector<16x1xf32> to vector<16x16xf32>
    %341 = arith.mulf %340, %319 : vector<16x16xf32>
    %342 = arith.addf %337, %341 : vector<16x16xf32>
    %343 = arith.truncf %342 : vector<16x16xf32> to vector<16x16xbf16>
    %344 = arith.truncf %193 : vector<16x8xf32> to vector<16x8xbf16>
    %cst_126 = arith.constant dense<0.000000e+00> : vector<16x8xf32>
    %345 = tpu.matmul %343, %344, %cst_126 {dimension_numbers = #tpu.dot_dimension_numbers<[1], [0], [0], [1], [0, 0, 1, 1], [], []>} : vector<16x16xbf16>, vector<16x8xbf16>, vector<16x8xf32> -> vector<16x8xf32>
    %346 = vector.broadcast %194 : vector<1x8xf32> to vector<16x8xf32>
    %347 = arith.addf %345, %346 : vector<16x8xf32>
    %cst_127 = arith.constant 0.000000e+00 : f32
    %348 = vector.broadcast %cst_127 : f32 to vector<16x8xf32>
    %349 = arith.maximumf %347, %348 : vector<16x8xf32>
    %cst_128 = arith.constant dense<0.000000e+00> : vector<8xf32>
    %350 = vector.multi_reduction <add>, %349, %cst_128 [0] : vector<16x8xf32> to vector<8xf32>
    %351 = vector.shape_cast %350 : vector<8xf32> to vector<1x8xf32>
    %cst_129 = arith.constant 1.600000e+01 : f32
    %352 = vector.broadcast %cst_129 : f32 to vector<1x8xf32>
    %353 = arith.divf %351, %352 : vector<1x8xf32>
    %354 = vector.broadcast %353 : vector<1x8xf32> to vector<16x8xf32>
    %355 = arith.subf %349, %354 : vector<16x8xf32>
    %356 = arith.mulf %355, %355 : vector<16x8xf32>
    %cst_130 = arith.constant dense<0.000000e+00> : vector<8xf32>
    %357 = vector.multi_reduction <add>, %356, %cst_130 [0] : vector<16x8xf32> to vector<8xf32>
    %358 = vector.shape_cast %357 : vector<8xf32> to vector<1x8xf32>
    %cst_131 = arith.constant 1.600000e+01 : f32
    %359 = vector.broadcast %cst_131 : f32 to vector<1x8xf32>
    %360 = arith.divf %358, %359 : vector<1x8xf32>
    %361 = vector.broadcast %353 : vector<1x8xf32> to vector<16x8xf32>
    %362 = arith.subf %349, %361 : vector<16x8xf32>
    %363 = vector.broadcast %195 : vector<1x8xf32> to vector<16x8xf32>
    %364 = arith.mulf %363, %362 : vector<16x8xf32>
    %cst_132 = arith.constant 9.99999974E-6 : f32
    %365 = vector.broadcast %cst_132 : f32 to vector<1x8xf32>
    %366 = arith.addf %360, %365 : vector<1x8xf32>
    %367 = math.rsqrt %366 : vector<1x8xf32>
    %368 = vector.broadcast %367 : vector<1x8xf32> to vector<16x8xf32>
    %369 = arith.mulf %364, %368 : vector<16x8xf32>
    %370 = vector.broadcast %196 : vector<1x8xf32> to vector<16x8xf32>
    %371 = arith.addf %369, %370 : vector<16x8xf32>
    %c152 = arith.constant 152 : index
    %c0_133 = arith.constant 0 : index
    %372 = vector.load %arg1[%c152, %c0_133] : memref<240x128xf32, #tpu.memory_space<vmem>>, vector<8x64xf32>
    %c160 = arith.constant 160 : index
    %c0_134 = arith.constant 0 : index
    %373 = vector.load %arg1[%c160, %c0_134] : memref<240x128xf32, #tpu.memory_space<vmem>>, vector<1x64xf32>
    %c168 = arith.constant 168 : index
    %c0_135 = arith.constant 0 : index
    %374 = vector.load %arg1[%c168, %c0_135] : memref<240x128xf32, #tpu.memory_space<vmem>>, vector<4x16xf32>
    %c176 = arith.constant 176 : index
    %c0_136 = arith.constant 0 : index
    %375 = vector.load %arg1[%c176, %c0_136] : memref<240x128xf32, #tpu.memory_space<vmem>>, vector<2x16xf32>
    %c184 = arith.constant 184 : index
    %c0_137 = arith.constant 0 : index
    %376 = vector.load %arg1[%c184, %c0_137] : memref<240x128xf32, #tpu.memory_space<vmem>>, vector<16x8xf32>
    %c200 = arith.constant 200 : index
    %c0_138 = arith.constant 0 : index
    %377 = vector.load %arg1[%c200, %c0_138] : memref<240x128xf32, #tpu.memory_space<vmem>>, vector<1x8xf32>
    %c208 = arith.constant 208 : index
    %c0_139 = arith.constant 0 : index
    %378 = vector.load %arg1[%c208, %c0_139] : memref<240x128xf32, #tpu.memory_space<vmem>>, vector<1x8xf32>
    %c216 = arith.constant 216 : index
    %c0_140 = arith.constant 0 : index
    %379 = vector.load %arg1[%c216, %c0_140] : memref<240x128xf32, #tpu.memory_space<vmem>>, vector<1x8xf32>
    %380 = arith.truncf %371 : vector<16x8xf32> to vector<16x8xbf16>
    %381 = arith.truncf %372 : vector<8x64xf32> to vector<8x64xbf16>
    %cst_141 = arith.constant dense<0.000000e+00> : vector<16x64xf32>
    %382 = tpu.matmul %380, %381, %cst_141 {dimension_numbers = #tpu.dot_dimension_numbers<[1], [0], [0], [1], [0, 0, 1, 1], [], []>} : vector<16x8xbf16>, vector<8x64xbf16>, vector<16x64xf32> -> vector<16x64xf32>
    %383 = vector.broadcast %373 : vector<1x64xf32> to vector<16x64xf32>
    %384 = arith.addf %382, %383 : vector<16x64xf32>
    %385 = vector.extract_strided_slice %384 {offsets = [0, 0], sizes = [16, 16], strides = [1, 1]} : vector<16x64xf32> to vector<16x16xf32>
    %386 = vector.extract_strided_slice %384 {offsets = [0, 16], sizes = [16, 16], strides = [1, 1]} : vector<16x64xf32> to vector<16x16xf32>
    %387 = vector.extract_strided_slice %384 {offsets = [0, 32], sizes = [16, 16], strides = [1, 1]} : vector<16x64xf32> to vector<16x16xf32>
    %388 = vector.extract_strided_slice %384 {offsets = [0, 48], sizes = [16, 16], strides = [1, 1]} : vector<16x64xf32> to vector<16x16xf32>
    %389 = arith.truncf %5 : vector<48x4xf32> to vector<48x4xbf16>
    %390 = arith.truncf %374 : vector<4x16xf32> to vector<4x16xbf16>
    %cst_142 = arith.constant dense<0.000000e+00> : vector<48x16xf32>
    %391 = tpu.matmul %389, %390, %cst_142 {dimension_numbers = #tpu.dot_dimension_numbers<[1], [0], [0], [1], [0, 0, 1, 1], [], []>} : vector<48x4xbf16>, vector<4x16xbf16>, vector<48x16xf32> -> vector<48x16xf32>
    %392 = arith.truncf %3 : vector<48x16xf32> to vector<48x16xbf16>
    %393 = arith.truncf %385 : vector<16x16xf32> to vector<16x16xbf16>
    %cst_143 = arith.constant dense<0.000000e+00> : vector<48x16xf32>
    %394 = tpu.matmul %392, %393, %cst_143 {dimension_numbers = #tpu.dot_dimension_numbers<[1], [0], [0], [1], [0, 0, 1, 1], [], []>} : vector<48x16xbf16>, vector<16x16xbf16>, vector<48x16xf32> -> vector<48x16xf32>
    %395 = vector.extract_strided_slice %385 {offsets = [0, 0], sizes = [16, 8], strides = [1, 1]} : vector<16x16xf32> to vector<16x8xf32>
    %396 = vector.extract_strided_slice %386 {offsets = [0, 0], sizes = [16, 8], strides = [1, 1]} : vector<16x16xf32> to vector<16x8xf32>
    %397 = vector.extract_strided_slice %387 {offsets = [0, 0], sizes = [16, 8], strides = [1, 1]} : vector<16x16xf32> to vector<16x8xf32>
    %398 = vector.extract_strided_slice %391 {offsets = [0, 0], sizes = [48, 8], strides = [1, 1]} : vector<48x16xf32> to vector<48x8xf32>
    %399 = vector.extract_strided_slice %394 {offsets = [0, 0], sizes = [48, 8], strides = [1, 1]} : vector<48x16xf32> to vector<48x8xf32>
    %400 = arith.mulf %399, %398 : vector<48x8xf32>
    %cst_144 = arith.constant dense<0.000000e+00> : vector<48xf32>
    %401 = vector.multi_reduction <add>, %400, %cst_144 [1] : vector<48x8xf32> to vector<48xf32>
    %402 = vector.shape_cast %401 : vector<48xf32> to vector<48x1xf32>
    %403 = vector.broadcast %402 : vector<48x1xf32> to vector<48x16xf32>
    %404 = arith.mulf %403, %4 : vector<48x16xf32>
    %405 = arith.truncf %2 : vector<16x48xf32> to vector<16x48xbf16>
    %406 = arith.truncf %404 : vector<48x16xf32> to vector<48x16xbf16>
    %cst_145 = arith.constant dense<0.000000e+00> : vector<16x16xf32>
    %407 = tpu.matmul %405, %406, %cst_145 {dimension_numbers = #tpu.dot_dimension_numbers<[1], [0], [0], [1], [0, 0, 1, 1], [], []>} : vector<16x48xbf16>, vector<48x16xbf16>, vector<16x16xf32> -> vector<16x16xf32>
    %408 = arith.truncf %395 : vector<16x8xf32> to vector<16x8xbf16>
    %409 = arith.truncf %396 : vector<16x8xf32> to vector<16x8xbf16>
    %cst_146 = arith.constant dense<0.000000e+00> : vector<16x16xf32>
    %410 = tpu.matmul %408, %409, %cst_146 {dimension_numbers = #tpu.dot_dimension_numbers<[1], [1], [0], [0], [0, 0, 1, 0], [], []>} : vector<16x8xbf16>, vector<16x8xbf16>, vector<16x16xf32> -> vector<16x16xf32>
    %411 = arith.addf %410, %407 : vector<16x16xf32>
    %cst_147 = arith.constant 0.353553385 : f32
    %412 = vector.broadcast %cst_147 : f32 to vector<16x16xf32>
    %413 = arith.mulf %411, %412 : vector<16x16xf32>
    %cst_148 = arith.constant 0.000000e+00 : f32
    %414 = vector.broadcast %cst_148 : f32 to vector<16x16xf32>
    %415 = arith.cmpf ogt, %1, %414 : vector<16x16xf32>
    %cst_149 = arith.constant -1.000000e+30 : f32
    %416 = vector.broadcast %cst_149 : f32 to vector<16x16xf32>
    %417 = arith.select %415, %413, %416 : vector<16x16xi1>, vector<16x16xf32>
    %cst_150 = arith.constant dense<0xFF800000> : vector<16xf32>
    %418 = vector.multi_reduction <maximumf>, %417, %cst_150 [1] : vector<16x16xf32> to vector<16xf32>
    %419 = vector.shape_cast %418 : vector<16xf32> to vector<16x1xf32>
    %420 = vector.broadcast %419 : vector<16x1xf32> to vector<16x16xf32>
    %421 = arith.subf %417, %420 : vector<16x16xf32>
    %422 = math.exp %421 : vector<16x16xf32>
    %423 = arith.mulf %422, %1 : vector<16x16xf32>
    %cst_151 = arith.constant dense<0.000000e+00> : vector<16xf32>
    %424 = vector.multi_reduction <add>, %423, %cst_151 [1] : vector<16x16xf32> to vector<16xf32>
    %425 = vector.shape_cast %424 : vector<16xf32> to vector<16x1xf32>
    %cst_152 = arith.constant 0.000000e+00 : f32
    %426 = vector.broadcast %cst_152 : f32 to vector<16x1xf32>
    %427 = arith.cmpf oeq, %425, %426 : vector<16x1xf32>
    %cst_153 = arith.constant 1.000000e+00 : f32
    %428 = vector.broadcast %cst_153 : f32 to vector<16x1xf32>
    %429 = arith.select %427, %428, %425 : vector<16x1xi1>, vector<16x1xf32>
    %430 = tpu.reciprocal %429 {approx = true} : vector<16x1xf32> -> vector<16x1xf32>
    %431 = vector.broadcast %430 : vector<16x1xf32> to vector<16x16xf32>
    %432 = arith.mulf %423, %431 : vector<16x16xf32>
    %433 = arith.truncf %3 : vector<48x16xf32> to vector<48x16xbf16>
    %434 = arith.truncf %432 : vector<16x16xf32> to vector<16x16xbf16>
    %cst_154 = arith.constant dense<0.000000e+00> : vector<48x16xf32>
    %435 = tpu.matmul %433, %434, %cst_154 {dimension_numbers = #tpu.dot_dimension_numbers<[1], [0], [0], [1], [0, 0, 1, 1], [], []>} : vector<48x16xbf16>, vector<16x16xbf16>, vector<48x16xf32> -> vector<48x16xf32>
    %436 = arith.mulf %435, %4 : vector<48x16xf32>
    %cst_155 = arith.constant dense<0.000000e+00> : vector<48xf32>
    %437 = vector.multi_reduction <add>, %436, %cst_155 [1] : vector<48x16xf32> to vector<48xf32>
    %438 = vector.shape_cast %437 : vector<48xf32> to vector<48x1xf32>
    %439 = arith.truncf %432 : vector<16x16xf32> to vector<16x16xbf16>
    %440 = arith.truncf %397 : vector<16x8xf32> to vector<16x8xbf16>
    %cst_156 = arith.constant dense<0.000000e+00> : vector<16x8xf32>
    %441 = tpu.matmul %439, %440, %cst_156 {dimension_numbers = #tpu.dot_dimension_numbers<[1], [0], [0], [1], [0, 0, 1, 1], [], []>} : vector<16x16xbf16>, vector<16x8xbf16>, vector<16x8xf32> -> vector<16x8xf32>
    %c0_157 = arith.constant 0 : index
    %c0_158 = arith.constant 0 : index
    %442 = vector.load %arg3[%c0_157, %c0_158] : memref<16x16xf32, #tpu.memory_space<vmem>>, vector<16x8xf32>
    tpu.vector_store %arg3[%c0_157, %c0_158], %441 {strides = array<i32>} : memref<16x16xf32, #tpu.memory_space<vmem>>, vector<16x8xf32>,
    %443 = vector.broadcast %438 : vector<48x1xf32> to vector<48x8xf32>
    %444 = arith.mulf %443, %398 : vector<48x8xf32>
    %c0_159 = arith.constant 0 : index
    %c0_160 = arith.constant 0 : index
    %445 = vector.load %arg4[%c0_159, %c0_160] : memref<48x16xf32, #tpu.memory_space<vmem>>, vector<48x8xf32>
    tpu.vector_store %arg4[%c0_159, %c0_160], %444 {strides = array<i32>} : memref<48x16xf32, #tpu.memory_space<vmem>>, vector<48x8xf32>,
    %446 = vector.extract_strided_slice %385 {offsets = [0, 8], sizes = [16, 8], strides = [1, 1]} : vector<16x16xf32> to vector<16x8xf32>
    %447 = vector.extract_strided_slice %386 {offsets = [0, 8], sizes = [16, 8], strides = [1, 1]} : vector<16x16xf32> to vector<16x8xf32>
    %448 = vector.extract_strided_slice %387 {offsets = [0, 8], sizes = [16, 8], strides = [1, 1]} : vector<16x16xf32> to vector<16x8xf32>
    %449 = vector.extract_strided_slice %391 {offsets = [0, 8], sizes = [48, 8], strides = [1, 1]} : vector<48x16xf32> to vector<48x8xf32>
    %450 = vector.extract_strided_slice %394 {offsets = [0, 8], sizes = [48, 8], strides = [1, 1]} : vector<48x16xf32> to vector<48x8xf32>
    %451 = arith.mulf %450, %449 : vector<48x8xf32>
    %cst_161 = arith.constant dense<0.000000e+00> : vector<48xf32>
    %452 = vector.multi_reduction <add>, %451, %cst_161 [1] : vector<48x8xf32> to vector<48xf32>
    %453 = vector.shape_cast %452 : vector<48xf32> to vector<48x1xf32>
    %454 = vector.broadcast %453 : vector<48x1xf32> to vector<48x16xf32>
    %455 = arith.mulf %454, %4 : vector<48x16xf32>
    %456 = arith.truncf %2 : vector<16x48xf32> to vector<16x48xbf16>
    %457 = arith.truncf %455 : vector<48x16xf32> to vector<48x16xbf16>
    %cst_162 = arith.constant dense<0.000000e+00> : vector<16x16xf32>
    %458 = tpu.matmul %456, %457, %cst_162 {dimension_numbers = #tpu.dot_dimension_numbers<[1], [0], [0], [1], [0, 0, 1, 1], [], []>} : vector<16x48xbf16>, vector<48x16xbf16>, vector<16x16xf32> -> vector<16x16xf32>
    %459 = arith.truncf %446 : vector<16x8xf32> to vector<16x8xbf16>
    %460 = arith.truncf %447 : vector<16x8xf32> to vector<16x8xbf16>
    %cst_163 = arith.constant dense<0.000000e+00> : vector<16x16xf32>
    %461 = tpu.matmul %459, %460, %cst_163 {dimension_numbers = #tpu.dot_dimension_numbers<[1], [1], [0], [0], [0, 0, 1, 0], [], []>} : vector<16x8xbf16>, vector<16x8xbf16>, vector<16x16xf32> -> vector<16x16xf32>
    %462 = arith.addf %461, %458 : vector<16x16xf32>
    %cst_164 = arith.constant 0.353553385 : f32
    %463 = vector.broadcast %cst_164 : f32 to vector<16x16xf32>
    %464 = arith.mulf %462, %463 : vector<16x16xf32>
    %cst_165 = arith.constant 0.000000e+00 : f32
    %465 = vector.broadcast %cst_165 : f32 to vector<16x16xf32>
    %466 = arith.cmpf ogt, %1, %465 : vector<16x16xf32>
    %cst_166 = arith.constant -1.000000e+30 : f32
    %467 = vector.broadcast %cst_166 : f32 to vector<16x16xf32>
    %468 = arith.select %466, %464, %467 : vector<16x16xi1>, vector<16x16xf32>
    %cst_167 = arith.constant dense<0xFF800000> : vector<16xf32>
    %469 = vector.multi_reduction <maximumf>, %468, %cst_167 [1] : vector<16x16xf32> to vector<16xf32>
    %470 = vector.shape_cast %469 : vector<16xf32> to vector<16x1xf32>
    %471 = vector.broadcast %470 : vector<16x1xf32> to vector<16x16xf32>
    %472 = arith.subf %468, %471 : vector<16x16xf32>
    %473 = math.exp %472 : vector<16x16xf32>
    %474 = arith.mulf %473, %1 : vector<16x16xf32>
    %cst_168 = arith.constant dense<0.000000e+00> : vector<16xf32>
    %475 = vector.multi_reduction <add>, %474, %cst_168 [1] : vector<16x16xf32> to vector<16xf32>
    %476 = vector.shape_cast %475 : vector<16xf32> to vector<16x1xf32>
    %cst_169 = arith.constant 0.000000e+00 : f32
    %477 = vector.broadcast %cst_169 : f32 to vector<16x1xf32>
    %478 = arith.cmpf oeq, %476, %477 : vector<16x1xf32>
    %cst_170 = arith.constant 1.000000e+00 : f32
    %479 = vector.broadcast %cst_170 : f32 to vector<16x1xf32>
    %480 = arith.select %478, %479, %476 : vector<16x1xi1>, vector<16x1xf32>
    %481 = tpu.reciprocal %480 {approx = true} : vector<16x1xf32> -> vector<16x1xf32>
    %482 = vector.broadcast %481 : vector<16x1xf32> to vector<16x16xf32>
    %483 = arith.mulf %474, %482 : vector<16x16xf32>
    %484 = arith.truncf %3 : vector<48x16xf32> to vector<48x16xbf16>
    %485 = arith.truncf %483 : vector<16x16xf32> to vector<16x16xbf16>
    %cst_171 = arith.constant dense<0.000000e+00> : vector<48x16xf32>
    %486 = tpu.matmul %484, %485, %cst_171 {dimension_numbers = #tpu.dot_dimension_numbers<[1], [0], [0], [1], [0, 0, 1, 1], [], []>} : vector<48x16xbf16>, vector<16x16xbf16>, vector<48x16xf32> -> vector<48x16xf32>
    %487 = arith.mulf %486, %4 : vector<48x16xf32>
    %cst_172 = arith.constant dense<0.000000e+00> : vector<48xf32>
    %488 = vector.multi_reduction <add>, %487, %cst_172 [1] : vector<48x16xf32> to vector<48xf32>
    %489 = vector.shape_cast %488 : vector<48xf32> to vector<48x1xf32>
    %490 = arith.truncf %483 : vector<16x16xf32> to vector<16x16xbf16>
    %491 = arith.truncf %448 : vector<16x8xf32> to vector<16x8xbf16>
    %cst_173 = arith.constant dense<0.000000e+00> : vector<16x8xf32>
    %492 = tpu.matmul %490, %491, %cst_173 {dimension_numbers = #tpu.dot_dimension_numbers<[1], [0], [0], [1], [0, 0, 1, 1], [], []>} : vector<16x16xbf16>, vector<16x8xbf16>, vector<16x8xf32> -> vector<16x8xf32>
    %c0_174 = arith.constant 0 : index
    %c8_175 = arith.constant 8 : index
    %493 = vector.load %arg3[%c0_174, %c8_175] : memref<16x16xf32, #tpu.memory_space<vmem>>, vector<16x8xf32>
    tpu.vector_store %arg3[%c0_174, %c8_175], %492 {strides = array<i32>} : memref<16x16xf32, #tpu.memory_space<vmem>>, vector<16x8xf32>,
    %494 = vector.broadcast %489 : vector<48x1xf32> to vector<48x8xf32>
    %495 = arith.mulf %494, %449 : vector<48x8xf32>
    %c0_176 = arith.constant 0 : index
    %c8_177 = arith.constant 8 : index
    %496 = vector.load %arg4[%c0_176, %c8_177] : memref<48x16xf32, #tpu.memory_space<vmem>>, vector<48x8xf32>
    tpu.vector_store %arg4[%c0_176, %c8_177], %495 {strides = array<i32>} : memref<48x16xf32, #tpu.memory_space<vmem>>, vector<48x8xf32>,
    %c0_178 = arith.constant 0 : index
    %c0_179 = arith.constant 0 : index
    %497 = vector.load %arg3[%c0_178, %c0_179] : memref<16x16xf32, #tpu.memory_space<vmem>>, vector<16x16xf32>
    %c0_180 = arith.constant 0 : index
    %c0_181 = arith.constant 0 : index
    %498 = vector.load %arg4[%c0_180, %c0_181] : memref<48x16xf32, #tpu.memory_space<vmem>>, vector<48x16xf32>
    %499 = arith.truncf %2 : vector<16x48xf32> to vector<16x48xbf16>
    %500 = arith.truncf %498 : vector<48x16xf32> to vector<48x16xbf16>
    %cst_182 = arith.constant dense<0.000000e+00> : vector<16x16xf32>
    %501 = tpu.matmul %499, %500, %cst_182 {dimension_numbers = #tpu.dot_dimension_numbers<[1], [0], [0], [1], [0, 0, 1, 1], [], []>} : vector<16x48xbf16>, vector<48x16xbf16>, vector<16x16xf32> -> vector<16x16xf32>
    %502 = arith.addf %497, %501 : vector<16x16xf32>
    %503 = vector.extract_strided_slice %375 {offsets = [0, 0], sizes = [1, 16], strides = [1, 1]} : vector<2x16xf32> to vector<1x16xf32>
    %504 = vector.broadcast %503 : vector<1x16xf32> to vector<16x16xf32>
    %505 = arith.mulf %502, %504 : vector<16x16xf32>
    %506 = vector.extract_strided_slice %375 {offsets = [1, 0], sizes = [1, 16], strides = [1, 1]} : vector<2x16xf32> to vector<1x16xf32>
    %507 = vector.broadcast %506 : vector<1x16xf32> to vector<16x16xf32>
    %508 = arith.mulf %388, %507 : vector<16x16xf32>
    %509 = arith.addf %505, %508 : vector<16x16xf32>
    %cst_183 = arith.constant dense<0.000000e+00> : vector<16xf32>
    %510 = vector.multi_reduction <add>, %509, %cst_183 [1] : vector<16x16xf32> to vector<16xf32>
    %511 = vector.shape_cast %510 : vector<16xf32> to vector<16x1xf32>
    %cst_184 = arith.constant 5.000000e-01 : f32
    %512 = vector.broadcast %cst_184 : f32 to vector<16x1xf32>
    %513 = arith.mulf %512, %511 : vector<16x1xf32>
    %514 = math.tanh %513 : vector<16x1xf32>
    %cst_185 = arith.constant 1.000000e+00 : f32
    %515 = vector.broadcast %cst_185 : f32 to vector<16x1xf32>
    %516 = arith.addf %514, %515 : vector<16x1xf32>
    %cst_186 = arith.constant 5.000000e-01 : f32
    %517 = vector.broadcast %cst_186 : f32 to vector<16x1xf32>
    %518 = arith.mulf %517, %516 : vector<16x1xf32>
    %519 = vector.broadcast %518 : vector<16x1xf32> to vector<16x16xf32>
    %520 = arith.mulf %519, %388 : vector<16x16xf32>
    %cst_187 = arith.constant 1.000000e+00 : f32
    %521 = vector.broadcast %cst_187 : f32 to vector<16x1xf32>
    %522 = arith.subf %521, %518 : vector<16x1xf32>
    %523 = vector.broadcast %522 : vector<16x1xf32> to vector<16x16xf32>
    %524 = arith.mulf %523, %502 : vector<16x16xf32>
    %525 = arith.addf %520, %524 : vector<16x16xf32>
    %526 = arith.truncf %525 : vector<16x16xf32> to vector<16x16xbf16>
    %527 = arith.truncf %376 : vector<16x8xf32> to vector<16x8xbf16>
    %cst_188 = arith.constant dense<0.000000e+00> : vector<16x8xf32>
    %528 = tpu.matmul %526, %527, %cst_188 {dimension_numbers = #tpu.dot_dimension_numbers<[1], [0], [0], [1], [0, 0, 1, 1], [], []>} : vector<16x16xbf16>, vector<16x8xbf16>, vector<16x8xf32> -> vector<16x8xf32>
    %529 = vector.broadcast %377 : vector<1x8xf32> to vector<16x8xf32>
    %530 = arith.addf %528, %529 : vector<16x8xf32>
    %cst_189 = arith.constant 0.000000e+00 : f32
    %531 = vector.broadcast %cst_189 : f32 to vector<16x8xf32>
    %532 = arith.maximumf %530, %531 : vector<16x8xf32>
    %cst_190 = arith.constant dense<0.000000e+00> : vector<8xf32>
    %533 = vector.multi_reduction <add>, %532, %cst_190 [0] : vector<16x8xf32> to vector<8xf32>
    %534 = vector.shape_cast %533 : vector<8xf32> to vector<1x8xf32>
    %cst_191 = arith.constant 1.600000e+01 : f32
    %535 = vector.broadcast %cst_191 : f32 to vector<1x8xf32>
    %536 = arith.divf %534, %535 : vector<1x8xf32>
    %537 = vector.broadcast %536 : vector<1x8xf32> to vector<16x8xf32>
    %538 = arith.subf %532, %537 : vector<16x8xf32>
    %539 = arith.mulf %538, %538 : vector<16x8xf32>
    %cst_192 = arith.constant dense<0.000000e+00> : vector<8xf32>
    %540 = vector.multi_reduction <add>, %539, %cst_192 [0] : vector<16x8xf32> to vector<8xf32>
    %541 = vector.shape_cast %540 : vector<8xf32> to vector<1x8xf32>
    %cst_193 = arith.constant 1.600000e+01 : f32
    %542 = vector.broadcast %cst_193 : f32 to vector<1x8xf32>
    %543 = arith.divf %541, %542 : vector<1x8xf32>
    %544 = vector.broadcast %536 : vector<1x8xf32> to vector<16x8xf32>
    %545 = arith.subf %532, %544 : vector<16x8xf32>
    %546 = vector.broadcast %378 : vector<1x8xf32> to vector<16x8xf32>
    %547 = arith.mulf %546, %545 : vector<16x8xf32>
    %cst_194 = arith.constant 9.99999974E-6 : f32
    %548 = vector.broadcast %cst_194 : f32 to vector<1x8xf32>
    %549 = arith.addf %543, %548 : vector<1x8xf32>
    %550 = math.rsqrt %549 : vector<1x8xf32>
    %551 = vector.broadcast %550 : vector<1x8xf32> to vector<16x8xf32>
    %552 = arith.mulf %547, %551 : vector<16x8xf32>
    %553 = vector.broadcast %379 : vector<1x8xf32> to vector<16x8xf32>
    %554 = arith.addf %552, %553 : vector<16x8xf32>
    %c224 = arith.constant 224 : index
    %c0_195 = arith.constant 0 : index
    %555 = vector.load %arg1[%c224, %c0_195] : memref<240x128xf32, #tpu.memory_space<vmem>>, vector<8x128xf32>
    %c232 = arith.constant 232 : index
    %c0_196 = arith.constant 0 : index
    %556 = vector.load %arg1[%c232, %c0_196] : memref<240x128xf32, #tpu.memory_space<vmem>>, vector<1x128xf32>
    %557 = arith.truncf %554 : vector<16x8xf32> to vector<16x8xbf16>
    %558 = arith.truncf %555 : vector<8x128xf32> to vector<8x128xbf16>
    %cst_197 = arith.constant dense<0.000000e+00> : vector<16x128xf32>
    %559 = tpu.matmul %557, %558, %cst_197 {dimension_numbers = #tpu.dot_dimension_numbers<[1], [0], [0], [1], [0, 0, 1, 1], [], []>} : vector<16x8xbf16>, vector<8x128xbf16>, vector<16x128xf32> -> vector<16x128xf32>
    %560 = vector.broadcast %556 : vector<1x128xf32> to vector<16x128xf32>
    %561 = arith.addf %559, %560 : vector<16x128xf32>
    %c0_198 = arith.constant 0 : index
    %c0_199 = arith.constant 0 : index
    %562 = vector.load %arg2[%c0_198, %c0_199] : memref<16x128xf32, #tpu.memory_space<vmem>>, vector<16x128xf32>
    tpu.vector_store %arg2[%c0_198, %c0_199], %561 {strides = array<i32>} : memref<16x128xf32, #tpu.memory_space<vmem>>, vector<16x128xf32>,
    return
  }
}

</mosaic_0001>

<llo_original>
// kernel: tpu_custom_call.1
$region0: #{tpu_custom_call.1}
  #allocation0 [shape = 'u32[]', space=smem, size = 0x4, offset = 0x4, fixed_abs, tag = 'smem constant byte address 0x4 - core index']
  #allocation1 [shape = 'u32[72,128]{1,0:T(1,128)}', space=vmem, size = 0x9000, scoped, tag = 'internal scratch']
  #allocation2 [shape = 'f32[16,16]{1,0:T(8,128)}', space=vmem, size = 0x2000, scoped, tag = 'scratch operand']
  #allocation3 [shape = 'f32[48,16]{1,0:T(8,128)}', space=vmem, size = 0x6000, scoped, tag = 'scratch operand']
  %s0 = inlined_call_operand.hbm [shape: f32[192,128], index: 0, kind: input, shape index: {}]
  %s1 = inlined_call_operand.hbm [shape: f32[240,128], index: 1, kind: input, shape index: {}]
  %s2 = inlined_call_operand.hbm [shape: f32[16,128], index: 2, kind: output, shape index: {}]
  %s3 = sld [smem:[#allocation0]]
  $region26: #{tpu_custom_call.1} parent=0
    _
  %s5 = ssub.s32 1, %s3
  %s6 = scalar_select 0, %s5, %s3
  $region1: #{tpu_custom_call.1} parent=0
    #allocation4 [shape = 'u8[98304]{0}', space=vmem, size = 0x18000, scoped, tag = 'input window, operand 0, single buffered']
    #allocation5 [shape = 's32[1]{0}', space=sflag, size = 0x4, scoped, tag = 'scoped memory for tpu_custom_call.1']
    #allocation6 [shape = 's32[1]{0}', space=sflag, size = 0x4, scoped, tag = 'scoped memory for tpu_custom_call.1']
    #allocation7 [shape = 'u8[122880]{0}', space=vmem, size = 0x1e000, scoped, tag = 'input window, operand 1, single buffered']
    #allocation8 [shape = 's32[1]{0}', space=sflag, size = 0x4, scoped, tag = 'scoped memory for tpu_custom_call.1']
    #allocation9 [shape = 'u8[8192]{0}', space=vmem, size = 0x2000, scoped, tag = 'output window, operand 0, single buffered']
    %7 = vsyncpa [#allocation5], 0
    %8 = vsyncpa [#allocation8], 0
    %9 = vsyncpa [#allocation6], 0
    // Predicated region
    $region2: #{tpu_custom_call.1} parent=1 // pred_check
      _
    $region3: #{tpu_custom_call.1} parent=1 // pred_check_branch
      %11 = sbr.rel (0) target = $region5
    $region4: #{tpu_custom_call.1} parent=1 // pred_region
      %13 = vsyncadd [#allocation5], 0
      %s14 = sshll.u32 %s0, 4
      %s15 = int_to_ptr.hbm [resolvable:$true] %s14
      %s16 = sshll.u32 [#allocation4], 4
      %s17 = int_to_ptr.vmem [resolvable:$true] %s16
      %22 = dma.hbm_to_vmem [thread:$0]  %s15, 3072, %s17, [#allocation5], 128, 128, 8
    $region5: #{tpu_custom_call.1} parent=1 // pred_fallthru
      _
    // Predicated region
    $region6: #{tpu_custom_call.1} parent=1 // pred_check
      _
    $region7: #{tpu_custom_call.1} parent=1 // pred_check_branch
      %24 = sbr.rel (0) target = $region9
    $region8: #{tpu_custom_call.1} parent=1 // pred_region
      %26 = vsyncadd [#allocation8], 0
      %s27 = sshll.u32 %s1, 4
      %s28 = int_to_ptr.hbm [resolvable:$true] %s27
      %s29 = sshll.u32 [#allocation7], 4
      %s30 = int_to_ptr.vmem [resolvable:$true] %s29
      %35 = dma.hbm_to_vmem [thread:$0]  %s28, 3840, %s30, [#allocation8], 128, 128, 8
    $region9: #{tpu_custom_call.1} parent=1 // pred_fallthru
      _
    // Predicated region
    $region10: #{tpu_custom_call.1} parent=1 // pred_check
      _
    $region11: #{tpu_custom_call.1} parent=1 // pred_check_branch
      %37 = sbr.rel (0) target = $region13
    $region12: #{tpu_custom_call.1} parent=1 // pred_region
      %39 = dma.done [#allocation5], 3072
    $region13: #{tpu_custom_call.1} parent=1 // pred_fallthru
      _
    // Predicated region
    $region14: #{tpu_custom_call.1} parent=1 // pred_check
      _
    $region15: #{tpu_custom_call.1} parent=1 // pred_check_branch
      %41 = sbr.rel (0) target = $region17
    $region16: #{tpu_custom_call.1} parent=1 // pred_region
      %43 = dma.done [#allocation8], 3840
    $region17: #{tpu_custom_call.1} parent=1 // pred_fallthru
      _
    %v45 = vld [vmem:[#allocation4] sm:$0xff]
    %v46 = vld [vmem:[#allocation4 + $0x8] sm:$0xff]
    %v47 = vld [vmem:[#allocation4 + $0x10] sm:$0xff]
    %v48 = vld [vmem:[#allocation4 + $0x18] sm:$0xff]
    %v49 = vld [vmem:[#allocation4 + $0x20] sm:$0xff]
    %v50 = vld [vmem:[#allocation4 + $0x28] sm:$0xff]
    %v51 = vld [vmem:[#allocation4 + $0x30] sm:$0xff]
    %v52 = vld [vmem:[#allocation4 + $0x38] sm:$0xff]
    %v53 = vld [vmem:[#allocation4 + $0x40] sm:$0xff]
    %v54 = vld [vmem:[#allocation4 + $0x48] sm:$0xff]
    %v55 = vld [vmem:[#allocation4 + $0x50] sm:$0xff]
    %v56 = vld [vmem:[#allocation4 + $0x58] sm:$0xff]
    %v57 = vld [vmem:[#allocation4 + $0x60] sm:$0xff]
    %v58 = vld [vmem:[#allocation4 + $0x68] sm:$0xff]
    %v59 = vld [vmem:[#allocation4 + $0x70] sm:$0xff]
    %v60 = vld [vmem:[#allocation4 + $0x78] sm:$0xff]
    %v61 = vld [vmem:[#allocation4 + $0x80] sm:$0xff]
    %v62 = vld [vmem:[#allocation4 + $0x88] sm:$0xff]
    %v63 = vld [vmem:[#allocation4 + $0x90] sm:$0xff]
    %v64 = vld [vmem:[#allocation4 + $0x98] sm:$0xff]
    %v65 = vld [vmem:[#allocation4 + $0xa0] sm:$0xff]
    %v66 = vld [vmem:[#allocation4 + $0xa8] sm:$0xff]
    %v67 = vld [vmem:[#allocation4 + $0xb0] sm:$0xff]
    %v68 = vld [vmem:[#allocation4 + $0xb8] sm:$0xff]
    %v69 = vld [vmem:[#allocation7] sm:$0xff]
    %v70 = vld [vmem:[#allocation7 + $0x8] sm:$0xf]
    %v71 = vld [vmem:[#allocation7 + $0x10] sm:$0x1]
    %v72 = vld [vmem:[#allocation7 + $0x18] sm:$0xf]
    %v73 = vld [vmem:[#allocation7 + $0x20] sm:$0x3]
    %v74 = vld [vmem:[#allocation7 + $0x28] sm:$0xff]
    %v75 = vld [vmem:[#allocation7 + $0x30] sm:$0xff]
    %v76 = vld [vmem:[#allocation7 + $0x38] sm:$0x1]
    %v77 = vld [vmem:[#allocation7 + $0x40] sm:$0x1]
    %v78 = vld [vmem:[#allocation7 + $0x48] sm:$0x1]
    %v79 = vpack.c.bf16 %v46, %v45
    %v80 = vpack.c.bf16 %v70, %v69
    %v81 = vperm.slane %v71, 0
    %vm82 = vcmask 97280
    %v84 = vsel %vm82, %v79, 0
    %vm86 = vcmask 1045504
    %v88 = vsel %vm86, %v80, 0
    %90 = vmatpush.bf16.msra.mxu0 0
    %91 = vmatpush.bf16.msra.mxu0 0
    %92 = vmatpush.bf16.msra.mxu0 0
    %93 = vmatpush.bf16.msra.mxu0 0
    %94 = vmatpush.bf16.msra.mxu0 0
    %95 = vmatpush.bf16.msra.mxu0 0
    %96 = vmatpush.bf16.msra.mxu0 0
    %97 = vmatpush.bf16.msra.mxu0 %v88
    %98 = vmatmul.bf16.gmra.mxu0 %v84
    %v99 = vpop.f32.mrf.mxu0
    %v100 = vadd.f32 %v81, %v99
    %v101 = vpop.f32.mrf.mxu0
    %v102 = vadd.f32 %v81, %v101
    %103 = vdwg.mxu0
    %v104 = vpack.c.bf16 %v64, %v63
    %v105 = vpack.c.bf16 %v66, %v65
    %v106 = vpack.c.bf16 %v68, %v67
    %v107 = vpack.c.bf16 %v72, %v72
    %vm108 = vcmask 31744
    %v110 = vsel %vm108, %v104, 0
    %v113 = vsel %vm108, %v105, 0
    %v116 = vsel %vm108, %v106, 0
    %vm118 = vcmask 1041408
    %v120 = vsel %vm118, %v107, 0
    %122 = vmatpush.bf16.msra.mxu0 0
    %123 = vmatpush.bf16.msra.mxu0 0
    %124 = vmatpush.bf16.msra.mxu0 0
    %125 = vmatpush.bf16.msra.mxu0 0
    %126 = vmatpush.bf16.msra.mxu0 0
    %127 = vmatpush.bf16.msra.mxu0 0
    %128 = vmatpush.bf16.msra.mxu0 0
    %129 = vmatpush.bf16.msra.mxu0 %v120
    %130 = vmatmul.bf16.gmra.mxu0 %v110
    %v131 = vpop.f32.mrf.mxu0
    %v132 = vadd.f32 0.0, %v131
    %v133 = vpop.f32.mrf.mxu0
    %v134 = vadd.f32 0.0, %v133
    %135 = vmatmul.bf16.gmra.mxu0 %v113
    %v136 = vpop.f32.mrf.mxu0
    %v137 = vadd.f32 0.0, %v136
    %v138 = vpop.f32.mrf.mxu0
    %v139 = vadd.f32 0.0, %v138
    %140 = vmatmul.bf16.gmra.mxu0 %v116
    %v141 = vpop.f32.mrf.mxu0
    %v142 = vadd.f32 0.0, %v141
    %v143 = vpop.f32.mrf.mxu0
    %v144 = vadd.f32 0.0, %v143
    %145 = vdwg.mxu0
    %v146 = vpack.c.bf16 %v52, %v51
    %v147 = vpack.c.bf16 %v54, %v53
    %v148 = vpack.c.bf16 %v56, %v55
    %v149 = vpack.c.bf16 %v102, %v100
    %vm150 = vcmask 130048
    %v152 = vsel %vm150, %v146, 0
    %v155 = vsel %vm150, %v147, 0
    %v158 = vsel %vm150, %v148, 0
    %160 = vmatpush.bf16.msra.mxu0 0
    %161 = vmatpush.bf16.msra.mxu0 0
    %162 = vmatpush.bf16.msra.mxu0 0
    %163 = vmatpush.bf16.msra.mxu0 0
    %164 = vmatpush.bf16.msra.mxu0 0
    %165 = vmatpush.bf16.msra.mxu0 0
    %166 = vmatpush.bf16.msra.mxu0 0
    %167 = vmatpush.bf16.msra.mxu0 %v149
    %168 = vmatmul.bf16.gmra.mxu0 %v152
    %v169 = vpop.f32.mrf.mxu0
    %v170 = vadd.f32 0.0, %v169
    %v171 = vpop.f32.mrf.mxu0
    %v172 = vadd.f32 0.0, %v171
    %173 = vmatmul.bf16.gmra.mxu0 %v155
    %v174 = vpop.f32.mrf.mxu0
    %v175 = vadd.f32 0.0, %v174
    %v176 = vpop.f32.mrf.mxu0
    %v177 = vadd.f32 0.0, %v176
    %178 = vmatmul.bf16.gmra.mxu0 %v158
    %v179 = vpop.f32.mrf.mxu0
    %v180 = vadd.f32 0.0, %v179
    %v181 = vpop.f32.mrf.mxu0
    %v182 = vadd.f32 0.0, %v181
    %183 = vdwg.mxu0
    %v184 = vmul.f32 %v170, %v132
    %v185 = vmul.f32 %v172, %v134
    %v186 = vmul.f32 %v175, %v137
    %v187 = vmul.f32 %v177, %v139
    %v188 = vmul.f32 %v180, %v142
    %v189 = vmul.f32 %v182, %v144
    %vm190 = vcmask 64512
    %v191 = vsel %vm190, %v184, 0.0
    %192 = vadd.xlane.f32.xlu0 %v191
    %v193 = vpop.xlane.xlu0 %192
    %v194 = vsel %vm190, %v185, 0.0
    %195 = vadd.xlane.f32.xlu0 %v194
    %v196 = vpop.xlane.xlu0 %195
    %v197 = vsel %vm190, %v186, 0.0
    %198 = vadd.xlane.f32.xlu0 %v197
    %v199 = vpop.xlane.xlu0 %198
    %v200 = vsel %vm190, %v187, 0.0
    %201 = vadd.xlane.f32.xlu0 %v200
    %v202 = vpop.xlane.xlu0 %201
    %v203 = vsel %vm190, %v188, 0.0
    %204 = vadd.xlane.f32.xlu0 %v203
    %v205 = vpop.xlane.xlu0 %204
    %v206 = vsel %vm190, %v189, 0.0
    %207 = vadd.xlane.f32.xlu0 %v206
    %v208 = vpop.xlane.xlu0 %207
    %v209 = vmul.f32 %v193, %v57
    %v210 = vmul.f32 %v196, %v58
    %v211 = vmul.f32 %v199, %v59
    %v212 = vmul.f32 %v202, %v60
    %v213 = vmul.f32 %v205, %v61
    %v214 = vmul.f32 %v208, %v62
    %v215 = vpack.c.bf16 %v50, %v49
    %v216 = vpack.c.bf16 %v210, %v209
    %v217 = vpack.c.bf16 %v212, %v211
    %v218 = vpack.c.bf16 %v214, %v213
    %vm219 = vcmask 392192
    %v221 = vsel %vm219, %v215, 0
    %223 = vmatpush.bf16.msra.mxu0 0
    %224 = vmatpush.bf16.msra.mxu0 0
    %225 = vmatpush.bf16.msra.mxu0 0
    %226 = vmatpush.bf16.msra.mxu0 0
    %227 = vmatpush.bf16.msra.mxu0 0
    %228 = vmatpush.bf16.msra.mxu0 %v218
    %229 = vmatpush.bf16.msra.mxu0 %v217
    %230 = vmatpush.bf16.msra.mxu0 %v216
    %231 = vmatmul.bf16.gmra.mxu0 %v221
    %v232 = vpop.f32.mrf.mxu0
    %v233 = vadd.f32 0.0, %v232
    %v234 = vpop.f32.mrf.mxu0
    %v235 = vadd.f32 0.0, %v234
    %236 = vdwg.mxu0
    %238 = vrot.lane.b32.xlu0 %v149, 112
    %v239 = vpop.permute.xlu0 %238
    %v241 = vsel %vm190, %v149, 0
    %v244 = vsel %vm190, %v239, 0
    %246 = vmatpush.bf16.xpose.msra.mxu0 0
    %247 = vmatpush.bf16.xpose.msra.mxu0 0
    %248 = vmatpush.bf16.xpose.msra.mxu0 0
    %249 = vmatpush.bf16.xpose.msra.mxu0 0
    %250 = vmatpush.bf16.xpose.msra.mxu0 0
    %251 = vmatpush.bf16.xpose.msra.mxu0 0
    %252 = vmatpush.bf16.xpose.msra.mxu0 0
    %253 = vmatpush.bf16.xpose.msra.mxu0 %v244
    %254 = vmatmul.bf16.gmra.mxu0 %v241
    %v255 = vpop.f32.mrf.mxu0
    %v256 = vadd.f32 %v233, %v255
    %v257 = vpop.f32.mrf.mxu0
    %v258 = vadd.f32 %v235, %v257
    %259 = vdwg.mxu0
    %v260 = vmul.f32 %v256, 0.35355338
    %v261 = vmul.f32 %v258, 0.35355338
    %vm262 = vcmp.gt.f32.partialorder %v47, 0.0
    %vm263 = vcmp.gt.f32.partialorder %v48, 0.0
    %v264 = vsel %vm262, %v260, -1e+30
    %v265 = vsel %vm263, %v261, -1e+30
    %v266 = vsel %vm150, %v264, -inf
    %267 = vmax.xlane.f32.xlu0 %v266
    %v268 = vpop.xlane.xlu0 %267
    %v269 = vsel %vm150, %v265, -inf
    %270 = vmax.xlane.f32.xlu0 %v269
    %v271 = vpop.xlane.xlu0 %270
    %v272 = vsub.f32 %v264, %v268
    %v273 = vsub.f32 %v265, %v271
    %v274 = vmul.f32 %v272, 1.442695
    %v275 = vpow.pop %v274
    %v276 = vmul.f32 %v273, 1.442695
    %v277 = vpow.pop %v276
    %v278 = vmul.f32 %v275, %v47
    %v279 = vmul.f32 %v277, %v48
    %v280 = vsel %vm150, %v278, 0.0
    %281 = vadd.xlane.f32.xlu0 %v280
    %v282 = vpop.xlane.xlu0 %281
    %v283 = vsel %vm150, %v279, 0.0
    %284 = vadd.xlane.f32.xlu0 %v283
    %v285 = vpop.xlane.xlu0 %284
    %vm286 = vcmp.eq.f32.partialorder %v282, 0.0
    %vm287 = vcmp.eq.f32.partialorder %v285, 0.0
    %v288 = vsel %vm286, 1.0, %v282
    %v289 = vsel %vm287, 1.0, %v285
    %v290 = vrcp.pop %v288
    %v291 = vrcp.pop %v289
    %v292 = vmul.f32 %v278, %v290
    %v293 = vmul.f32 %v279, %v291
    %v294 = vpack.c.bf16 %v293, %v292
    %295 = vmatpush.bf16.msra.mxu0 0
    %296 = vmatpush.bf16.msra.mxu0 0
    %297 = vmatpush.bf16.msra.mxu0 0
    %298 = vmatpush.bf16.msra.mxu0 0
    %299 = vmatpush.bf16.msra.mxu0 0
    %300 = vmatpush.bf16.msra.mxu0 0
    %301 = vmatpush.bf16.msra.mxu0 0
    %302 = vmatpush.bf16.msra.mxu0 %v294
    %303 = vmatmul.bf16.gmra.mxu0 %v152
    %v304 = vpop.f32.mrf.mxu0
    %v305 = vadd.f32 0.0, %v304
    %v306 = vpop.f32.mrf.mxu0
    %v307 = vadd.f32 0.0, %v306
    %308 = vmatmul.bf16.gmra.mxu0 %v155
    %v309 = vpop.f32.mrf.mxu0
    %v310 = vadd.f32 0.0, %v309
    %v311 = vpop.f32.mrf.mxu0
    %v312 = vadd.f32 0.0, %v311
    %313 = vmatmul.bf16.gmra.mxu0 %v158
    %v314 = vpop.f32.mrf.mxu0
    %v315 = vadd.f32 0.0, %v314
    %v316 = vpop.f32.mrf.mxu0
    %v317 = vadd.f32 0.0, %v316
    %318 = vdwg.mxu0
    %v319 = vmul.f32 %v305, %v57
    %v320 = vmul.f32 %v307, %v58
    %v321 = vmul.f32 %v310, %v59
    %v322 = vmul.f32 %v312, %v60
    %v323 = vmul.f32 %v315, %v61
    %v324 = vmul.f32 %v317, %v62
    %v325 = vsel %vm150, %v319, 0.0
    %326 = vadd.xlane.f32.xlu0 %v325
    %v327 = vpop.xlane.xlu0 %326
    %v328 = vsel %vm150, %v320, 0.0
    %329 = vadd.xlane.f32.xlu0 %v328
    %v330 = vpop.xlane.xlu0 %329
    %v331 = vsel %vm150, %v321, 0.0
    %332 = vadd.xlane.f32.xlu0 %v331
    %v333 = vpop.xlane.xlu0 %332
    %v334 = vsel %vm150, %v322, 0.0
    %335 = vadd.xlane.f32.xlu0 %v334
    %v336 = vpop.xlane.xlu0 %335
    %v337 = vsel %vm150, %v323, 0.0
    %338 = vadd.xlane.f32.xlu0 %v337
    %v339 = vpop.xlane.xlu0 %338
    %v340 = vsel %vm150, %v324, 0.0
    %341 = vadd.xlane.f32.xlu0 %v340
    %v342 = vpop.xlane.xlu0 %341
    %343 = vrot.lane.b32.xlu0 %v149, 96
    %v344 = vpop.permute.xlu0 %343
    %v347 = vsel %vm150, %v294, 0
    %349 = vmatpush.bf16.msra.mxu0 0
    %350 = vmatpush.bf16.msra.mxu0 0
    %351 = vmatpush.bf16.msra.mxu0 0
    %352 = vmatpush.bf16.msra.mxu0 0
    %353 = vmatpush.bf16.msra.mxu0 0
    %354 = vmatpush.bf16.msra.mxu0 0
    %355 = vmatpush.bf16.msra.mxu0 0
    %356 = vmatpush.bf16.msra.mxu0 %v344
    %357 = vmatmul.bf16.gmra.mxu0 %v347
    %v358 = vpop.f32.mrf.mxu0
    %v359 = vadd.f32 0.0, %v358
    %v360 = vpop.f32.mrf.mxu0
    %v361 = vadd.f32 0.0, %v360
    %362 = vdwg.mxu0
    %363 = vst.msk [vmem:[#allocation2] sm:$0xff] %vm190, %v359
    %364 = vst.msk [vmem:[#allocation2 + $0x8] sm:$0xff] %vm190, %v361
    %v365 = vmul.f32 %v327, %v132
    %v366 = vmul.f32 %v330, %v134
    %v367 = vmul.f32 %v333, %v137
    %v368 = vmul.f32 %v336, %v139
    %v369 = vmul.f32 %v339, %v142
    %v370 = vmul.f32 %v342, %v144
    %371 = vst.msk [vmem:[#allocation3] sm:$0xff] %vm190, %v365
    %372 = vst.msk [vmem:[#allocation3 + $0x8] sm:$0xff] %vm190, %v366
    %373 = vst.msk [vmem:[#allocation3 + $0x10] sm:$0xff] %vm190, %v367
    %374 = vst.msk [vmem:[#allocation3 + $0x18] sm:$0xff] %vm190, %v368
    %375 = vst.msk [vmem:[#allocation3 + $0x20] sm:$0xff] %vm190, %v369
    %376 = vst.msk [vmem:[#allocation3 + $0x28] sm:$0xff] %vm190, %v370
    %383 = vrot.lane.b32.xlu0 %v184, 120
    %v384 = vpop.permute.xlu0 %383
    %385 = vrot.lane.b32.xlu0 %v185, 120
    %v386 = vpop.permute.xlu0 %385
    %387 = vrot.lane.b32.xlu0 %v186, 120
    %v388 = vpop.permute.xlu0 %387
    %389 = vrot.lane.b32.xlu0 %v187, 120
    %v390 = vpop.permute.xlu0 %389
    %391 = vrot.lane.b32.xlu0 %v188, 120
    %v392 = vpop.permute.xlu0 %391
    %393 = vrot.lane.b32.xlu0 %v189, 120
    %v394 = vpop.permute.xlu0 %393
    %v401 = vsel %vm190, %v384, 0.0
    %402 = vadd.xlane.f32.xlu0 %v401
    %v403 = vpop.xlane.xlu0 %402
    %v404 = vsel %vm190, %v386, 0.0
    %405 = vadd.xlane.f32.xlu0 %v404
    %v406 = vpop.xlane.xlu0 %405
    %v407 = vsel %vm190, %v388, 0.0
    %408 = vadd.xlane.f32.xlu0 %v407
    %v409 = vpop.xlane.xlu0 %408
    %v410 = vsel %vm190, %v390, 0.0
    %411 = vadd.xlane.f32.xlu0 %v410
    %v412 = vpop.xlane.xlu0 %411
    %v413 = vsel %vm190, %v392, 0.0
    %414 = vadd.xlane.f32.xlu0 %v413
    %v415 = vpop.xlane.xlu0 %414
    %v416 = vsel %vm190, %v394, 0.0
    %417 = vadd.xlane.f32.xlu0 %v416
    %v418 = vpop.xlane.xlu0 %417
    %v419 = vmul.f32 %v403, %v57
    %v420 = vmul.f32 %v406, %v58
    %v421 = vmul.f32 %v409, %v59
    %v422 = vmul.f32 %v412, %v60
    %v423 = vmul.f32 %v415, %v61
    %v424 = vmul.f32 %v418, %v62
    %v425 = vpack.c.bf16 %v420, %v419
    %v426 = vpack.c.bf16 %v422, %v421
    %v427 = vpack.c.bf16 %v424, %v423
    %428 = vmatpush.bf16.msra.mxu0 0
    %429 = vmatpush.bf16.msra.mxu0 0
    %430 = vmatpush.bf16.msra.mxu0 0
    %431 = vmatpush.bf16.msra.mxu0 0
    %432 = vmatpush.bf16.msra.mxu0 0
    %433 = vmatpush.bf16.msra.mxu0 %v427
    %434 = vmatpush.bf16.msra.mxu0 %v426
    %435 = vmatpush.bf16.msra.mxu0 %v425
    %436 = vmatmul.bf16.gmra.mxu0 %v221
    %v437 = vpop.f32.mrf.mxu0
    %v438 = vadd.f32 0.0, %v437
    %v439 = vpop.f32.mrf.mxu0
    %v440 = vadd.f32 0.0, %v439
    %441 = vdwg.mxu0
    %442 = vrot.lane.b32.xlu0 %v149, 120
    %v443 = vpop.permute.xlu0 %442
    %444 = vrot.lane.b32.xlu0 %v149, 104
    %v445 = vpop.permute.xlu0 %444
    %v447 = vsel %vm190, %v443, 0
    %v450 = vsel %vm190, %v445, 0
    %452 = vmatpush.bf16.xpose.msra.mxu0 0
    %453 = vmatpush.bf16.xpose.msra.mxu0 0
    %454 = vmatpush.bf16.xpose.msra.mxu0 0
    %455 = vmatpush.bf16.xpose.msra.mxu0 0
    %456 = vmatpush.bf16.xpose.msra.mxu0 0
    %457 = vmatpush.bf16.xpose.msra.mxu0 0
    %458 = vmatpush.bf16.xpose.msra.mxu0 0
    %459 = vmatpush.bf16.xpose.msra.mxu0 %v450
    %460 = vmatmul.bf16.gmra.mxu0 %v447
    %v461 = vpop.f32.mrf.mxu0
    %v462 = vadd.f32 %v438, %v461
    %v463 = vpop.f32.mrf.mxu0
    %v464 = vadd.f32 %v440, %v463
    %465 = vdwg.mxu0
    %v466 = vmul.f32 %v462, 0.35355338
    %v467 = vmul.f32 %v464, 0.35355338
    %v468 = vsel %vm262, %v466, -1e+30
    %v469 = vsel %vm263, %v467, -1e+30
    %v470 = vsel %vm150, %v468, -inf
    %471 = vmax.xlane.f32.xlu0 %v470
    %v472 = vpop.xlane.xlu0 %471
    %v473 = vsel %vm150, %v469, -inf
    %474 = vmax.xlane.f32.xlu0 %v473
    %v475 = vpop.xlane.xlu0 %474
    %v476 = vsub.f32 %v468, %v472
    %v477 = vsub.f32 %v469, %v475
    %v478 = vmul.f32 %v476, 1.442695
    %v479 = vpow.pop %v478
    %v480 = vmul.f32 %v477, 1.442695
    %v481 = vpow.pop %v480
    %v482 = vmul.f32 %v479, %v47
    %v483 = vmul.f32 %v481, %v48
    %v484 = vsel %vm150, %v482, 0.0
    %485 = vadd.xlane.f32.xlu0 %v484
    %v486 = vpop.xlane.xlu0 %485
    %v487 = vsel %vm150, %v483, 0.0
    %488 = vadd.xlane.f32.xlu0 %v487
    %v489 = vpop.xlane.xlu0 %488
    %vm490 = vcmp.eq.f32.partialorder %v486, 0.0
    %vm491 = vcmp.eq.f32.partialorder %v489, 0.0
    %v492 = vsel %vm490, 1.0, %v486
    %v493 = vsel %vm491, 1.0, %v489
    %v494 = vrcp.pop %v492
    %v495 = vrcp.pop %v493
    %v496 = vmul.f32 %v482, %v494
    %v497 = vmul.f32 %v483, %v495
    %v498 = vpack.c.bf16 %v497, %v496
    %499 = vmatpush.bf16.msra.mxu0 0
    %500 = vmatpush.bf16.msra.mxu0 0
    %501 = vmatpush.bf16.msra.mxu0 0
    %502 = vmatpush.bf16.msra.mxu0 0
    %503 = vmatpush.bf16.msra.mxu0 0
    %504 = vmatpush.bf16.msra.mxu0 0
    %505 = vmatpush.bf16.msra.mxu0 0
    %506 = vmatpush.bf16.msra.mxu0 %v498
    %507 = vmatmul.bf16.gmra.mxu0 %v152
    %v508 = vpop.f32.mrf.mxu0
    %v509 = vadd.f32 0.0, %v508
    %v510 = vpop.f32.mrf.mxu0
    %v511 = vadd.f32 0.0, %v510
    %512 = vmatmul.bf16.gmra.mxu0 %v155
    %v513 = vpop.f32.mrf.mxu0
    %v514 = vadd.f32 0.0, %v513
    %v515 = vpop.f32.mrf.mxu0
    %v516 = vadd.f32 0.0, %v515
    %517 = vmatmul.bf16.gmra.mxu0 %v158
    %v518 = vpop.f32.mrf.mxu0
    %v519 = vadd.f32 0.0, %v518
    %v520 = vpop.f32.mrf.mxu0
    %v521 = vadd.f32 0.0, %v520
    %522 = vdwg.mxu0
    %v523 = vmul.f32 %v509, %v57
    %v524 = vmul.f32 %v511, %v58
    %v525 = vmul.f32 %v514, %v59
    %v526 = vmul.f32 %v516, %v60
    %v527 = vmul.f32 %v519, %v61
    %v528 = vmul.f32 %v521, %v62
    %v529 = vsel %vm150, %v523, 0.0
    %530 = vadd.xlane.f32.xlu0 %v529
    %v531 = vpop.xlane.xlu0 %530
    %v532 = vsel %vm150, %v524, 0.0
    %533 = vadd.xlane.f32.xlu0 %v532
    %v534 = vpop.xlane.xlu0 %533
    %v535 = vsel %vm150, %v525, 0.0
    %536 = vadd.xlane.f32.xlu0 %v535
    %v537 = vpop.xlane.xlu0 %536
    %v538 = vsel %vm150, %v526, 0.0
    %539 = vadd.xlane.f32.xlu0 %v538
    %v540 = vpop.xlane.xlu0 %539
    %v541 = vsel %vm150, %v527, 0.0
    %542 = vadd.xlane.f32.xlu0 %v541
    %v543 = vpop.xlane.xlu0 %542
    %v544 = vsel %vm150, %v528, 0.0
    %545 = vadd.xlane.f32.xlu0 %v544
    %v546 = vpop.xlane.xlu0 %545
    %547 = vrot.lane.b32.xlu0 %v149, 88
    %v548 = vpop.permute.xlu0 %547
    %v551 = vsel %vm150, %v498, 0
    %553 = vmatpush.bf16.msra.mxu0 0
    %554 = vmatpush.bf16.msra.mxu0 0
    %555 = vmatpush.bf16.msra.mxu0 0
    %556 = vmatpush.bf16.msra.mxu0 0
    %557 = vmatpush.bf16.msra.mxu0 0
    %558 = vmatpush.bf16.msra.mxu0 0
    %559 = vmatpush.bf16.msra.mxu0 0
    %560 = vmatpush.bf16.msra.mxu0 %v548
    %561 = vmatmul.bf16.gmra.mxu0 %v551
    %v562 = vpop.f32.mrf.mxu0
    %v563 = vadd.f32 0.0, %v562
    %v564 = vpop.f32.mrf.mxu0
    %v565 = vadd.f32 0.0, %v564
    %566 = vdwg.mxu0
    %569 = vrot.lane.b32.xlu0 %v563, 8
    %v570 = vpop.permute.xlu0 %569
    %571 = vrot.lane.b32.xlu0 %v565, 8
    %v572 = vpop.permute.xlu0 %571
    %vm575 = vcmask 130112
    %576 = vst.msk [vmem:[#allocation2] sm:$0xff] %vm575, %v570
    %577 = vst.msk [vmem:[#allocation2 + $0x8] sm:$0xff] %vm575, %v572
    %v578 = vmul.f32 %v531, %v132
    %v579 = vmul.f32 %v534, %v134
    %v580 = vmul.f32 %v537, %v137
    %v581 = vmul.f32 %v540, %v139
    %v582 = vmul.f32 %v543, %v142
    %v583 = vmul.f32 %v546, %v144
    %584 = vst.msk [vmem:[#allocation3] sm:$0xff] %vm575, %v578
    %585 = vst.msk [vmem:[#allocation3 + $0x8] sm:$0xff] %vm575, %v579
    %586 = vst.msk [vmem:[#allocation3 + $0x10] sm:$0xff] %vm575, %v580
    %587 = vst.msk [vmem:[#allocation3 + $0x18] sm:$0xff] %vm575, %v581
    %588 = vst.msk [vmem:[#allocation3 + $0x20] sm:$0xff] %vm575, %v582
    %589 = vst.msk [vmem:[#allocation3 + $0x28] sm:$0xff] %vm575, %v583
    %v590 = vld [vmem:[#allocation2] sm:$0xff]
    %v591 = vld [vmem:[#allocation2 + $0x8] sm:$0xff]
    %v592 = vld [vmem:[#allocation3] sm:$0xff]
    %v593 = vld [vmem:[#allocation3 + $0x8] sm:$0xff]
    %v594 = vld [vmem:[#allocation3 + $0x10] sm:$0xff]
    %v595 = vld [vmem:[#allocation3 + $0x18] sm:$0xff]
    %v596 = vld [vmem:[#allocation3 + $0x20] sm:$0xff]
    %v597 = vld [vmem:[#allocation3 + $0x28] sm:$0xff]
    %v598 = vpack.c.bf16 %v593, %v592
    %v599 = vpack.c.bf16 %v595, %v594
    %v600 = vpack.c.bf16 %v597, %v596
    %601 = vmatpush.bf16.msra.mxu0 0
    %602 = vmatpush.bf16.msra.mxu0 0
    %603 = vmatpush.bf16.msra.mxu0 0
    %604 = vmatpush.bf16.msra.mxu0 0
    %605 = vmatpush.bf16.msra.mxu0 0
    %606 = vmatpush.bf16.msra.mxu0 %v600
    %607 = vmatpush.bf16.msra.mxu0 %v599
    %608 = vmatpush.bf16.msra.mxu0 %v598
    %609 = vmatmul.bf16.gmra.mxu0 %v221
    %v610 = vpop.f32.mrf.mxu0
    %v611 = vadd.f32 0.0, %v610
    %v612 = vpop.f32.mrf.mxu0
    %v613 = vadd.f32 0.0, %v612
    %614 = vdwg.mxu0
    %v615 = vadd.f32 %v590, %v611
    %v616 = vadd.f32 %v591, %v613
    %v617 = vperm.slane %v73, 0
    %v618 = vmul.f32 %v615, %v617
    %v619 = vmul.f32 %v616, %v617
    %v620 = vperm.slane %v73, 1
    %622 = vrot.lane.b32.xlu0 %v620, 48
    %v623 = vpop.permute.xlu0 %622
    %v625 = vmul.f32 %v100, %v623
    %v626 = vmul.f32 %v102, %v623
    %629 = vrot.lane.b32.xlu0 %v625, 80
    %v630 = vpop.permute.xlu0 %629
    %631 = vrot.lane.b32.xlu0 %v626, 80
    %v632 = vpop.permute.xlu0 %631
    %v635 = vadd.f32 %v618, %v630
    %v636 = vadd.f32 %v619, %v632
    %v637 = vsel %vm150, %v635, 0.0
    %638 = vadd.xlane.f32.xlu0 %v637
    %v639 = vpop.xlane.xlu0 %638
    %v640 = vsel %vm150, %v636, 0.0
    %641 = vadd.xlane.f32.xlu0 %v640
    %v642 = vpop.xlane.xlu0 %641
    %v643 = vmul.f32 %v639, 0.5
    %v644 = vmul.f32 %v642, 0.5
    %v645 = vtanh.pop %v643
    %v646 = vtanh.pop %v644
    %v647 = vadd.f32 %v645, 1.0
    %v648 = vadd.f32 %v646, 1.0
    %v649 = vmul.f32 %v647, 0.5
    %v650 = vmul.f32 %v648, 0.5
    %v651 = vmul.f32 %v649, %v100
    %v652 = vmul.f32 %v650, %v102
    %v653 = vsub.f32 1.0, %v649
    %v654 = vsub.f32 1.0, %v650
    %v655 = vmul.f32 %v653, %v615
    %v656 = vmul.f32 %v654, %v616
    %659 = vrot.lane.b32.xlu0 %v655, 48
    %v660 = vpop.permute.xlu0 %659
    %661 = vrot.lane.b32.xlu0 %v656, 48
    %v662 = vpop.permute.xlu0 %661
    %v665 = vadd.f32 %v651, %v660
    %v666 = vadd.f32 %v652, %v662
    %v667 = vpack.c.bf16 %v666, %v665
    %v668 = vpack.c.bf16 %v75, %v74
    %v669 = vperm.slane %v76, 0
    %671 = vrot.lane.b32.xlu0 %v667, 80
    %v672 = vpop.permute.xlu0 %671
    %v674 = vsel %vm150, %v672, 0
    %676 = vmatpush.bf16.msra.mxu0 0
    %677 = vmatpush.bf16.msra.mxu0 0
    %678 = vmatpush.bf16.msra.mxu0 0
    %679 = vmatpush.bf16.msra.mxu0 0
    %680 = vmatpush.bf16.msra.mxu0 0
    %681 = vmatpush.bf16.msra.mxu0 0
    %682 = vmatpush.bf16.msra.mxu0 0
    %683 = vmatpush.bf16.msra.mxu0 %v668
    %684 = vmatmul.bf16.gmra.mxu0 %v674
    %v685 = vpop.f32.mrf.mxu0
    %v686 = vadd.f32 %v669, %v685
    %v687 = vpop.f32.mrf.mxu0
    %v688 = vadd.f32 %v669, %v687
    %689 = vdwg.mxu0
    %v690 = vmax.f32 %v686, 0.0
    %v691 = vmax.f32 %v688, 0.0
    %v692 = vsel %vm190, %v690, 0.0
    %v693 = vsel %vm190, %v691, 0.0
    %v694 = vadd.f32 %v692, %v693
    %v695 = vrot.slane %v694, 4
    %v696 = vadd.f32 %v694, %v695
    %v697 = vrot.slane %v696, 2
    %v698 = vadd.f32 %v696, %v697
    %v699 = vrot.slane %v698, 1
    %v700 = vadd.f32 %v698, %v699
    %v701 = vrcp.pop 16.0
    %v702 = vmul.f32 16.0, %v701
    %v703 = vsub.f32 1.0, %v702
    %v704 = vmul.f32 %v701, %v703
    %v705 = vadd.f32 %v701, %v704
    %vm706 = vweird.f32 %v701
    %v707 = vsel %vm706, %v701, %v705
    %v708 = vmul.f32 %v700, %v707
    %v709 = vsub.f32 %v690, %v708
    %v710 = vsub.f32 %v691, %v708
    %v711 = vmul.f32 %v709, %v709
    %v712 = vmul.f32 %v710, %v710
    %v713 = vsel %vm190, %v711, 0.0
    %v714 = vsel %vm190, %v712, 0.0
    %v715 = vadd.f32 %v713, %v714
    %v716 = vrot.slane %v715, 4
    %v717 = vadd.f32 %v715, %v716
    %v718 = vrot.slane %v717, 2
    %v719 = vadd.f32 %v717, %v718
    %v720 = vrot.slane %v719, 1
    %v721 = vadd.f32 %v719, %v720
    %v722 = vmul.f32 %v721, %v707
    %v723 = vperm.slane %v77, 0
    %v724 = vmul.f32 %v723, %v709
    %v725 = vmul.f32 %v723, %v710
    %v726 = vadd.f32 %v722, 1e-05
    %v727 = vrsqrt.pop %v726
    %v728 = vmul.f32 %v727, %v726
    %v729 = vmul.f32 %v728, %v727
    %v730 = vmul.f32 0.5, %v729
    %v731 = vsub.f32 1.5, %v730
    %v732 = vmul.f32 %v727, %v731
    %vm733 = vweird.f32 %v726
    %vm734 = vweird.f32 %v727
    %vm735 = vmor %vm733, %vm734
    %v736 = vsel %vm735, %v727, %v732
    %v737 = vmul.f32 %v724, %v736
    %v738 = vmul.f32 %v725, %v736
    %v739 = vperm.slane %v78, 0
    %v740 = vadd.f32 %v737, %v739
    %v741 = vadd.f32 %v738, %v739
    %v742 = vld [vmem:[#allocation7 + $0x50] sm:$0xff]
    %v743 = vld [vmem:[#allocation7 + $0x58] sm:$0x1]
    %v744 = vld [vmem:[#allocation7 + $0x60] sm:$0xf]
    %v745 = vld [vmem:[#allocation7 + $0x68] sm:$0x3]
    %v746 = vld [vmem:[#allocation7 + $0x70] sm:$0xff]
    %v747 = vld [vmem:[#allocation7 + $0x78] sm:$0xff]
    %v748 = vld [vmem:[#allocation7 + $0x80] sm:$0x1]
    %v749 = vld [vmem:[#allocation7 + $0x88] sm:$0x1]
    %v750 = vld [vmem:[#allocation7 + $0x90] sm:$0x1]
    %v751 = vpack.c.bf16 %v741, %v740
    %v752 = vpack.c.bf16 %v742, %v742
    %v753 = vperm.slane %v743, 0
    %v755 = vsel %vm190, %v751, 0
    %vm757 = vcmask 1043456
    %v759 = vsel %vm757, %v752, 0
    %761 = vmatpush.bf16.msra.mxu0 0
    %762 = vmatpush.bf16.msra.mxu0 0
    %763 = vmatpush.bf16.msra.mxu0 0
    %764 = vmatpush.bf16.msra.mxu0 0
    %765 = vmatpush.bf16.msra.mxu0 0
    %766 = vmatpush.bf16.msra.mxu0 0
    %767 = vmatpush.bf16.msra.mxu0 0
    %768 = vmatpush.bf16.msra.mxu0 %v759
    %769 = vmatmul.bf16.gmra.mxu0 %v755
    %v770 = vpop.f32.mrf.mxu0
    %v771 = vadd.f32 %v753, %v770
    %v772 = vpop.f32.mrf.mxu0
    %v773 = vadd.f32 %v753, %v772
    %774 = vdwg.mxu0
    %v775 = vpack.c.bf16 %v744, %v744
    %v777 = vsel %vm118, %v775, 0
    %779 = vmatpush.bf16.msra.mxu0 0
    %780 = vmatpush.bf16.msra.mxu0 0
    %781 = vmatpush.bf16.msra.mxu0 0
    %782 = vmatpush.bf16.msra.mxu0 0
    %783 = vmatpush.bf16.msra.mxu0 0
    %784 = vmatpush.bf16.msra.mxu0 0
    %785 = vmatpush.bf16.msra.mxu0 0
    %786 = vmatpush.bf16.msra.mxu0 %v777
    %787 = vmatmul.bf16.gmra.mxu0 %v110
    %v788 = vpop.f32.mrf.mxu0
    %v789 = vadd.f32 0.0, %v788
    %v790 = vpop.f32.mrf.mxu0
    %v791 = vadd.f32 0.0, %v790
    %792 = vmatmul.bf16.gmra.mxu0 %v113
    %v793 = vpop.f32.mrf.mxu0
    %v794 = vadd.f32 0.0, %v793
    %v795 = vpop.f32.mrf.mxu0
    %v796 = vadd.f32 0.0, %v795
    %797 = vmatmul.bf16.gmra.mxu0 %v116
    %v798 = vpop.f32.mrf.mxu0
    %v799 = vadd.f32 0.0, %v798
    %v800 = vpop.f32.mrf.mxu0
    %v801 = vadd.f32 0.0, %v800
    %802 = vdwg.mxu0
    %v803 = vpack.c.bf16 %v773, %v771
    %804 = vmatpush.bf16.msra.mxu0 0
    %805 = vmatpush.bf16.msra.mxu0 0
    %806 = vmatpush.bf16.msra.mxu0 0
    %807 = vmatpush.bf16.msra.mxu0 0
    %808 = vmatpush.bf16.msra.mxu0 0
    %809 = vmatpush.bf16.msra.mxu0 0
    %810 = vmatpush.bf16.msra.mxu0 0
    %811 = vmatpush.bf16.msra.mxu0 %v803
    %812 = vmatmul.bf16.gmra.mxu0 %v152
    %v813 = vpop.f32.mrf.mxu0
    %v814 = vadd.f32 0.0, %v813
    %v815 = vpop.f32.mrf.mxu0
    %v816 = vadd.f32 0.0, %v815
    %817 = vmatmul.bf16.gmra.mxu0 %v155
    %v818 = vpop.f32.mrf.mxu0
    %v819 = vadd.f32 0.0, %v818
    %v820 = vpop.f32.mrf.mxu0
    %v821 = vadd.f32 0.0, %v820
    %822 = vmatmul.bf16.gmra.mxu0 %v158
    %v823 = vpop.f32.mrf.mxu0
    %v824 = vadd.f32 0.0, %v823
    %v825 = vpop.f32.mrf.mxu0
    %v826 = vadd.f32 0.0, %v825
    %827 = vdwg.mxu0
    %v828 = vmul.f32 %v814, %v789
    %v829 = vmul.f32 %v816, %v791
    %v830 = vmul.f32 %v819, %v794
    %v831 = vmul.f32 %v821, %v796
    %v832 = vmul.f32 %v824, %v799
    %v833 = vmul.f32 %v826, %v801
    %v834 = vsel %vm190, %v828, 0.0
    %835 = vadd.xlane.f32.xlu0 %v834
    %v836 = vpop.xlane.xlu0 %835
    %v837 = vsel %vm190, %v829, 0.0
    %838 = vadd.xlane.f32.xlu0 %v837
    %v839 = vpop.xlane.xlu0 %838
    %v840 = vsel %vm190, %v830, 0.0
    %841 = vadd.xlane.f32.xlu0 %v840
    %v842 = vpop.xlane.xlu0 %841
    %v843 = vsel %vm190, %v831, 0.0
    %844 = vadd.xlane.f32.xlu0 %v843
    %v845 = vpop.xlane.xlu0 %844
    %v846 = vsel %vm190, %v832, 0.0
    %847 = vadd.xlane.f32.xlu0 %v846
    %v848 = vpop.xlane.xlu0 %847
    %v849 = vsel %vm190, %v833, 0.0
    %850 = vadd.xlane.f32.xlu0 %v849
    %v851 = vpop.xlane.xlu0 %850
    %v852 = vmul.f32 %v836, %v57
    %v853 = vmul.f32 %v839, %v58
    %v854 = vmul.f32 %v842, %v59
    %v855 = vmul.f32 %v845, %v60
    %v856 = vmul.f32 %v848, %v61
    %v857 = vmul.f32 %v851, %v62
    %v858 = vpack.c.bf16 %v853, %v852
    %v859 = vpack.c.bf16 %v855, %v854
    %v860 = vpack.c.bf16 %v857, %v856
    %861 = vmatpush.bf16.msra.mxu0 0
    %862 = vmatpush.bf16.msra.mxu0 0
    %863 = vmatpush.bf16.msra.mxu0 0
    %864 = vmatpush.bf16.msra.mxu0 0
    %865 = vmatpush.bf16.msra.mxu0 0
    %866 = vmatpush.bf16.msra.mxu0 %v860
    %867 = vmatpush.bf16.msra.mxu0 %v859
    %868 = vmatpush.bf16.msra.mxu0 %v858
    %869 = vmatmul.bf16.gmra.mxu0 %v221
    %v870 = vpop.f32.mrf.mxu0
    %v871 = vadd.f32 0.0, %v870
    %v872 = vpop.f32.mrf.mxu0
    %v873 = vadd.f32 0.0, %v872
    %874 = vdwg.mxu0
    %876 = vrot.lane.b32.xlu0 %v803, 112
    %v877 = vpop.permute.xlu0 %876
    %v879 = vsel %vm190, %v803, 0
    %v882 = vsel %vm190, %v877, 0
    %884 = vmatpush.bf16.xpose.msra.mxu0 0
    %885 = vmatpush.bf16.xpose.msra.mxu0 0
    %886 = vmatpush.bf16.xpose.msra.mxu0 0
    %887 = vmatpush.bf16.xpose.msra.mxu0 0
    %888 = vmatpush.bf16.xpose.msra.mxu0 0
    %889 = vmatpush.bf16.xpose.msra.mxu0 0
    %890 = vmatpush.bf16.xpose.msra.mxu0 0
    %891 = vmatpush.bf16.xpose.msra.mxu0 %v882
    %892 = vmatmul.bf16.gmra.mxu0 %v879
    %v893 = vpop.f32.mrf.mxu0
    %v894 = vadd.f32 %v871, %v893
    %v895 = vpop.f32.mrf.mxu0
    %v896 = vadd.f32 %v873, %v895
    %897 = vdwg.mxu0
    %v898 = vmul.f32 %v894, 0.35355338
    %v899 = vmul.f32 %v896, 0.35355338
    %v900 = vsel %vm262, %v898, -1e+30
    %v901 = vsel %vm263, %v899, -1e+30
    %v902 = vsel %vm150, %v900, -inf
    %903 = vmax.xlane.f32.xlu0 %v902
    %v904 = vpop.xlane.xlu0 %903
    %v905 = vsel %vm150, %v901, -inf
    %906 = vmax.xlane.f32.xlu0 %v905
    %v907 = vpop.xlane.xlu0 %906
    %v908 = vsub.f32 %v900, %v904
    %v909 = vsub.f32 %v901, %v907
    %v910 = vmul.f32 %v908, 1.442695
    %v911 = vpow.pop %v910
    %v912 = vmul.f32 %v909, 1.442695
    %v913 = vpow.pop %v912
    %v914 = vmul.f32 %v911, %v47
    %v915 = vmul.f32 %v913, %v48
    %v916 = vsel %vm150, %v914, 0.0
    %917 = vadd.xlane.f32.xlu0 %v916
    %v918 = vpop.xlane.xlu0 %917
    %v919 = vsel %vm150, %v915, 0.0
    %920 = vadd.xlane.f32.xlu0 %v919
    %v921 = vpop.xlane.xlu0 %920
    %vm922 = vcmp.eq.f32.partialorder %v918, 0.0
    %vm923 = vcmp.eq.f32.partialorder %v921, 0.0
    %v924 = vsel %vm922, 1.0, %v918
    %v925 = vsel %vm923, 1.0, %v921
    %v926 = vrcp.pop %v924
    %v927 = vrcp.pop %v925
    %v928 = vmul.f32 %v914, %v926
    %v929 = vmul.f32 %v915, %v927
    %v930 = vpack.c.bf16 %v929, %v928
    %931 = vmatpush.bf16.msra.mxu0 0
    %932 = vmatpush.bf16.msra.mxu0 0
    %933 = vmatpush.bf16.msra.mxu0 0
    %934 = vmatpush.bf16.msra.mxu0 0
    %935 = vmatpush.bf16.msra.mxu0 0
    %936 = vmatpush.bf16.msra.mxu0 0
    %937 = vmatpush.bf16.msra.mxu0 0
    %938 = vmatpush.bf16.msra.mxu0 %v930
    %939 = vmatmul.bf16.gmra.mxu0 %v152
    %v940 = vpop.f32.mrf.mxu0
    %v941 = vadd.f32 0.0, %v940
    %v942 = vpop.f32.mrf.mxu0
    %v943 = vadd.f32 0.0, %v942
    %944 = vmatmul.bf16.gmra.mxu0 %v155
    %v945 = vpop.f32.mrf.mxu0
    %v946 = vadd.f32 0.0, %v945
    %v947 = vpop.f32.mrf.mxu0
    %v948 = vadd.f32 0.0, %v947
    %949 = vmatmul.bf16.gmra.mxu0 %v158
    %v950 = vpop.f32.mrf.mxu0
    %v951 = vadd.f32 0.0, %v950
    %v952 = vpop.f32.mrf.mxu0
    %v953 = vadd.f32 0.0, %v952
    %954 = vdwg.mxu0
    %v955 = vmul.f32 %v941, %v57
    %v956 = vmul.f32 %v943, %v58
    %v957 = vmul.f32 %v946, %v59
    %v958 = vmul.f32 %v948, %v60
    %v959 = vmul.f32 %v951, %v61
    %v960 = vmul.f32 %v953, %v62
    %v961 = vsel %vm150, %v955, 0.0
    %962 = vadd.xlane.f32.xlu0 %v961
    %v963 = vpop.xlane.xlu0 %962
    %v964 = vsel %vm150, %v956, 0.0
    %965 = vadd.xlane.f32.xlu0 %v964
    %v966 = vpop.xlane.xlu0 %965
    %v967 = vsel %vm150, %v957, 0.0
    %968 = vadd.xlane.f32.xlu0 %v967
    %v969 = vpop.xlane.xlu0 %968
    %v970 = vsel %vm150, %v958, 0.0
    %971 = vadd.xlane.f32.xlu0 %v970
    %v972 = vpop.xlane.xlu0 %971
    %v973 = vsel %vm150, %v959, 0.0
    %974 = vadd.xlane.f32.xlu0 %v973
    %v975 = vpop.xlane.xlu0 %974
    %v976 = vsel %vm150, %v960, 0.0
    %977 = vadd.xlane.f32.xlu0 %v976
    %v978 = vpop.xlane.xlu0 %977
    %979 = vrot.lane.b32.xlu0 %v803, 96
    %v980 = vpop.permute.xlu0 %979
    %v983 = vsel %vm150, %v930, 0
    %985 = vmatpush.bf16.msra.mxu0 0
    %986 = vmatpush.bf16.msra.mxu0 0
    %987 = vmatpush.bf16.msra.mxu0 0
    %988 = vmatpush.bf16.msra.mxu0 0
    %989 = vmatpush.bf16.msra.mxu0 0
    %990 = vmatpush.bf16.msra.mxu0 0
    %991 = vmatpush.bf16.msra.mxu0 0
    %992 = vmatpush.bf16.msra.mxu0 %v980
    %993 = vmatmul.bf16.gmra.mxu0 %v983
    %v994 = vpop.f32.mrf.mxu0
    %v995 = vadd.f32 0.0, %v994
    %v996 = vpop.f32.mrf.mxu0
    %v997 = vadd.f32 0.0, %v996
    %998 = vdwg.mxu0
    %999 = vst.msk [vmem:[#allocation2] sm:$0xff] %vm190, %v995
    %1000 = vst.msk [vmem:[#allocation2 + $0x8] sm:$0xff] %vm190, %v997
    %v1001 = vmul.f32 %v963, %v789
    %v1002 = vmul.f32 %v966, %v791
    %v1003 = vmul.f32 %v969, %v794
    %v1004 = vmul.f32 %v972, %v796
    %v1005 = vmul.f32 %v975, %v799
    %v1006 = vmul.f32 %v978, %v801
    %1007 = vst.msk [vmem:[#allocation3] sm:$0xff] %vm190, %v1001
    %1008 = vst.msk [vmem:[#allocation3 + $0x8] sm:$0xff] %vm190, %v1002
    %1009 = vst.msk [vmem:[#allocation3 + $0x10] sm:$0xff] %vm190, %v1003
    %1010 = vst.msk [vmem:[#allocation3 + $0x18] sm:$0xff] %vm190, %v1004
    %1011 = vst.msk [vmem:[#allocation3 + $0x20] sm:$0xff] %vm190, %v1005
    %1012 = vst.msk [vmem:[#allocation3 + $0x28] sm:$0xff] %vm190, %v1006
    %1019 = vrot.lane.b32.xlu0 %v828, 120
    %v1020 = vpop.permute.xlu0 %1019
    %1021 = vrot.lane.b32.xlu0 %v829, 120
    %v1022 = vpop.permute.xlu0 %1021
    %1023 = vrot.lane.b32.xlu0 %v830, 120
    %v1024 = vpop.permute.xlu0 %1023
    %1025 = vrot.lane.b32.xlu0 %v831, 120
    %v1026 = vpop.permute.xlu0 %1025
    %1027 = vrot.lane.b32.xlu0 %v832, 120
    %v1028 = vpop.permute.xlu0 %1027
    %1029 = vrot.lane.b32.xlu0 %v833, 120
    %v1030 = vpop.permute.xlu0 %1029
    %v1037 = vsel %vm190, %v1020, 0.0
    %1038 = vadd.xlane.f32.xlu0 %v1037
    %v1039 = vpop.xlane.xlu0 %1038
    %v1040 = vsel %vm190, %v1022, 0.0
    %1041 = vadd.xlane.f32.xlu0 %v1040
    %v1042 = vpop.xlane.xlu0 %1041
    %v1043 = vsel %vm190, %v1024, 0.0
    %1044 = vadd.xlane.f32.xlu0 %v1043
    %v1045 = vpop.xlane.xlu0 %1044
    %v1046 = vsel %vm190, %v1026, 0.0
    %1047 = vadd.xlane.f32.xlu0 %v1046
    %v1048 = vpop.xlane.xlu0 %1047
    %v1049 = vsel %vm190, %v1028, 0.0
    %1050 = vadd.xlane.f32.xlu0 %v1049
    %v1051 = vpop.xlane.xlu0 %1050
    %v1052 = vsel %vm190, %v1030, 0.0
    %1053 = vadd.xlane.f32.xlu0 %v1052
    %v1054 = vpop.xlane.xlu0 %1053
    %v1055 = vmul.f32 %v1039, %v57
    %v1056 = vmul.f32 %v1042, %v58
    %v1057 = vmul.f32 %v1045, %v59
    %v1058 = vmul.f32 %v1048, %v60
    %v1059 = vmul.f32 %v1051, %v61
    %v1060 = vmul.f32 %v1054, %v62
    %v1061 = vpack.c.bf16 %v1056, %v1055
    %v1062 = vpack.c.bf16 %v1058, %v1057
    %v1063 = vpack.c.bf16 %v1060, %v1059
    %1064 = vmatpush.bf16.msra.mxu0 0
    %1065 = vmatpush.bf16.msra.mxu0 0
    %1066 = vmatpush.bf16.msra.mxu0 0
    %1067 = vmatpush.bf16.msra.mxu0 0
    %1068 = vmatpush.bf16.msra.mxu0 0
    %1069 = vmatpush.bf16.msra.mxu0 %v1063
    %1070 = vmatpush.bf16.msra.mxu0 %v1062
    %1071 = vmatpush.bf16.msra.mxu0 %v1061
    %1072 = vmatmul.bf16.gmra.mxu0 %v221
    %v1073 = vpop.f32.mrf.mxu0
    %v1074 = vadd.f32 0.0, %v1073
    %v1075 = vpop.f32.mrf.mxu0
    %v1076 = vadd.f32 0.0, %v1075
    %1077 = vdwg.mxu0
    %1078 = vrot.lane.b32.xlu0 %v803, 120
    %v1079 = vpop.permute.xlu0 %1078
    %1080 = vrot.lane.b32.xlu0 %v803, 104
    %v1081 = vpop.permute.xlu0 %1080
    %v1083 = vsel %vm190, %v1079, 0
    %v1086 = vsel %vm190, %v1081, 0
    %1088 = vmatpush.bf16.xpose.msra.mxu0 0
    %1089 = vmatpush.bf16.xpose.msra.mxu0 0
    %1090 = vmatpush.bf16.xpose.msra.mxu0 0
    %1091 = vmatpush.bf16.xpose.msra.mxu0 0
    %1092 = vmatpush.bf16.xpose.msra.mxu0 0
    %1093 = vmatpush.bf16.xpose.msra.mxu0 0
    %1094 = vmatpush.bf16.xpose.msra.mxu0 0
    %1095 = vmatpush.bf16.xpose.msra.mxu0 %v1086
    %1096 = vmatmul.bf16.gmra.mxu0 %v1083
    %v1097 = vpop.f32.mrf.mxu0
    %v1098 = vadd.f32 %v1074, %v1097
    %v1099 = vpop.f32.mrf.mxu0
    %v1100 = vadd.f32 %v1076, %v1099
    %1101 = vdwg.mxu0
    %v1102 = vmul.f32 %v1098, 0.35355338
    %v1103 = vmul.f32 %v1100, 0.35355338
    %v1104 = vsel %vm262, %v1102, -1e+30
    %v1105 = vsel %vm263, %v1103, -1e+30
    %v1106 = vsel %vm150, %v1104, -inf
    %1107 = vmax.xlane.f32.xlu0 %v1106
    %v1108 = vpop.xlane.xlu0 %1107
    %v1109 = vsel %vm150, %v1105, -inf
    %1110 = vmax.xlane.f32.xlu0 %v1109
    %v1111 = vpop.xlane.xlu0 %1110
    %v1112 = vsub.f32 %v1104, %v1108
    %v1113 = vsub.f32 %v1105, %v1111
    %v1114 = vmul.f32 %v1112, 1.442695
    %v1115 = vpow.pop %v1114
    %v1116 = vmul.f32 %v1113, 1.442695
    %v1117 = vpow.pop %v1116
    %v1118 = vmul.f32 %v1115, %v47
    %v1119 = vmul.f32 %v1117, %v48
    %v1120 = vsel %vm150, %v1118, 0.0
    %1121 = vadd.xlane.f32.xlu0 %v1120
    %v1122 = vpop.xlane.xlu0 %1121
    %v1123 = vsel %vm150, %v1119, 0.0
    %1124 = vadd.xlane.f32.xlu0 %v1123
    %v1125 = vpop.xlane.xlu0 %1124
    %vm1126 = vcmp.eq.f32.partialorder %v1122, 0.0
    %vm1127 = vcmp.eq.f32.partialorder %v1125, 0.0
    %v1128 = vsel %vm1126, 1.0, %v1122
    %v1129 = vsel %vm1127, 1.0, %v1125
    %v1130 = vrcp.pop %v1128
    %v1131 = vrcp.pop %v1129
    %v1132 = vmul.f32 %v1118, %v1130
    %v1133 = vmul.f32 %v1119, %v1131
    %v1134 = vpack.c.bf16 %v1133, %v1132
    %1135 = vmatpush.bf16.msra.mxu0 0
    %1136 = vmatpush.bf16.msra.mxu0 0
    %1137 = vmatpush.bf16.msra.mxu0 0
    %1138 = vmatpush.bf16.msra.mxu0 0
    %1139 = vmatpush.bf16.msra.mxu0 0
    %1140 = vmatpush.bf16.msra.mxu0 0
    %1141 = vmatpush.bf16.msra.mxu0 0
    %1142 = vmatpush.bf16.msra.mxu0 %v1134
    %1143 = vmatmul.bf16.gmra.mxu0 %v152
    %v1144 = vpop.f32.mrf.mxu0
    %v1145 = vadd.f32 0.0, %v1144
    %v1146 = vpop.f32.mrf.mxu0
    %v1147 = vadd.f32 0.0, %v1146
    %1148 = vmatmul.bf16.gmra.mxu0 %v155
    %v1149 = vpop.f32.mrf.mxu0
    %v1150 = vadd.f32 0.0, %v1149
    %v1151 = vpop.f32.mrf.mxu0
    %v1152 = vadd.f32 0.0, %v1151
    %1153 = vmatmul.bf16.gmra.mxu0 %v158
    %v1154 = vpop.f32.mrf.mxu0
    %v1155 = vadd.f32 0.0, %v1154
    %v1156 = vpop.f32.mrf.mxu0
    %v1157 = vadd.f32 0.0, %v1156
    %1158 = vdwg.mxu0
    %v1159 = vmul.f32 %v1145, %v57
    %v1160 = vmul.f32 %v1147, %v58
    %v1161 = vmul.f32 %v1150, %v59
    %v1162 = vmul.f32 %v1152, %v60
    %v1163 = vmul.f32 %v1155, %v61
    %v1164 = vmul.f32 %v1157, %v62
    %v1165 = vsel %vm150, %v1159, 0.0
    %1166 = vadd.xlane.f32.xlu0 %v1165
    %v1167 = vpop.xlane.xlu0 %1166
    %v1168 = vsel %vm150, %v1160, 0.0
    %1169 = vadd.xlane.f32.xlu0 %v1168
    %v1170 = vpop.xlane.xlu0 %1169
    %v1171 = vsel %vm150, %v1161, 0.0
    %1172 = vadd.xlane.f32.xlu0 %v1171
    %v1173 = vpop.xlane.xlu0 %1172
    %v1174 = vsel %vm150, %v1162, 0.0
    %1175 = vadd.xlane.f32.xlu0 %v1174
    %v1176 = vpop.xlane.xlu0 %1175
    %v1177 = vsel %vm150, %v1163, 0.0
    %1178 = vadd.xlane.f32.xlu0 %v1177
    %v1179 = vpop.xlane.xlu0 %1178
    %v1180 = vsel %vm150, %v1164, 0.0
    %1181 = vadd.xlane.f32.xlu0 %v1180
    %v1182 = vpop.xlane.xlu0 %1181
    %1183 = vrot.lane.b32.xlu0 %v803, 88
    %v1184 = vpop.permute.xlu0 %1183
    %v1187 = vsel %vm150, %v1134, 0
    %1189 = vmatpush.bf16.msra.mxu0 0
    %1190 = vmatpush.bf16.msra.mxu0 0
    %1191 = vmatpush.bf16.msra.mxu0 0
    %1192 = vmatpush.bf16.msra.mxu0 0
    %1193 = vmatpush.bf16.msra.mxu0 0
    %1194 = vmatpush.bf16.msra.mxu0 0
    %1195 = vmatpush.bf16.msra.mxu0 0
    %1196 = vmatpush.bf16.msra.mxu0 %v1184
    %1197 = vmatmul.bf16.gmra.mxu0 %v1187
    %v1198 = vpop.f32.mrf.mxu0
    %v1199 = vadd.f32 0.0, %v1198
    %v1200 = vpop.f32.mrf.mxu0
    %v1201 = vadd.f32 0.0, %v1200
    %1202 = vdwg.mxu0
    %1205 = vrot.lane.b32.xlu0 %v1199, 8
    %v1206 = vpop.permute.xlu0 %1205
    %1207 = vrot.lane.b32.xlu0 %v1201, 8
    %v1208 = vpop.permute.xlu0 %1207
    %1211 = vst.msk [vmem:[#allocation2] sm:$0xff] %vm575, %v1206
    %1212 = vst.msk [vmem:[#allocation2 + $0x8] sm:$0xff] %vm575, %v1208
    %v1213 = vmul.f32 %v1167, %v789
    %v1214 = vmul.f32 %v1170, %v791
    %v1215 = vmul.f32 %v1173, %v794
    %v1216 = vmul.f32 %v1176, %v796
    %v1217 = vmul.f32 %v1179, %v799
    %v1218 = vmul.f32 %v1182, %v801
    %1219 = vst.msk [vmem:[#allocation3] sm:$0xff] %vm575, %v1213
    %1220 = vst.msk [vmem:[#allocation3 + $0x8] sm:$0xff] %vm575, %v1214
    %1221 = vst.msk [vmem:[#allocation3 + $0x10] sm:$0xff] %vm575, %v1215
    %1222 = vst.msk [vmem:[#allocation3 + $0x18] sm:$0xff] %vm575, %v1216
    %1223 = vst.msk [vmem:[#allocation3 + $0x20] sm:$0xff] %vm575, %v1217
    %1224 = vst.msk [vmem:[#allocation3 + $0x28] sm:$0xff] %vm575, %v1218
    %v1225 = vld [vmem:[#allocation2] sm:$0xff]
    %v1226 = vld [vmem:[#allocation2 + $0x8] sm:$0xff]
    %v1227 = vld [vmem:[#allocation3] sm:$0xff]
    %v1228 = vld [vmem:[#allocation3 + $0x8] sm:$0xff]
    %v1229 = vld [vmem:[#allocation3 + $0x10] sm:$0xff]
    %v1230 = vld [vmem:[#allocation3 + $0x18] sm:$0xff]
    %v1231 = vld [vmem:[#allocation3 + $0x20] sm:$0xff]
    %v1232 = vld [vmem:[#allocation3 + $0x28] sm:$0xff]
    %v1233 = vpack.c.bf16 %v1228, %v1227
    %v1234 = vpack.c.bf16 %v1230, %v1229
    %v1235 = vpack.c.bf16 %v1232, %v1231
    %1236 = vmatpush.bf16.msra.mxu0 0
    %1237 = vmatpush.bf16.msra.mxu0 0
    %1238 = vmatpush.bf16.msra.mxu0 0
    %1239 = vmatpush.bf16.msra.mxu0 0
    %1240 = vmatpush.bf16.msra.mxu0 0
    %1241 = vmatpush.bf16.msra.mxu0 %v1235
    %1242 = vmatpush.bf16.msra.mxu0 %v1234
    %1243 = vmatpush.bf16.msra.mxu0 %v1233
    %1244 = vmatmul.bf16.gmra.mxu0 %v221
    %v1245 = vpop.f32.mrf.mxu0
    %v1246 = vadd.f32 0.0, %v1245
    %v1247 = vpop.f32.mrf.mxu0
    %v1248 = vadd.f32 0.0, %v1247
    %1249 = vdwg.mxu0
    %v1250 = vadd.f32 %v1225, %v1246
    %v1251 = vadd.f32 %v1226, %v1248
    %v1252 = vperm.slane %v745, 0
    %v1253 = vmul.f32 %v1250, %v1252
    %v1254 = vmul.f32 %v1251, %v1252
    %v1255 = vperm.slane %v745, 1
    %1257 = vrot.lane.b32.xlu0 %v1255, 48
    %v1258 = vpop.permute.xlu0 %1257
    %v1260 = vmul.f32 %v771, %v1258
    %v1261 = vmul.f32 %v773, %v1258
    %1264 = vrot.lane.b32.xlu0 %v1260, 80
    %v1265 = vpop.permute.xlu0 %1264
    %1266 = vrot.lane.b32.xlu0 %v1261, 80
    %v1267 = vpop.permute.xlu0 %1266
    %v1270 = vadd.f32 %v1253, %v1265
    %v1271 = vadd.f32 %v1254, %v1267
    %v1272 = vsel %vm150, %v1270, 0.0
    %1273 = vadd.xlane.f32.xlu0 %v1272
    %v1274 = vpop.xlane.xlu0 %1273
    %v1275 = vsel %vm150, %v1271, 0.0
    %1276 = vadd.xlane.f32.xlu0 %v1275
    %v1277 = vpop.xlane.xlu0 %1276
    %v1278 = vmul.f32 %v1274, 0.5
    %v1279 = vmul.f32 %v1277, 0.5
    %v1280 = vtanh.pop %v1278
    %v1281 = vtanh.pop %v1279
    %v1282 = vadd.f32 %v1280, 1.0
    %v1283 = vadd.f32 %v1281, 1.0
    %v1284 = vmul.f32 %v1282, 0.5
    %v1285 = vmul.f32 %v1283, 0.5
    %v1286 = vmul.f32 %v1284, %v771
    %v1287 = vmul.f32 %v1285, %v773
    %v1288 = vsub.f32 1.0, %v1284
    %v1289 = vsub.f32 1.0, %v1285
    %v1290 = vmul.f32 %v1288, %v1250
    %v1291 = vmul.f32 %v1289, %v1251
    %1294 = vrot.lane.b32.xlu0 %v1290, 48
    %v1295 = vpop.permute.xlu0 %1294
    %1296 = vrot.lane.b32.xlu0 %v1291, 48
    %v1297 = vpop.permute.xlu0 %1296
    %v1300 = vadd.f32 %v1286, %v1295
    %v1301 = vadd.f32 %v1287, %v1297
    %v1302 = vpack.c.bf16 %v1301, %v1300
    %v1303 = vpack.c.bf16 %v747, %v746
    %v1304 = vperm.slane %v748, 0
    %1306 = vrot.lane.b32.xlu0 %v1302, 80
    %v1307 = vpop.permute.xlu0 %1306
    %v1309 = vsel %vm150, %v1307, 0
    %1311 = vmatpush.bf16.msra.mxu0 0
    %1312 = vmatpush.bf16.msra.mxu0 0
    %1313 = vmatpush.bf16.msra.mxu0 0
    %1314 = vmatpush.bf16.msra.mxu0 0
    %1315 = vmatpush.bf16.msra.mxu0 0
    %1316 = vmatpush.bf16.msra.mxu0 0
    %1317 = vmatpush.bf16.msra.mxu0 0
    %1318 = vmatpush.bf16.msra.mxu0 %v1303
    %1319 = vmatmul.bf16.gmra.mxu0 %v1309
    %v1320 = vpop.f32.mrf.mxu0
    %v1321 = vadd.f32 %v1304, %v1320
    %v1322 = vpop.f32.mrf.mxu0
    %v1323 = vadd.f32 %v1304, %v1322
    %1324 = vdwg.mxu0
    %v1325 = vmax.f32 %v1321, 0.0
    %v1326 = vmax.f32 %v1323, 0.0
    %v1327 = vsel %vm190, %v1325, 0.0
    %v1328 = vsel %vm190, %v1326, 0.0
    %v1329 = vadd.f32 %v1327, %v1328
    %v1330 = vrot.slane %v1329, 4
    %v1331 = vadd.f32 %v1329, %v1330
    %v1332 = vrot.slane %v1331, 2
    %v1333 = vadd.f32 %v1331, %v1332
    %v1334 = vrot.slane %v1333, 1
    %v1335 = vadd.f32 %v1333, %v1334
    %v1336 = vmul.f32 %v1335, %v707
    %v1337 = vsub.f32 %v1325, %v1336
    %v1338 = vsub.f32 %v1326, %v1336
    %v1339 = vmul.f32 %v1337, %v1337
    %v1340 = vmul.f32 %v1338, %v1338
    %v1341 = vsel %vm190, %v1339, 0.0
    %v1342 = vsel %vm190, %v1340, 0.0
    %v1343 = vadd.f32 %v1341, %v1342
    %v1344 = vrot.slane %v1343, 4
    %v1345 = vadd.f32 %v1343, %v1344
    %v1346 = vrot.slane %v1345, 2
    %v1347 = vadd.f32 %v1345, %v1346
    %v1348 = vrot.slane %v1347, 1
    %v1349 = vadd.f32 %v1347, %v1348
    %v1350 = vmul.f32 %v1349, %v707
    %v1351 = vperm.slane %v749, 0
    %v1352 = vmul.f32 %v1351, %v1337
    %v1353 = vmul.f32 %v1351, %v1338
    %v1354 = vadd.f32 %v1350, 1e-05
    %v1355 = vrsqrt.pop %v1354
    %v1356 = vmul.f32 %v1355, %v1354
    %v1357 = vmul.f32 %v1356, %v1355
    %v1358 = vmul.f32 0.5, %v1357
    %v1359 = vsub.f32 1.5, %v1358
    %v1360 = vmul.f32 %v1355, %v1359
    %vm1361 = vweird.f32 %v1354
    %vm1362 = vweird.f32 %v1355
    %vm1363 = vmor %vm1361, %vm1362
    %v1364 = vsel %vm1363, %v1355, %v1360
    %v1365 = vmul.f32 %v1352, %v1364
    %v1366 = vmul.f32 %v1353, %v1364
    %v1367 = vperm.slane %v750, 0
    %v1368 = vadd.f32 %v1365, %v1367
    %v1369 = vadd.f32 %v1366, %v1367
    %v1370 = vld [vmem:[#allocation7 + $0x98] sm:$0xff]
    %v1371 = vld [vmem:[#allocation7 + $0xa0] sm:$0x1]
    %v1372 = vld [vmem:[#allocation7 + $0xa8] sm:$0xf]
    %v1373 = vld [vmem:[#allocation7 + $0xb0] sm:$0x3]
    %v1374 = vld [vmem:[#allocation7 + $0xb8] sm:$0xff]
    %v1375 = vld [vmem:[#allocation7 + $0xc0] sm:$0xff]
    %v1376 = vld [vmem:[#allocation7 + $0xc8] sm:$0x1]
    %v1377 = vld [vmem:[#allocation7 + $0xd0] sm:$0x1]
    %v1378 = vld [vmem:[#allocation7 + $0xd8] sm:$0x1]
    %v1379 = vpack.c.bf16 %v1369, %v1368
    %v1380 = vpack.c.bf16 %v1370, %v1370
    %v1381 = vperm.slane %v1371, 0
    %v1383 = vsel %vm190, %v1379, 0
    %v1386 = vsel %vm757, %v1380, 0
    %1388 = vmatpush.bf16.msra.mxu0 0
    %1389 = vmatpush.bf16.msra.mxu0 0
    %1390 = vmatpush.bf16.msra.mxu0 0
    %1391 = vmatpush.bf16.msra.mxu0 0
    %1392 = vmatpush.bf16.msra.mxu0 0
    %1393 = vmatpush.bf16.msra.mxu0 0
    %1394 = vmatpush.bf16.msra.mxu0 0
    %1395 = vmatpush.bf16.msra.mxu0 %v1386
    %1396 = vmatmul.bf16.gmra.mxu0 %v1383
    %v1397 = vpop.f32.mrf.mxu0
    %v1398 = vadd.f32 %v1381, %v1397
    %v1399 = vpop.f32.mrf.mxu0
    %v1400 = vadd.f32 %v1381, %v1399
    %1401 = vdwg.mxu0
    %v1402 = vpack.c.bf16 %v1372, %v1372
    %v1404 = vsel %vm118, %v1402, 0
    %1406 = vmatpush.bf16.msra.mxu0 0
    %1407 = vmatpush.bf16.msra.mxu0 0
    %1408 = vmatpush.bf16.msra.mxu0 0
    %1409 = vmatpush.bf16.msra.mxu0 0
    %1410 = vmatpush.bf16.msra.mxu0 0
    %1411 = vmatpush.bf16.msra.mxu0 0
    %1412 = vmatpush.bf16.msra.mxu0 0
    %1413 = vmatpush.bf16.msra.mxu0 %v1404
    %1414 = vmatmul.bf16.gmra.mxu0 %v110
    %v1415 = vpop.f32.mrf.mxu0
    %v1416 = vadd.f32 0.0, %v1415
    %v1417 = vpop.f32.mrf.mxu0
    %v1418 = vadd.f32 0.0, %v1417
    %1419 = vmatmul.bf16.gmra.mxu0 %v113
    %v1420 = vpop.f32.mrf.mxu0
    %v1421 = vadd.f32 0.0, %v1420
    %v1422 = vpop.f32.mrf.mxu0
    %v1423 = vadd.f32 0.0, %v1422
    %1424 = vmatmul.bf16.gmra.mxu0 %v116
    %v1425 = vpop.f32.mrf.mxu0
    %v1426 = vadd.f32 0.0, %v1425
    %v1427 = vpop.f32.mrf.mxu0
    %v1428 = vadd.f32 0.0, %v1427
    %1429 = vdwg.mxu0
    %v1430 = vpack.c.bf16 %v1400, %v1398
    %1431 = vmatpush.bf16.msra.mxu0 0
    %1432 = vmatpush.bf16.msra.mxu0 0
    %1433 = vmatpush.bf16.msra.mxu0 0
    %1434 = vmatpush.bf16.msra.mxu0 0
    %1435 = vmatpush.bf16.msra.mxu0 0
    %1436 = vmatpush.bf16.msra.mxu0 0
    %1437 = vmatpush.bf16.msra.mxu0 0
    %1438 = vmatpush.bf16.msra.mxu0 %v1430
    %1439 = vmatmul.bf16.gmra.mxu0 %v152
    %v1440 = vpop.f32.mrf.mxu0
    %v1441 = vadd.f32 0.0, %v1440
    %v1442 = vpop.f32.mrf.mxu0
    %v1443 = vadd.f32 0.0, %v1442
    %1444 = vmatmul.bf16.gmra.mxu0 %v155
    %v1445 = vpop.f32.mrf.mxu0
    %v1446 = vadd.f32 0.0, %v1445
    %v1447 = vpop.f32.mrf.mxu0
    %v1448 = vadd.f32 0.0, %v1447
    %1449 = vmatmul.bf16.gmra.mxu0 %v158
    %v1450 = vpop.f32.mrf.mxu0
    %v1451 = vadd.f32 0.0, %v1450
    %v1452 = vpop.f32.mrf.mxu0
    %v1453 = vadd.f32 0.0, %v1452
    %1454 = vdwg.mxu0
    %v1455 = vmul.f32 %v1441, %v1416
    %v1456 = vmul.f32 %v1443, %v1418
    %v1457 = vmul.f32 %v1446, %v1421
    %v1458 = vmul.f32 %v1448, %v1423
    %v1459 = vmul.f32 %v1451, %v1426
    %v1460 = vmul.f32 %v1453, %v1428
    %v1461 = vsel %vm190, %v1455, 0.0
    %1462 = vadd.xlane.f32.xlu0 %v1461
    %v1463 = vpop.xlane.xlu0 %1462
    %v1464 = vsel %vm190, %v1456, 0.0
    %1465 = vadd.xlane.f32.xlu0 %v1464
    %v1466 = vpop.xlane.xlu0 %1465
    %v1467 = vsel %vm190, %v1457, 0.0
    %1468 = vadd.xlane.f32.xlu0 %v1467
    %v1469 = vpop.xlane.xlu0 %1468
    %v1470 = vsel %vm190, %v1458, 0.0
    %1471 = vadd.xlane.f32.xlu0 %v1470
    %v1472 = vpop.xlane.xlu0 %1471
    %v1473 = vsel %vm190, %v1459, 0.0
    %1474 = vadd.xlane.f32.xlu0 %v1473
    %v1475 = vpop.xlane.xlu0 %1474
    %v1476 = vsel %vm190, %v1460, 0.0
    %1477 = vadd.xlane.f32.xlu0 %v1476
    %v1478 = vpop.xlane.xlu0 %1477
    %v1479 = vmul.f32 %v1463, %v57
    %v1480 = vmul.f32 %v1466, %v58
    %v1481 = vmul.f32 %v1469, %v59
    %v1482 = vmul.f32 %v1472, %v60
    %v1483 = vmul.f32 %v1475, %v61
    %v1484 = vmul.f32 %v1478, %v62
    %v1485 = vpack.c.bf16 %v1480, %v1479
    %v1486 = vpack.c.bf16 %v1482, %v1481
    %v1487 = vpack.c.bf16 %v1484, %v1483
    %1488 = vmatpush.bf16.msra.mxu0 0
    %1489 = vmatpush.bf16.msra.mxu0 0
    %1490 = vmatpush.bf16.msra.mxu0 0
    %1491 = vmatpush.bf16.msra.mxu0 0
    %1492 = vmatpush.bf16.msra.mxu0 0
    %1493 = vmatpush.bf16.msra.mxu0 %v1487
    %1494 = vmatpush.bf16.msra.mxu0 %v1486
    %1495 = vmatpush.bf16.msra.mxu0 %v1485
    %1496 = vmatmul.bf16.gmra.mxu0 %v221
    %v1497 = vpop.f32.mrf.mxu0
    %v1498 = vadd.f32 0.0, %v1497
    %v1499 = vpop.f32.mrf.mxu0
    %v1500 = vadd.f32 0.0, %v1499
    %1501 = vdwg.mxu0
    %1503 = vrot.lane.b32.xlu0 %v1430, 112
    %v1504 = vpop.permute.xlu0 %1503
    %v1506 = vsel %vm190, %v1430, 0
    %v1509 = vsel %vm190, %v1504, 0
    %1511 = vmatpush.bf16.xpose.msra.mxu0 0
    %1512 = vmatpush.bf16.xpose.msra.mxu0 0
    %1513 = vmatpush.bf16.xpose.msra.mxu0 0
    %1514 = vmatpush.bf16.xpose.msra.mxu0 0
    %1515 = vmatpush.bf16.xpose.msra.mxu0 0
    %1516 = vmatpush.bf16.xpose.msra.mxu0 0
    %1517 = vmatpush.bf16.xpose.msra.mxu0 0
    %1518 = vmatpush.bf16.xpose.msra.mxu0 %v1509
    %1519 = vmatmul.bf16.gmra.mxu0 %v1506
    %v1520 = vpop.f32.mrf.mxu0
    %v1521 = vadd.f32 %v1498, %v1520
    %v1522 = vpop.f32.mrf.mxu0
    %v1523 = vadd.f32 %v1500, %v1522
    %1524 = vdwg.mxu0
    %v1525 = vmul.f32 %v1521, 0.35355338
    %v1526 = vmul.f32 %v1523, 0.35355338
    %v1527 = vsel %vm262, %v1525, -1e+30
    %v1528 = vsel %vm263, %v1526, -1e+30
    %v1529 = vsel %vm150, %v1527, -inf
    %1530 = vmax.xlane.f32.xlu0 %v1529
    %v1531 = vpop.xlane.xlu0 %1530
    %v1532 = vsel %vm150, %v1528, -inf
    %1533 = vmax.xlane.f32.xlu0 %v1532
    %v1534 = vpop.xlane.xlu0 %1533
    %v1535 = vsub.f32 %v1527, %v1531
    %v1536 = vsub.f32 %v1528, %v1534
    %v1537 = vmul.f32 %v1535, 1.442695
    %v1538 = vpow.pop %v1537
    %v1539 = vmul.f32 %v1536, 1.442695
    %v1540 = vpow.pop %v1539
    %v1541 = vmul.f32 %v1538, %v47
    %v1542 = vmul.f32 %v1540, %v48
    %v1543 = vsel %vm150, %v1541, 0.0
    %1544 = vadd.xlane.f32.xlu0 %v1543
    %v1545 = vpop.xlane.xlu0 %1544
    %v1546 = vsel %vm150, %v1542, 0.0
    %1547 = vadd.xlane.f32.xlu0 %v1546
    %v1548 = vpop.xlane.xlu0 %1547
    %vm1549 = vcmp.eq.f32.partialorder %v1545, 0.0
    %vm1550 = vcmp.eq.f32.partialorder %v1548, 0.0
    %v1551 = vsel %vm1549, 1.0, %v1545
    %v1552 = vsel %vm1550, 1.0, %v1548
    %v1553 = vrcp.pop %v1551
    %v1554 = vrcp.pop %v1552
    %v1555 = vmul.f32 %v1541, %v1553
    %v1556 = vmul.f32 %v1542, %v1554
    %v1557 = vpack.c.bf16 %v1556, %v1555
    %1558 = vmatpush.bf16.msra.mxu0 0
    %1559 = vmatpush.bf16.msra.mxu0 0
    %1560 = vmatpush.bf16.msra.mxu0 0
    %1561 = vmatpush.bf16.msra.mxu0 0
    %1562 = vmatpush.bf16.msra.mxu0 0
    %1563 = vmatpush.bf16.msra.mxu0 0
    %1564 = vmatpush.bf16.msra.mxu0 0
    %1565 = vmatpush.bf16.msra.mxu0 %v1557
    %1566 = vmatmul.bf16.gmra.mxu0 %v152
    %v1567 = vpop.f32.mrf.mxu0
    %v1568 = vadd.f32 0.0, %v1567
    %v1569 = vpop.f32.mrf.mxu0
    %v1570 = vadd.f32 0.0, %v1569
    %1571 = vmatmul.bf16.gmra.mxu0 %v155
    %v1572 = vpop.f32.mrf.mxu0
    %v1573 = vadd.f32 0.0, %v1572
    %v1574 = vpop.f32.mrf.mxu0
    %v1575 = vadd.f32 0.0, %v1574
    %1576 = vmatmul.bf16.gmra.mxu0 %v158
    %v1577 = vpop.f32.mrf.mxu0
    %v1578 = vadd.f32 0.0, %v1577
    %v1579 = vpop.f32.mrf.mxu0
    %v1580 = vadd.f32 0.0, %v1579
    %1581 = vdwg.mxu0
    %v1582 = vmul.f32 %v1568, %v57
    %v1583 = vmul.f32 %v1570, %v58
    %v1584 = vmul.f32 %v1573, %v59
    %v1585 = vmul.f32 %v1575, %v60
    %v1586 = vmul.f32 %v1578, %v61
    %v1587 = vmul.f32 %v1580, %v62
    %v1588 = vsel %vm150, %v1582, 0.0
    %1589 = vadd.xlane.f32.xlu0 %v1588
    %v1590 = vpop.xlane.xlu0 %1589
    %v1591 = vsel %vm150, %v1583, 0.0
    %1592 = vadd.xlane.f32.xlu0 %v1591
    %v1593 = vpop.xlane.xlu0 %1592
    %v1594 = vsel %vm150, %v1584, 0.0
    %1595 = vadd.xlane.f32.xlu0 %v1594
    %v1596 = vpop.xlane.xlu0 %1595
    %v1597 = vsel %vm150, %v1585, 0.0
    %1598 = vadd.xlane.f32.xlu0 %v1597
    %v1599 = vpop.xlane.xlu0 %1598
    %v1600 = vsel %vm150, %v1586, 0.0
    %1601 = vadd.xlane.f32.xlu0 %v1600
    %v1602 = vpop.xlane.xlu0 %1601
    %v1603 = vsel %vm150, %v1587, 0.0
    %1604 = vadd.xlane.f32.xlu0 %v1603
    %v1605 = vpop.xlane.xlu0 %1604
    %1606 = vrot.lane.b32.xlu0 %v1430, 96
    %v1607 = vpop.permute.xlu0 %1606
    %v1610 = vsel %vm150, %v1557, 0
    %1612 = vmatpush.bf16.msra.mxu0 0
    %1613 = vmatpush.bf16.msra.mxu0 0
    %1614 = vmatpush.bf16.msra.mxu0 0
    %1615 = vmatpush.bf16.msra.mxu0 0
    %1616 = vmatpush.bf16.msra.mxu0 0
    %1617 = vmatpush.bf16.msra.mxu0 0
    %1618 = vmatpush.bf16.msra.mxu0 0
    %1619 = vmatpush.bf16.msra.mxu0 %v1607
    %1620 = vmatmul.bf16.gmra.mxu0 %v1610
    %v1621 = vpop.f32.mrf.mxu0
    %v1622 = vadd.f32 0.0, %v1621
    %v1623 = vpop.f32.mrf.mxu0
    %v1624 = vadd.f32 0.0, %v1623
    %1625 = vdwg.mxu0
    %1626 = vst.msk [vmem:[#allocation2] sm:$0xff] %vm190, %v1622
    %1627 = vst.msk [vmem:[#allocation2 + $0x8] sm:$0xff] %vm190, %v1624
    %v1628 = vmul.f32 %v1590, %v1416
    %v1629 = vmul.f32 %v1593, %v1418
    %v1630 = vmul.f32 %v1596, %v1421
    %v1631 = vmul.f32 %v1599, %v1423
    %v1632 = vmul.f32 %v1602, %v1426
    %v1633 = vmul.f32 %v1605, %v1428
    %1634 = vst.msk [vmem:[#allocation3] sm:$0xff] %vm190, %v1628
    %1635 = vst.msk [vmem:[#allocation3 + $0x8] sm:$0xff] %vm190, %v1629
    %1636 = vst.msk [vmem:[#allocation3 + $0x10] sm:$0xff] %vm190, %v1630
    %1637 = vst.msk [vmem:[#allocation3 + $0x18] sm:$0xff] %vm190, %v1631
    %1638 = vst.msk [vmem:[#allocation3 + $0x20] sm:$0xff] %vm190, %v1632
    %1639 = vst.msk [vmem:[#allocation3 + $0x28] sm:$0xff] %vm190, %v1633
    %1646 = vrot.lane.b32.xlu0 %v1455, 120
    %v1647 = vpop.permute.xlu0 %1646
    %1648 = vrot.lane.b32.xlu0 %v1456, 120
    %v1649 = vpop.permute.xlu0 %1648
    %1650 = vrot.lane.b32.xlu0 %v1457, 120
    %v1651 = vpop.permute.xlu0 %1650
    %1652 = vrot.lane.b32.xlu0 %v1458, 120
    %v1653 = vpop.permute.xlu0 %1652
    %1654 = vrot.lane.b32.xlu0 %v1459, 120
    %v1655 = vpop.permute.xlu0 %1654
    %1656 = vrot.lane.b32.xlu0 %v1460, 120
    %v1657 = vpop.permute.xlu0 %1656
    %v1664 = vsel %vm190, %v1647, 0.0
    %1665 = vadd.xlane.f32.xlu0 %v1664
    %v1666 = vpop.xlane.xlu0 %1665
    %v1667 = vsel %vm190, %v1649, 0.0
    %1668 = vadd.xlane.f32.xlu0 %v1667
    %v1669 = vpop.xlane.xlu0 %1668
    %v1670 = vsel %vm190, %v1651, 0.0
    %1671 = vadd.xlane.f32.xlu0 %v1670
    %v1672 = vpop.xlane.xlu0 %1671
    %v1673 = vsel %vm190, %v1653, 0.0
    %1674 = vadd.xlane.f32.xlu0 %v1673
    %v1675 = vpop.xlane.xlu0 %1674
    %v1676 = vsel %vm190, %v1655, 0.0
    %1677 = vadd.xlane.f32.xlu0 %v1676
    %v1678 = vpop.xlane.xlu0 %1677
    %v1679 = vsel %vm190, %v1657, 0.0
    %1680 = vadd.xlane.f32.xlu0 %v1679
    %v1681 = vpop.xlane.xlu0 %1680
    %v1682 = vmul.f32 %v1666, %v57
    %v1683 = vmul.f32 %v1669, %v58
    %v1684 = vmul.f32 %v1672, %v59
    %v1685 = vmul.f32 %v1675, %v60
    %v1686 = vmul.f32 %v1678, %v61
    %v1687 = vmul.f32 %v1681, %v62
    %v1688 = vpack.c.bf16 %v1683, %v1682
    %v1689 = vpack.c.bf16 %v1685, %v1684
    %v1690 = vpack.c.bf16 %v1687, %v1686
    %1691 = vmatpush.bf16.msra.mxu0 0
    %1692 = vmatpush.bf16.msra.mxu0 0
    %1693 = vmatpush.bf16.msra.mxu0 0
    %1694 = vmatpush.bf16.msra.mxu0 0
    %1695 = vmatpush.bf16.msra.mxu0 0
    %1696 = vmatpush.bf16.msra.mxu0 %v1690
    %1697 = vmatpush.bf16.msra.mxu0 %v1689
    %1698 = vmatpush.bf16.msra.mxu0 %v1688
    %1699 = vmatmul.bf16.gmra.mxu0 %v221
    %v1700 = vpop.f32.mrf.mxu0
    %v1701 = vadd.f32 0.0, %v1700
    %v1702 = vpop.f32.mrf.mxu0
    %v1703 = vadd.f32 0.0, %v1702
    %1704 = vdwg.mxu0
    %1705 = vrot.lane.b32.xlu0 %v1430, 120
    %v1706 = vpop.permute.xlu0 %1705
    %1707 = vrot.lane.b32.xlu0 %v1430, 104
    %v1708 = vpop.permute.xlu0 %1707
    %v1710 = vsel %vm190, %v1706, 0
    %v1713 = vsel %vm190, %v1708, 0
    %1715 = vmatpush.bf16.xpose.msra.mxu0 0
    %1716 = vmatpush.bf16.xpose.msra.mxu0 0
    %1717 = vmatpush.bf16.xpose.msra.mxu0 0
    %1718 = vmatpush.bf16.xpose.msra.mxu0 0
    %1719 = vmatpush.bf16.xpose.msra.mxu0 0
    %1720 = vmatpush.bf16.xpose.msra.mxu0 0
    %1721 = vmatpush.bf16.xpose.msra.mxu0 0
    %1722 = vmatpush.bf16.xpose.msra.mxu0 %v1713
    %1723 = vmatmul.bf16.gmra.mxu0 %v1710
    %v1724 = vpop.f32.mrf.mxu0
    %v1725 = vadd.f32 %v1701, %v1724
    %v1726 = vpop.f32.mrf.mxu0
    %v1727 = vadd.f32 %v1703, %v1726
    %1728 = vdwg.mxu0
    %v1729 = vmul.f32 %v1725, 0.35355338
    %v1730 = vmul.f32 %v1727, 0.35355338
    %v1731 = vsel %vm262, %v1729, -1e+30
    %v1732 = vsel %vm263, %v1730, -1e+30
    %v1733 = vsel %vm150, %v1731, -inf
    %1734 = vmax.xlane.f32.xlu0 %v1733
    %v1735 = vpop.xlane.xlu0 %1734
    %v1736 = vsel %vm150, %v1732, -inf
    %1737 = vmax.xlane.f32.xlu0 %v1736
    %v1738 = vpop.xlane.xlu0 %1737
    %v1739 = vsub.f32 %v1731, %v1735
    %v1740 = vsub.f32 %v1732, %v1738
    %v1741 = vmul.f32 %v1739, 1.442695
    %v1742 = vpow.pop %v1741
    %v1743 = vmul.f32 %v1740, 1.442695
    %v1744 = vpow.pop %v1743
    %v1745 = vmul.f32 %v1742, %v47
    %v1746 = vmul.f32 %v1744, %v48
    %v1747 = vsel %vm150, %v1745, 0.0
    %1748 = vadd.xlane.f32.xlu0 %v1747
    %v1749 = vpop.xlane.xlu0 %1748
    %v1750 = vsel %vm150, %v1746, 0.0
    %1751 = vadd.xlane.f32.xlu0 %v1750
    %v1752 = vpop.xlane.xlu0 %1751
    %vm1753 = vcmp.eq.f32.partialorder %v1749, 0.0
    %vm1754 = vcmp.eq.f32.partialorder %v1752, 0.0
    %v1755 = vsel %vm1753, 1.0, %v1749
    %v1756 = vsel %vm1754, 1.0, %v1752
    %v1757 = vrcp.pop %v1755
    %v1758 = vrcp.pop %v1756
    %v1759 = vmul.f32 %v1745, %v1757
    %v1760 = vmul.f32 %v1746, %v1758
    %v1761 = vpack.c.bf16 %v1760, %v1759
    %1762 = vmatpush.bf16.msra.mxu0 0
    %1763 = vmatpush.bf16.msra.mxu0 0
    %1764 = vmatpush.bf16.msra.mxu0 0
    %1765 = vmatpush.bf16.msra.mxu0 0
    %1766 = vmatpush.bf16.msra.mxu0 0
    %1767 = vmatpush.bf16.msra.mxu0 0
    %1768 = vmatpush.bf16.msra.mxu0 0
    %1769 = vmatpush.bf16.msra.mxu0 %v1761
    %1770 = vmatmul.bf16.gmra.mxu0 %v152
    %v1771 = vpop.f32.mrf.mxu0
    %v1772 = vadd.f32 0.0, %v1771
    %v1773 = vpop.f32.mrf.mxu0
    %v1774 = vadd.f32 0.0, %v1773
    %1775 = vmatmul.bf16.gmra.mxu0 %v155
    %v1776 = vpop.f32.mrf.mxu0
    %v1777 = vadd.f32 0.0, %v1776
    %v1778 = vpop.f32.mrf.mxu0
    %v1779 = vadd.f32 0.0, %v1778
    %1780 = vmatmul.bf16.gmra.mxu0 %v158
    %v1781 = vpop.f32.mrf.mxu0
    %v1782 = vadd.f32 0.0, %v1781
    %v1783 = vpop.f32.mrf.mxu0
    %v1784 = vadd.f32 0.0, %v1783
    %1785 = vdwg.mxu0
    %v1786 = vmul.f32 %v1772, %v57
    %v1787 = vmul.f32 %v1774, %v58
    %v1788 = vmul.f32 %v1777, %v59
    %v1789 = vmul.f32 %v1779, %v60
    %v1790 = vmul.f32 %v1782, %v61
    %v1791 = vmul.f32 %v1784, %v62
    %v1792 = vsel %vm150, %v1786, 0.0
    %1793 = vadd.xlane.f32.xlu0 %v1792
    %v1794 = vpop.xlane.xlu0 %1793
    %v1795 = vsel %vm150, %v1787, 0.0
    %1796 = vadd.xlane.f32.xlu0 %v1795
    %v1797 = vpop.xlane.xlu0 %1796
    %v1798 = vsel %vm150, %v1788, 0.0
    %1799 = vadd.xlane.f32.xlu0 %v1798
    %v1800 = vpop.xlane.xlu0 %1799
    %v1801 = vsel %vm150, %v1789, 0.0
    %1802 = vadd.xlane.f32.xlu0 %v1801
    %v1803 = vpop.xlane.xlu0 %1802
    %v1804 = vsel %vm150, %v1790, 0.0
    %1805 = vadd.xlane.f32.xlu0 %v1804
    %v1806 = vpop.xlane.xlu0 %1805
    %v1807 = vsel %vm150, %v1791, 0.0
    %1808 = vadd.xlane.f32.xlu0 %v1807
    %v1809 = vpop.xlane.xlu0 %1808
    %1810 = vrot.lane.b32.xlu0 %v1430, 88
    %v1811 = vpop.permute.xlu0 %1810
    %v1814 = vsel %vm150, %v1761, 0
    %1816 = vmatpush.bf16.msra.mxu0 0
    %1817 = vmatpush.bf16.msra.mxu0 0
    %1818 = vmatpush.bf16.msra.mxu0 0
    %1819 = vmatpush.bf16.msra.mxu0 0
    %1820 = vmatpush.bf16.msra.mxu0 0
    %1821 = vmatpush.bf16.msra.mxu0 0
    %1822 = vmatpush.bf16.msra.mxu0 0
    %1823 = vmatpush.bf16.msra.mxu0 %v1811
    %1824 = vmatmul.bf16.gmra.mxu0 %v1814
    %v1825 = vpop.f32.mrf.mxu0
    %v1826 = vadd.f32 0.0, %v1825
    %v1827 = vpop.f32.mrf.mxu0
    %v1828 = vadd.f32 0.0, %v1827
    %1829 = vdwg.mxu0
    %1832 = vrot.lane.b32.xlu0 %v1826, 8
    %v1833 = vpop.permute.xlu0 %1832
    %1834 = vrot.lane.b32.xlu0 %v1828, 8
    %v1835 = vpop.permute.xlu0 %1834
    %1838 = vst.msk [vmem:[#allocation2] sm:$0xff] %vm575, %v1833
    %1839 = vst.msk [vmem:[#allocation2 + $0x8] sm:$0xff] %vm575, %v1835
    %v1840 = vmul.f32 %v1794, %v1416
    %v1841 = vmul.f32 %v1797, %v1418
    %v1842 = vmul.f32 %v1800, %v1421
    %v1843 = vmul.f32 %v1803, %v1423
    %v1844 = vmul.f32 %v1806, %v1426
    %v1845 = vmul.f32 %v1809, %v1428
    %1846 = vst.msk [vmem:[#allocation3] sm:$0xff] %vm575, %v1840
    %1847 = vst.msk [vmem:[#allocation3 + $0x8] sm:$0xff] %vm575, %v1841
    %1848 = vst.msk [vmem:[#allocation3 + $0x10] sm:$0xff] %vm575, %v1842
    %1849 = vst.msk [vmem:[#allocation3 + $0x18] sm:$0xff] %vm575, %v1843
    %1850 = vst.msk [vmem:[#allocation3 + $0x20] sm:$0xff] %vm575, %v1844
    %1851 = vst.msk [vmem:[#allocation3 + $0x28] sm:$0xff] %vm575, %v1845
    %v1852 = vld [vmem:[#allocation2] sm:$0xff]
    %v1853 = vld [vmem:[#allocation2 + $0x8] sm:$0xff]
    %v1854 = vld [vmem:[#allocation3] sm:$0xff]
    %v1855 = vld [vmem:[#allocation3 + $0x8] sm:$0xff]
    %v1856 = vld [vmem:[#allocation3 + $0x10] sm:$0xff]
    %v1857 = vld [vmem:[#allocation3 + $0x18] sm:$0xff]
    %v1858 = vld [vmem:[#allocation3 + $0x20] sm:$0xff]
    %v1859 = vld [vmem:[#allocation3 + $0x28] sm:$0xff]
    %v1860 = vpack.c.bf16 %v1855, %v1854
    %v1861 = vpack.c.bf16 %v1857, %v1856
    %v1862 = vpack.c.bf16 %v1859, %v1858
    %1863 = vmatpush.bf16.msra.mxu0 0
    %1864 = vmatpush.bf16.msra.mxu0 0
    %1865 = vmatpush.bf16.msra.mxu0 0
    %1866 = vmatpush.bf16.msra.mxu0 0
    %1867 = vmatpush.bf16.msra.mxu0 0
    %1868 = vmatpush.bf16.msra.mxu0 %v1862
    %1869 = vmatpush.bf16.msra.mxu0 %v1861
    %1870 = vmatpush.bf16.msra.mxu0 %v1860
    %1871 = vmatmul.bf16.gmra.mxu0 %v221
    %v1872 = vpop.f32.mrf.mxu0
    %v1873 = vadd.f32 0.0, %v1872
    %v1874 = vpop.f32.mrf.mxu0
    %v1875 = vadd.f32 0.0, %v1874
    %1876 = vdwg.mxu0
    %v1877 = vadd.f32 %v1852, %v1873
    %v1878 = vadd.f32 %v1853, %v1875
    %v1879 = vperm.slane %v1373, 0
    %v1880 = vmul.f32 %v1877, %v1879
    %v1881 = vmul.f32 %v1878, %v1879
    %v1882 = vperm.slane %v1373, 1
    %1884 = vrot.lane.b32.xlu0 %v1882, 48
    %v1885 = vpop.permute.xlu0 %1884
    %v1887 = vmul.f32 %v1398, %v1885
    %v1888 = vmul.f32 %v1400, %v1885
    %1891 = vrot.lane.b32.xlu0 %v1887, 80
    %v1892 = vpop.permute.xlu0 %1891
    %1893 = vrot.lane.b32.xlu0 %v1888, 80
    %v1894 = vpop.permute.xlu0 %1893
    %v1897 = vadd.f32 %v1880, %v1892
    %v1898 = vadd.f32 %v1881, %v1894
    %v1899 = vsel %vm150, %v1897, 0.0
    %1900 = vadd.xlane.f32.xlu0 %v1899
    %v1901 = vpop.xlane.xlu0 %1900
    %v1902 = vsel %vm150, %v1898, 0.0
    %1903 = vadd.xlane.f32.xlu0 %v1902
    %v1904 = vpop.xlane.xlu0 %1903
    %v1905 = vmul.f32 %v1901, 0.5
    %v1906 = vmul.f32 %v1904, 0.5
    %v1907 = vtanh.pop %v1905
    %v1908 = vtanh.pop %v1906
    %v1909 = vadd.f32 %v1907, 1.0
    %v1910 = vadd.f32 %v1908, 1.0
    %v1911 = vmul.f32 %v1909, 0.5
    %v1912 = vmul.f32 %v1910, 0.5
    %v1913 = vmul.f32 %v1911, %v1398
    %v1914 = vmul.f32 %v1912, %v1400
    %v1915 = vsub.f32 1.0, %v1911
    %v1916 = vsub.f32 1.0, %v1912
    %v1917 = vmul.f32 %v1915, %v1877
    %v1918 = vmul.f32 %v1916, %v1878
    %1921 = vrot.lane.b32.xlu0 %v1917, 48
    %v1922 = vpop.permute.xlu0 %1921
    %1923 = vrot.lane.b32.xlu0 %v1918, 48
    %v1924 = vpop.permute.xlu0 %1923
    %v1927 = vadd.f32 %v1913, %v1922
    %v1928 = vadd.f32 %v1914, %v1924
    %v1929 = vpack.c.bf16 %v1928, %v1927
    %v1930 = vpack.c.bf16 %v1375, %v1374
    %v1931 = vperm.slane %v1376, 0
    %1933 = vrot.lane.b32.xlu0 %v1929, 80
    %v1934 = vpop.permute.xlu0 %1933
    %v1936 = vsel %vm150, %v1934, 0
    %1938 = vmatpush.bf16.msra.mxu0 0
    %1939 = vmatpush.bf16.msra.mxu0 0
    %1940 = vmatpush.bf16.msra.mxu0 0
    %1941 = vmatpush.bf16.msra.mxu0 0
    %1942 = vmatpush.bf16.msra.mxu0 0
    %1943 = vmatpush.bf16.msra.mxu0 0
    %1944 = vmatpush.bf16.msra.mxu0 0
    %1945 = vmatpush.bf16.msra.mxu0 %v1930
    %1946 = vmatmul.bf16.gmra.mxu0 %v1936
    %v1947 = vpop.f32.mrf.mxu0
    %v1948 = vadd.f32 %v1931, %v1947
    %v1949 = vpop.f32.mrf.mxu0
    %v1950 = vadd.f32 %v1931, %v1949
    %1951 = vdwg.mxu0
    %v1952 = vmax.f32 %v1948, 0.0
    %v1953 = vmax.f32 %v1950, 0.0
    %v1954 = vsel %vm190, %v1952, 0.0
    %v1955 = vsel %vm190, %v1953, 0.0
    %v1956 = vadd.f32 %v1954, %v1955
    %v1957 = vrot.slane %v1956, 4
    %v1958 = vadd.f32 %v1956, %v1957
    %v1959 = vrot.slane %v1958, 2
    %v1960 = vadd.f32 %v1958, %v1959
    %v1961 = vrot.slane %v1960, 1
    %v1962 = vadd.f32 %v1960, %v1961
    %v1963 = vmul.f32 %v1962, %v707
    %v1964 = vsub.f32 %v1952, %v1963
    %v1965 = vsub.f32 %v1953, %v1963
    %v1966 = vmul.f32 %v1964, %v1964
    %v1967 = vmul.f32 %v1965, %v1965
    %v1968 = vsel %vm190, %v1966, 0.0
    %v1969 = vsel %vm190, %v1967, 0.0
    %v1970 = vadd.f32 %v1968, %v1969
    %v1971 = vrot.slane %v1970, 4
    %v1972 = vadd.f32 %v1970, %v1971
    %v1973 = vrot.slane %v1972, 2
    %v1974 = vadd.f32 %v1972, %v1973
    %v1975 = vrot.slane %v1974, 1
    %v1976 = vadd.f32 %v1974, %v1975
    %v1977 = vmul.f32 %v1976, %v707
    %v1978 = vperm.slane %v1377, 0
    %v1979 = vmul.f32 %v1978, %v1964
    %v1980 = vmul.f32 %v1978, %v1965
    %v1981 = vadd.f32 %v1977, 1e-05
    %v1982 = vrsqrt.pop %v1981
    %v1983 = vmul.f32 %v1982, %v1981
    %v1984 = vmul.f32 %v1983, %v1982
    %v1985 = vmul.f32 0.5, %v1984
    %v1986 = vsub.f32 1.5, %v1985
    %v1987 = vmul.f32 %v1982, %v1986
    %vm1988 = vweird.f32 %v1981
    %vm1989 = vweird.f32 %v1982
    %vm1990 = vmor %vm1988, %vm1989
    %v1991 = vsel %vm1990, %v1982, %v1987
    %v1992 = vmul.f32 %v1979, %v1991
    %v1993 = vmul.f32 %v1980, %v1991
    %v1994 = vperm.slane %v1378, 0
    %v1995 = vadd.f32 %v1992, %v1994
    %v1996 = vadd.f32 %v1993, %v1994
    %v1997 = vld [vmem:[#allocation7 + $0xe0] sm:$0xff]
    %v1998 = vld [vmem:[#allocation7 + $0xe8] sm:$0x1]
    %v1999 = vpack.c.bf16 %v1996, %v1995
    %v2000 = vpack.c.bf16 %v1997, %v1997
    %v2001 = vperm.slane %v1998, 0
    %v2003 = vsel %vm190, %v1999, 0
    %v2006 = vsel %vm757, %v2000, 0
    %2008 = vmatpush.bf16.msra.mxu0 0
    %2009 = vmatpush.bf16.msra.mxu0 0
    %2010 = vmatpush.bf16.msra.mxu0 0
    %2011 = vmatpush.bf16.msra.mxu0 0
    %2012 = vmatpush.bf16.msra.mxu0 0
    %2013 = vmatpush.bf16.msra.mxu0 0
    %2014 = vmatpush.bf16.msra.mxu0 0
    %2015 = vmatpush.bf16.msra.mxu0 %v2006
    %2016 = vmatmul.bf16.gmra.mxu0 %v2003
    %v2017 = vpop.f32.mrf.mxu0
    %v2018 = vadd.f32 %v2001, %v2017
    %v2019 = vpop.f32.mrf.mxu0
    %v2020 = vadd.f32 %v2001, %v2019
    %2021 = vdwg.mxu0
    %2022 = vst [vmem:[#allocation9] sm:$0xff] %v2018
    %2023 = vst [vmem:[#allocation9 + $0x8] sm:$0xff] %v2020
    // Predicated region
    $region18: #{tpu_custom_call.1} parent=1 // pred_check
      _
    $region19: #{tpu_custom_call.1} parent=1 // pred_check_branch
      %2025 = sbr.rel (0) target = $region21
    $region20: #{tpu_custom_call.1} parent=1 // pred_region
      %2027 = vsyncadd [#allocation6], 0
      %s2028 = sshll.u32 [#allocation9], 4
      %s2029 = int_to_ptr.vmem [resolvable:$true] %s2028
      %s2030 = sshll.u32 %s2, 4
      %s2031 = int_to_ptr.hbm [resolvable:$true] %s2030
      %2036 = dma.vmem_to_hbm [thread:$0]  %s2029, 256, %s2031, [#allocation6], 128, 128, 8
    $region21: #{tpu_custom_call.1} parent=1 // pred_fallthru
      _
    // Predicated region
    $region22: #{tpu_custom_call.1} parent=1 // pred_check
      _
    $region23: #{tpu_custom_call.1} parent=1 // pred_check_branch
      %2038 = sbr.rel (0) target = $region25
    $region24: #{tpu_custom_call.1} parent=1 // pred_region
      %2040 = dma.done [#allocation6], 256
    $region25: #{tpu_custom_call.1} parent=1 // pred_fallthru
      _
    %2041 = vsyncpa [#allocation5], 1
    %2042 = vsyncpa [#allocation8], 1
    %2043 = vsyncpa [#allocation6], 1

</llo_original>
